<compile_context>
chip_gen: v5e
topology: v5e:2x2
jax: 0.10.0
libtpu: 0.0.40
codegen_flags: <defaults>
</compile_context>

<pallas_src>
import numpy as np
import jax
import jax.numpy as jnp
from jax.experimental import pallas as pl
from jax.experimental.pallas import tpu as pltpu


def _round_up(n, m):
    return ((n + m - 1) // m) * m


def _pick_batch_tile(B, target):
    """Batch tile: always a multiple of 128 (so the transposed (T, tb) score
    block is lane-dense and all in-kernel transposes are tile-aligned),
    capped at `target` rounded down to a 128 multiple."""
    tgt = max(128, (target // 128) * 128)
    return min(_round_up(B, 128), tgt)


def attention_kernel(att_ref, x_ref, cond_ref, score_ref):
    """One batch tile.

    att_ref   : (1, D)      resident attention weight (lane-major row)
    x_ref     : (tb, T, D)  input tile
    cond_ref  : (tb, D)     condensed output tile
    score_ref : (T, tb)     attention scores, lane-dense (transposed) layout
    """
    x = x_ref[...]                                   # (tb, T, D) f32
    a = att_ref[...]                                 # (1, D)

    # attention_score = x @ attention  -> (tb, T)   (lane reduction over D)
    s = jnp.sum(x * a[None, :, :], axis=-1)

    # One cheap XLU transpose puts the sequence axis on sublanes and the batch
    # tile on lanes, so the softmax vregs and the HBM store are lane-dense.
    s_t = s.T                                        # (T, tb)
    s_t = s_t - jnp.max(s_t, axis=0, keepdims=True)
    e = jnp.exp(s_t)
    p_t = e / jnp.sum(e, axis=0, keepdims=True)      # exact softmax
    score_ref[...] = p_t                             # unmasked lane-dense store

    # condensed_x = sum over T of x * score  (sublane reduction over T)
    p = p_t.T                                        # (tb, T), XLU transpose back
    cond_ref[...] = jnp.sum(x * p[:, :, None], axis=1)


def attention_forward(x, attention, *, block_b=1024):
    """x: (B, T, D) float32; attention: (D, 1) float32 (PyTorch parameter layout).

    Returns (condensed_x (B, D), attention_score (B, T, 1))."""
    B, T, D = x.shape
    att_row = attention.reshape(1, D).astype(jnp.float32)

    tb = _pick_batch_tile(B, block_b)
    B_pad = _round_up(B, tb)
    if B_pad != B:
        # Pad the batch so every grid step gets a full, aligned tile. Padded
        # (all-zero) rows produce a harmless uniform softmax and are sliced off.
        x = jnp.pad(x, ((0, B_pad - B), (0, 0), (0, 0)))
    grid = (B_pad // tb,)

    # Scoped-VMEM budget: double-buffered x + outputs, plus slack.
    lane_d = _round_up(D, 128)
    sub_t = _round_up(T, 8)
    vmem_need = 2 * (tb * sub_t * lane_d * 4          # x tile
                     + tb * lane_d * 4                # condensed tile
                     + sub_t * tb * 4)                # score tile (T, tb)
    vmem_limit = int(min(max(vmem_need + (8 << 20), 32 << 20), 64 << 20))

    cost = pl.CostEstimate(
        flops=4 * B_pad * T * D,
        transcendentals=B_pad * T,
        bytes_accessed=4 * (B_pad * T * D + B_pad * D + B_pad * T + D),
    )

    condensed, scores_t = pl.pallas_call(
        attention_kernel,
        grid=grid,
        out_shape=(jax.ShapeDtypeStruct((B_pad, D), jnp.float32),
                   jax.ShapeDtypeStruct((T, B_pad), jnp.float32)),
        in_specs=[
            pl.BlockSpec((1, D), lambda i: (0, 0)),            # weight: VMEM-resident
            pl.BlockSpec((tb, T, D), lambda i: (i, 0, 0)),     # x: batch-tiled
        ],
        out_specs=(
            pl.BlockSpec((tb, D), lambda i: (i, 0)),           # condensed_x
            pl.BlockSpec((T, tb), lambda i: (0, i)),           # scores, lane-dense
        ),
        compiler_params=pltpu.CompilerParams(
            # TODO(synk): on v7x, if a profile shows the batch grid is not
            # split across the two TensorCores, switch to pltpu.CORE_PARALLEL.
            dimension_semantics=(pltpu.PARALLEL,),
            vmem_limit_bytes=vmem_limit,
        ),
        cost_estimate=cost,
    )(att_row, x)

    condensed = condensed[:B]
    scores = scores_t[:, :B].T.reshape(B, T, 1)     # back to torch (B, T, 1)
    return condensed, scores


# ---- pure-JAX reference for validation -------------------------------------
def reference(x, attention):
    s = jnp.squeeze(jnp.matmul(x, attention, precision=jax.lax.Precision.HIGHEST),
                    axis=-1)                                   # (B, T)
    p = jax.nn.softmax(s, axis=1)
    condensed = jnp.sum(x * p[:, :, None], axis=1)
    return condensed, p[:, :, None]


if __name__ == "__main__":
    B, T, D = 144, 8, 64           # small shapes; D = attention_size

    key = jax.random.PRNGKey(0)
    kx, ka = jax.random.split(key)
    x = jax.random.normal(kx, (B, T, D), dtype=jnp.float32)
    # xavier_normal_ on a (D, 1) parameter -> std = sqrt(2 / (D + 1))
    attention = (jax.random.normal(ka, (D, 1), dtype=jnp.float32)
                 * np.float32(np.sqrt(2.0 / (D + 1))))

    ref_cond, ref_scores = reference(x, attention)

    # 1) default large-tile path (single full-extent, 128-aligned padded tile)
    cond1, sc1 = attention_forward(x, attention)
    # 2) tb=128 -> exercises batch padding + a 2-step pipelined grid
    cond2, sc2 = attention_forward(x, attention, block_b=128)
    jax.block_until_ready((cond1, sc1, cond2, sc2))

    for cond, sc in ((cond1, sc1), (cond2, sc2)):
        assert cond.shape == (B, D)
        assert sc.shape == (B, T, 1)
        np.testing.assert_allclose(np.asarray(cond), np.asarray(ref_cond),
                                   rtol=2e-3, atol=2e-3)
        np.testing.assert_allclose(np.asarray(sc), np.asarray(ref_scores),
                                   rtol=2e-3, atol=2e-3)
    print("KERNEL_OK")
</pallas_src>

<mosaic_0001>
module attributes {stable_mosaic.version = 11 : i64} {
  func.func @attention_kernel(%arg0: i32, %arg1: memref<1x64xf32, #tpu.memory_space<vmem>>, %arg2: memref<256x8x64xf32, #tpu.memory_space<vmem>>, %arg3: memref<256x64xf32, #tpu.memory_space<vmem>>, %arg4: memref<8x256xf32, #tpu.memory_space<vmem>>) attributes {dimension_semantics = [#tpu.dimension_semantics<parallel>], iteration_bounds = array<i64: 1>, scalar_prefetch = 0 : i64, scratch_operands = 0 : i64, tpu.core_type = #tpu.core_type<tc>, window_params = [{pipeline_mode = #tpu.pipeline_mode<synchronous>, transform_indices = @transform_0, window_bounds = array<i64: 1, 64>}, {transform_indices = @transform_1, window_bounds = array<i64: 256, 8, 64>}, {transform_indices = @transform_2, window_bounds = array<i64: 256, 64>}, {transform_indices = @transform_3, window_bounds = array<i64: 8, 256>}]} {
    %c0 = arith.constant 0 : index
    %c0_0 = arith.constant 0 : index
    %c0_1 = arith.constant 0 : index
    %0 = vector.load %arg2[%c0, %c0_0, %c0_1] : memref<256x8x64xf32, #tpu.memory_space<vmem>>, vector<256x8x64xf32>
    %c0_2 = arith.constant 0 : index
    %c0_3 = arith.constant 0 : index
    %1 = vector.load %arg1[%c0_2, %c0_3] : memref<1x64xf32, #tpu.memory_space<vmem>>, vector<1x64xf32>
    %2 = vector.shape_cast %1 : vector<1x64xf32> to vector<1x1x64xf32>
    %3 = vector.broadcast %2 : vector<1x1x64xf32> to vector<256x8x64xf32>
    %4 = arith.mulf %0, %3 : vector<256x8x64xf32>
    %cst = arith.constant dense<0.000000e+00> : vector<256x8xf32>
    %5 = vector.multi_reduction <add>, %4, %cst [2] : vector<256x8x64xf32> to vector<256x8xf32>
    %6 = tpu.transpose %5, [1, 0] : vector<256x8xf32> -> vector<8x256xf32>
    %cst_4 = arith.constant dense<0xFF800000> : vector<256xf32>
    %7 = vector.multi_reduction <maximumf>, %6, %cst_4 [0] : vector<8x256xf32> to vector<256xf32>
    %8 = vector.shape_cast %7 : vector<256xf32> to vector<1x256xf32>
    %9 = vector.broadcast %8 : vector<1x256xf32> to vector<8x256xf32>
    %10 = arith.subf %6, %9 : vector<8x256xf32>
    %11 = math.exp %10 : vector<8x256xf32>
    %cst_5 = arith.constant dense<0.000000e+00> : vector<256xf32>
    %12 = vector.multi_reduction <add>, %11, %cst_5 [0] : vector<8x256xf32> to vector<256xf32>
    %13 = vector.shape_cast %12 : vector<256xf32> to vector<1x256xf32>
    %14 = vector.broadcast %13 : vector<1x256xf32> to vector<8x256xf32>
    %15 = arith.divf %11, %14 : vector<8x256xf32>
    %c0_6 = arith.constant 0 : index
    %c0_7 = arith.constant 0 : index
    %16 = vector.load %arg4[%c0_6, %c0_7] : memref<8x256xf32, #tpu.memory_space<vmem>>, vector<8x256xf32>
    tpu.vector_store %arg4[%c0_6, %c0_7], %15 {strides = array<i32>} : memref<8x256xf32, #tpu.memory_space<vmem>>, vector<8x256xf32>,
    %17 = tpu.transpose %15, [1, 0] : vector<8x256xf32> -> vector<256x8xf32>
    %18 = vector.shape_cast %17 : vector<256x8xf32> to vector<256x8x1xf32>
    %19 = vector.broadcast %18 : vector<256x8x1xf32> to vector<256x8x64xf32>
    %20 = arith.mulf %0, %19 : vector<256x8x64xf32>
    %cst_8 = arith.constant dense<0.000000e+00> : vector<256x64xf32>
    %21 = vector.multi_reduction <add>, %20, %cst_8 [1] : vector<256x8x64xf32> to vector<256x64xf32>
    %c0_9 = arith.constant 0 : index
    %c0_10 = arith.constant 0 : index
    %22 = vector.load %arg3[%c0_9, %c0_10] : memref<256x64xf32, #tpu.memory_space<vmem>>, vector<256x64xf32>
    tpu.vector_store %arg3[%c0_9, %c0_10], %21 {strides = array<i32>} : memref<256x64xf32, #tpu.memory_space<vmem>>, vector<256x64xf32>,
    return
  }
  func.func @transform_0(%arg0: i32) -> (i32, i32) {
    %c0_i32 = arith.constant 0 : i32
    %c0_i32_0 = arith.constant 0 : i32
    %c0_i32_1 = arith.constant 0 : i32
    return %c0_i32, %c0_i32_0 : i32, i32
  }
  func.func @transform_1(%arg0: i32) -> (i32, i32, i32) {
    %c0_i32 = arith.constant 0 : i32
    %c0_i32_0 = arith.constant 0 : i32
    %c0_i32_1 = arith.constant 0 : i32
    return %arg0, %c0_i32, %c0_i32_0 : i32, i32, i32
  }
  func.func @transform_2(%arg0: i32) -> (i32, i32) {
    %c0_i32 = arith.constant 0 : i32
    %c0_i32_0 = arith.constant 0 : i32
    return %arg0, %c0_i32 : i32, i32
  }
  func.func @transform_3(%arg0: i32) -> (i32, i32) {
    %c0_i32 = arith.constant 0 : i32
    %c0_i32_0 = arith.constant 0 : i32
    return %c0_i32, %arg0 : i32, i32
  }
}

</mosaic_0001>

<llo_original>
// kernel: tpu_custom_call.1
$region0: #{tpu_custom_call.1}
  #allocation0 [shape = 'u32[]', space=smem, size = 0x4, offset = 0x4, fixed_abs, tag = 'smem constant byte address 0x4 - core index']
  #allocation1 [shape = 'u32[72,128]{1,0:T(1,128)}', space=vmem, size = 0x9000, scoped, tag = 'internal scratch']
  %s0 = inlined_call_operand.vmem [shape: f32[1,64], index: 0, kind: input, shape index: {}]
  %s1 = inlined_call_operand.vmem [shape: f32[256,8,64], index: 1, kind: input, shape index: {}]
  %s2 = inlined_call_operand.vmem [shape: f32[256,64], index: 2, kind: output, shape index: {0}]
  %s3 = inlined_call_operand.hbm [shape: f32[8,256], index: 3, kind: output, shape index: {1}]
  %4 = xla_tuple %s2, %s3
  %s5 = sld [smem:[#allocation0]]
  $region26: #{tpu_custom_call.1} parent=0
    _
  %s7 = ssub.s32 1, %s5
  %s8 = scalar_select 0, %s7, %s5
  $region1: #{tpu_custom_call.1} parent=0
    #allocation2 [shape = 'u8[8192]{0}', space=vmem, size = 0x2000, scoped, tag = 'output window, operand 1, single buffered']
    #allocation3 [shape = 's32[1]{0}', space=sflag, size = 0x4, scoped, tag = 'scoped memory for tpu_custom_call.1']
    %9 = vsyncpa [#allocation3], 0
    // Predicated region
    $region2: #{tpu_custom_call.1} parent=1 // pred_check
      _
    $region3: #{tpu_custom_call.1} parent=1 // pred_check_branch
      %11 = sbr.rel (0) target = $region5
    $region4: #{tpu_custom_call.1} parent=1 // pred_region
      _
    $region5: #{tpu_custom_call.1} parent=1 // pred_fallthru
      _
    // Predicated region
    $region6: #{tpu_custom_call.1} parent=1 // pred_check
      _
    $region7: #{tpu_custom_call.1} parent=1 // pred_check_branch
      %13 = sbr.rel (0) target = $region9
    $region8: #{tpu_custom_call.1} parent=1 // pred_region
      _
    $region9: #{tpu_custom_call.1} parent=1 // pred_fallthru
      _
    %v14 = vld [vmem:[%s1] sm:$0xff]
    %v15 = vld [vmem:[%s1 + $0x8] sm:$0xff]
    %v16 = vld [vmem:[%s1 + $0x10] sm:$0xff]
    %v17 = vld [vmem:[%s1 + $0x18] sm:$0xff]
    %v18 = vld [vmem:[%s1 + $0x20] sm:$0xff]
    %v19 = vld [vmem:[%s1 + $0x28] sm:$0xff]
    %v20 = vld [vmem:[%s1 + $0x30] sm:$0xff]
    %v21 = vld [vmem:[%s1 + $0x38] sm:$0xff]
    %v22 = vld [vmem:[%s1 + $0x40] sm:$0xff]
    %v23 = vld [vmem:[%s1 + $0x48] sm:$0xff]
    %v24 = vld [vmem:[%s1 + $0x50] sm:$0xff]
    %v25 = vld [vmem:[%s1 + $0x58] sm:$0xff]
    %v26 = vld [vmem:[%s1 + $0x60] sm:$0xff]
    %v27 = vld [vmem:[%s1 + $0x68] sm:$0xff]
    %v28 = vld [vmem:[%s1 + $0x70] sm:$0xff]
    %v29 = vld [vmem:[%s1 + $0x78] sm:$0xff]
    %v30 = vld [vmem:[%s1 + $0x80] sm:$0xff]
    %v31 = vld [vmem:[%s1 + $0x88] sm:$0xff]
    %v32 = vld [vmem:[%s1 + $0x90] sm:$0xff]
    %v33 = vld [vmem:[%s1 + $0x98] sm:$0xff]
    %v34 = vld [vmem:[%s1 + $0xa0] sm:$0xff]
    %v35 = vld [vmem:[%s1 + $0xa8] sm:$0xff]
    %v36 = vld [vmem:[%s1 + $0xb0] sm:$0xff]
    %v37 = vld [vmem:[%s1 + $0xb8] sm:$0xff]
    %v38 = vld [vmem:[%s1 + $0xc0] sm:$0xff]
    %v39 = vld [vmem:[%s1 + $0xc8] sm:$0xff]
    %v40 = vld [vmem:[%s1 + $0xd0] sm:$0xff]
    %v41 = vld [vmem:[%s1 + $0xd8] sm:$0xff]
    %v42 = vld [vmem:[%s1 + $0xe0] sm:$0xff]
    %v43 = vld [vmem:[%s1 + $0xe8] sm:$0xff]
    %v44 = vld [vmem:[%s1 + $0xf0] sm:$0xff]
    %v45 = vld [vmem:[%s1 + $0xf8] sm:$0xff]
    %v46 = vld [vmem:[%s1 + $0x100] sm:$0xff]
    %v47 = vld [vmem:[%s1 + $0x108] sm:$0xff]
    %v48 = vld [vmem:[%s1 + $0x110] sm:$0xff]
    %v49 = vld [vmem:[%s1 + $0x118] sm:$0xff]
    %v50 = vld [vmem:[%s1 + $0x120] sm:$0xff]
    %v51 = vld [vmem:[%s1 + $0x128] sm:$0xff]
    %v52 = vld [vmem:[%s1 + $0x130] sm:$0xff]
    %v53 = vld [vmem:[%s1 + $0x138] sm:$0xff]
    %v54 = vld [vmem:[%s1 + $0x140] sm:$0xff]
    %v55 = vld [vmem:[%s1 + $0x148] sm:$0xff]
    %v56 = vld [vmem:[%s1 + $0x150] sm:$0xff]
    %v57 = vld [vmem:[%s1 + $0x158] sm:$0xff]
    %v58 = vld [vmem:[%s1 + $0x160] sm:$0xff]
    %v59 = vld [vmem:[%s1 + $0x168] sm:$0xff]
    %v60 = vld [vmem:[%s1 + $0x170] sm:$0xff]
    %v61 = vld [vmem:[%s1 + $0x178] sm:$0xff]
    %v62 = vld [vmem:[%s1 + $0x180] sm:$0xff]
    %v63 = vld [vmem:[%s1 + $0x188] sm:$0xff]
    %v64 = vld [vmem:[%s1 + $0x190] sm:$0xff]
    %v65 = vld [vmem:[%s1 + $0x198] sm:$0xff]
    %v66 = vld [vmem:[%s1 + $0x1a0] sm:$0xff]
    %v67 = vld [vmem:[%s1 + $0x1a8] sm:$0xff]
    %v68 = vld [vmem:[%s1 + $0x1b0] sm:$0xff]
    %v69 = vld [vmem:[%s1 + $0x1b8] sm:$0xff]
    %v70 = vld [vmem:[%s1 + $0x1c0] sm:$0xff]
    %v71 = vld [vmem:[%s1 + $0x1c8] sm:$0xff]
    %v72 = vld [vmem:[%s1 + $0x1d0] sm:$0xff]
    %v73 = vld [vmem:[%s1 + $0x1d8] sm:$0xff]
    %v74 = vld [vmem:[%s1 + $0x1e0] sm:$0xff]
    %v75 = vld [vmem:[%s1 + $0x1e8] sm:$0xff]
    %v76 = vld [vmem:[%s1 + $0x1f0] sm:$0xff]
    %v77 = vld [vmem:[%s1 + $0x1f8] sm:$0xff]
    %v78 = vld [vmem:[%s1 + $0x200] sm:$0xff]
    %v79 = vld [vmem:[%s1 + $0x208] sm:$0xff]
    %v80 = vld [vmem:[%s1 + $0x210] sm:$0xff]
    %v81 = vld [vmem:[%s1 + $0x218] sm:$0xff]
    %v82 = vld [vmem:[%s1 + $0x220] sm:$0xff]
    %v83 = vld [vmem:[%s1 + $0x228] sm:$0xff]
    %v84 = vld [vmem:[%s1 + $0x230] sm:$0xff]
    %v85 = vld [vmem:[%s1 + $0x238] sm:$0xff]
    %v86 = vld [vmem:[%s1 + $0x240] sm:$0xff]
    %v87 = vld [vmem:[%s1 + $0x248] sm:$0xff]
    %v88 = vld [vmem:[%s1 + $0x250] sm:$0xff]
    %v89 = vld [vmem:[%s1 + $0x258] sm:$0xff]
    %v90 = vld [vmem:[%s1 + $0x260] sm:$0xff]
    %v91 = vld [vmem:[%s1 + $0x268] sm:$0xff]
    %v92 = vld [vmem:[%s1 + $0x270] sm:$0xff]
    %v93 = vld [vmem:[%s1 + $0x278] sm:$0xff]
    %v94 = vld [vmem:[%s1 + $0x280] sm:$0xff]
    %v95 = vld [vmem:[%s1 + $0x288] sm:$0xff]
    %v96 = vld [vmem:[%s1 + $0x290] sm:$0xff]
    %v97 = vld [vmem:[%s1 + $0x298] sm:$0xff]
    %v98 = vld [vmem:[%s1 + $0x2a0] sm:$0xff]
    %v99 = vld [vmem:[%s1 + $0x2a8] sm:$0xff]
    %v100 = vld [vmem:[%s1 + $0x2b0] sm:$0xff]
    %v101 = vld [vmem:[%s1 + $0x2b8] sm:$0xff]
    %v102 = vld [vmem:[%s1 + $0x2c0] sm:$0xff]
    %v103 = vld [vmem:[%s1 + $0x2c8] sm:$0xff]
    %v104 = vld [vmem:[%s1 + $0x2d0] sm:$0xff]
    %v105 = vld [vmem:[%s1 + $0x2d8] sm:$0xff]
    %v106 = vld [vmem:[%s1 + $0x2e0] sm:$0xff]
    %v107 = vld [vmem:[%s1 + $0x2e8] sm:$0xff]
    %v108 = vld [vmem:[%s1 + $0x2f0] sm:$0xff]
    %v109 = vld [vmem:[%s1 + $0x2f8] sm:$0xff]
    %v110 = vld [vmem:[%s1 + $0x300] sm:$0xff]
    %v111 = vld [vmem:[%s1 + $0x308] sm:$0xff]
    %v112 = vld [vmem:[%s1 + $0x310] sm:$0xff]
    %v113 = vld [vmem:[%s1 + $0x318] sm:$0xff]
    %v114 = vld [vmem:[%s1 + $0x320] sm:$0xff]
    %v115 = vld [vmem:[%s1 + $0x328] sm:$0xff]
    %v116 = vld [vmem:[%s1 + $0x330] sm:$0xff]
    %v117 = vld [vmem:[%s1 + $0x338] sm:$0xff]
    %v118 = vld [vmem:[%s1 + $0x340] sm:$0xff]
    %v119 = vld [vmem:[%s1 + $0x348] sm:$0xff]
    %v120 = vld [vmem:[%s1 + $0x350] sm:$0xff]
    %v121 = vld [vmem:[%s1 + $0x358] sm:$0xff]
    %v122 = vld [vmem:[%s1 + $0x360] sm:$0xff]
    %v123 = vld [vmem:[%s1 + $0x368] sm:$0xff]
    %v124 = vld [vmem:[%s1 + $0x370] sm:$0xff]
    %v125 = vld [vmem:[%s1 + $0x378] sm:$0xff]
    %v126 = vld [vmem:[%s1 + $0x380] sm:$0xff]
    %v127 = vld [vmem:[%s1 + $0x388] sm:$0xff]
    %v128 = vld [vmem:[%s1 + $0x390] sm:$0xff]
    %v129 = vld [vmem:[%s1 + $0x398] sm:$0xff]
    %v130 = vld [vmem:[%s1 + $0x3a0] sm:$0xff]
    %v131 = vld [vmem:[%s1 + $0x3a8] sm:$0xff]
    %v132 = vld [vmem:[%s1 + $0x3b0] sm:$0xff]
    %v133 = vld [vmem:[%s1 + $0x3b8] sm:$0xff]
    %v134 = vld [vmem:[%s1 + $0x3c0] sm:$0xff]
    %v135 = vld [vmem:[%s1 + $0x3c8] sm:$0xff]
    %v136 = vld [vmem:[%s1 + $0x3d0] sm:$0xff]
    %v137 = vld [vmem:[%s1 + $0x3d8] sm:$0xff]
    %v138 = vld [vmem:[%s1 + $0x3e0] sm:$0xff]
    %v139 = vld [vmem:[%s1 + $0x3e8] sm:$0xff]
    %v140 = vld [vmem:[%s1 + $0x3f0] sm:$0xff]
    %v141 = vld [vmem:[%s1 + $0x3f8] sm:$0xff]
    %v142 = vld [vmem:[%s1 + $0x400] sm:$0xff]
    %v143 = vld [vmem:[%s1 + $0x408] sm:$0xff]
    %v144 = vld [vmem:[%s1 + $0x410] sm:$0xff]
    %v145 = vld [vmem:[%s1 + $0x418] sm:$0xff]
    %v146 = vld [vmem:[%s1 + $0x420] sm:$0xff]
    %v147 = vld [vmem:[%s1 + $0x428] sm:$0xff]
    %v148 = vld [vmem:[%s1 + $0x430] sm:$0xff]
    %v149 = vld [vmem:[%s1 + $0x438] sm:$0xff]
    %v150 = vld [vmem:[%s1 + $0x440] sm:$0xff]
    %v151 = vld [vmem:[%s1 + $0x448] sm:$0xff]
    %v152 = vld [vmem:[%s1 + $0x450] sm:$0xff]
    %v153 = vld [vmem:[%s1 + $0x458] sm:$0xff]
    %v154 = vld [vmem:[%s1 + $0x460] sm:$0xff]
    %v155 = vld [vmem:[%s1 + $0x468] sm:$0xff]
    %v156 = vld [vmem:[%s1 + $0x470] sm:$0xff]
    %v157 = vld [vmem:[%s1 + $0x478] sm:$0xff]
    %v158 = vld [vmem:[%s1 + $0x480] sm:$0xff]
    %v159 = vld [vmem:[%s1 + $0x488] sm:$0xff]
    %v160 = vld [vmem:[%s1 + $0x490] sm:$0xff]
    %v161 = vld [vmem:[%s1 + $0x498] sm:$0xff]
    %v162 = vld [vmem:[%s1 + $0x4a0] sm:$0xff]
    %v163 = vld [vmem:[%s1 + $0x4a8] sm:$0xff]
    %v164 = vld [vmem:[%s1 + $0x4b0] sm:$0xff]
    %v165 = vld [vmem:[%s1 + $0x4b8] sm:$0xff]
    %v166 = vld [vmem:[%s1 + $0x4c0] sm:$0xff]
    %v167 = vld [vmem:[%s1 + $0x4c8] sm:$0xff]
    %v168 = vld [vmem:[%s1 + $0x4d0] sm:$0xff]
    %v169 = vld [vmem:[%s1 + $0x4d8] sm:$0xff]
    %v170 = vld [vmem:[%s1 + $0x4e0] sm:$0xff]
    %v171 = vld [vmem:[%s1 + $0x4e8] sm:$0xff]
    %v172 = vld [vmem:[%s1 + $0x4f0] sm:$0xff]
    %v173 = vld [vmem:[%s1 + $0x4f8] sm:$0xff]
    %v174 = vld [vmem:[%s1 + $0x500] sm:$0xff]
    %v175 = vld [vmem:[%s1 + $0x508] sm:$0xff]
    %v176 = vld [vmem:[%s1 + $0x510] sm:$0xff]
    %v177 = vld [vmem:[%s1 + $0x518] sm:$0xff]
    %v178 = vld [vmem:[%s1 + $0x520] sm:$0xff]
    %v179 = vld [vmem:[%s1 + $0x528] sm:$0xff]
    %v180 = vld [vmem:[%s1 + $0x530] sm:$0xff]
    %v181 = vld [vmem:[%s1 + $0x538] sm:$0xff]
    %v182 = vld [vmem:[%s1 + $0x540] sm:$0xff]
    %v183 = vld [vmem:[%s1 + $0x548] sm:$0xff]
    %v184 = vld [vmem:[%s1 + $0x550] sm:$0xff]
    %v185 = vld [vmem:[%s1 + $0x558] sm:$0xff]
    %v186 = vld [vmem:[%s1 + $0x560] sm:$0xff]
    %v187 = vld [vmem:[%s1 + $0x568] sm:$0xff]
    %v188 = vld [vmem:[%s1 + $0x570] sm:$0xff]
    %v189 = vld [vmem:[%s1 + $0x578] sm:$0xff]
    %v190 = vld [vmem:[%s1 + $0x580] sm:$0xff]
    %v191 = vld [vmem:[%s1 + $0x588] sm:$0xff]
    %v192 = vld [vmem:[%s1 + $0x590] sm:$0xff]
    %v193 = vld [vmem:[%s1 + $0x598] sm:$0xff]
    %v194 = vld [vmem:[%s1 + $0x5a0] sm:$0xff]
    %v195 = vld [vmem:[%s1 + $0x5a8] sm:$0xff]
    %v196 = vld [vmem:[%s1 + $0x5b0] sm:$0xff]
    %v197 = vld [vmem:[%s1 + $0x5b8] sm:$0xff]
    %v198 = vld [vmem:[%s1 + $0x5c0] sm:$0xff]
    %v199 = vld [vmem:[%s1 + $0x5c8] sm:$0xff]
    %v200 = vld [vmem:[%s1 + $0x5d0] sm:$0xff]
    %v201 = vld [vmem:[%s1 + $0x5d8] sm:$0xff]
    %v202 = vld [vmem:[%s1 + $0x5e0] sm:$0xff]
    %v203 = vld [vmem:[%s1 + $0x5e8] sm:$0xff]
    %v204 = vld [vmem:[%s1 + $0x5f0] sm:$0xff]
    %v205 = vld [vmem:[%s1 + $0x5f8] sm:$0xff]
    %v206 = vld [vmem:[%s1 + $0x600] sm:$0xff]
    %v207 = vld [vmem:[%s1 + $0x608] sm:$0xff]
    %v208 = vld [vmem:[%s1 + $0x610] sm:$0xff]
    %v209 = vld [vmem:[%s1 + $0x618] sm:$0xff]
    %v210 = vld [vmem:[%s1 + $0x620] sm:$0xff]
    %v211 = vld [vmem:[%s1 + $0x628] sm:$0xff]
    %v212 = vld [vmem:[%s1 + $0x630] sm:$0xff]
    %v213 = vld [vmem:[%s1 + $0x638] sm:$0xff]
    %v214 = vld [vmem:[%s1 + $0x640] sm:$0xff]
    %v215 = vld [vmem:[%s1 + $0x648] sm:$0xff]
    %v216 = vld [vmem:[%s1 + $0x650] sm:$0xff]
    %v217 = vld [vmem:[%s1 + $0x658] sm:$0xff]
    %v218 = vld [vmem:[%s1 + $0x660] sm:$0xff]
    %v219 = vld [vmem:[%s1 + $0x668] sm:$0xff]
    %v220 = vld [vmem:[%s1 + $0x670] sm:$0xff]
    %v221 = vld [vmem:[%s1 + $0x678] sm:$0xff]
    %v222 = vld [vmem:[%s1 + $0x680] sm:$0xff]
    %v223 = vld [vmem:[%s1 + $0x688] sm:$0xff]
    %v224 = vld [vmem:[%s1 + $0x690] sm:$0xff]
    %v225 = vld [vmem:[%s1 + $0x698] sm:$0xff]
    %v226 = vld [vmem:[%s1 + $0x6a0] sm:$0xff]
    %v227 = vld [vmem:[%s1 + $0x6a8] sm:$0xff]
    %v228 = vld [vmem:[%s1 + $0x6b0] sm:$0xff]
    %v229 = vld [vmem:[%s1 + $0x6b8] sm:$0xff]
    %v230 = vld [vmem:[%s1 + $0x6c0] sm:$0xff]
    %v231 = vld [vmem:[%s1 + $0x6c8] sm:$0xff]
    %v232 = vld [vmem:[%s1 + $0x6d0] sm:$0xff]
    %v233 = vld [vmem:[%s1 + $0x6d8] sm:$0xff]
    %v234 = vld [vmem:[%s1 + $0x6e0] sm:$0xff]
    %v235 = vld [vmem:[%s1 + $0x6e8] sm:$0xff]
    %v236 = vld [vmem:[%s1 + $0x6f0] sm:$0xff]
    %v237 = vld [vmem:[%s1 + $0x6f8] sm:$0xff]
    %v238 = vld [vmem:[%s1 + $0x700] sm:$0xff]
    %v239 = vld [vmem:[%s1 + $0x708] sm:$0xff]
    %v240 = vld [vmem:[%s1 + $0x710] sm:$0xff]
    %v241 = vld [vmem:[%s1 + $0x718] sm:$0xff]
    %v242 = vld [vmem:[%s1 + $0x720] sm:$0xff]
    %v243 = vld [vmem:[%s1 + $0x728] sm:$0xff]
    %v244 = vld [vmem:[%s1 + $0x730] sm:$0xff]
    %v245 = vld [vmem:[%s1 + $0x738] sm:$0xff]
    %v246 = vld [vmem:[%s1 + $0x740] sm:$0xff]
    %v247 = vld [vmem:[%s1 + $0x748] sm:$0xff]
    %v248 = vld [vmem:[%s1 + $0x750] sm:$0xff]
    %v249 = vld [vmem:[%s1 + $0x758] sm:$0xff]
    %v250 = vld [vmem:[%s1 + $0x760] sm:$0xff]
    %v251 = vld [vmem:[%s1 + $0x768] sm:$0xff]
    %v252 = vld [vmem:[%s1 + $0x770] sm:$0xff]
    %v253 = vld [vmem:[%s1 + $0x778] sm:$0xff]
    %v254 = vld [vmem:[%s1 + $0x780] sm:$0xff]
    %v255 = vld [vmem:[%s1 + $0x788] sm:$0xff]
    %v256 = vld [vmem:[%s1 + $0x790] sm:$0xff]
    %v257 = vld [vmem:[%s1 + $0x798] sm:$0xff]
    %v258 = vld [vmem:[%s1 + $0x7a0] sm:$0xff]
    %v259 = vld [vmem:[%s1 + $0x7a8] sm:$0xff]
    %v260 = vld [vmem:[%s1 + $0x7b0] sm:$0xff]
    %v261 = vld [vmem:[%s1 + $0x7b8] sm:$0xff]
    %v262 = vld [vmem:[%s1 + $0x7c0] sm:$0xff]
    %v263 = vld [vmem:[%s1 + $0x7c8] sm:$0xff]
    %v264 = vld [vmem:[%s1 + $0x7d0] sm:$0xff]
    %v265 = vld [vmem:[%s1 + $0x7d8] sm:$0xff]
    %v266 = vld [vmem:[%s1 + $0x7e0] sm:$0xff]
    %v267 = vld [vmem:[%s1 + $0x7e8] sm:$0xff]
    %v268 = vld [vmem:[%s1 + $0x7f0] sm:$0xff]
    %v269 = vld [vmem:[%s1 + $0x7f8] sm:$0xff]
    %v270 = vld [vmem:[%s0] sm:$0x1]
    %v272 = vperm.slane %v270, 0
    %v274 = vmul.f32 %v14, %v272
    %v275 = vmul.f32 %v15, %v272
    %v276 = vmul.f32 %v16, %v272
    %v277 = vmul.f32 %v17, %v272
    %v278 = vmul.f32 %v18, %v272
    %v279 = vmul.f32 %v19, %v272
    %v280 = vmul.f32 %v20, %v272
    %v281 = vmul.f32 %v21, %v272
    %v282 = vmul.f32 %v22, %v272
    %v283 = vmul.f32 %v23, %v272
    %v284 = vmul.f32 %v24, %v272
    %v285 = vmul.f32 %v25, %v272
    %v286 = vmul.f32 %v26, %v272
    %v287 = vmul.f32 %v27, %v272
    %v288 = vmul.f32 %v28, %v272
    %v289 = vmul.f32 %v29, %v272
    %v290 = vmul.f32 %v30, %v272
    %v291 = vmul.f32 %v31, %v272
    %v292 = vmul.f32 %v32, %v272
    %v293 = vmul.f32 %v33, %v272
    %v294 = vmul.f32 %v34, %v272
    %v295 = vmul.f32 %v35, %v272
    %v296 = vmul.f32 %v36, %v272
    %v297 = vmul.f32 %v37, %v272
    %v298 = vmul.f32 %v38, %v272
    %v299 = vmul.f32 %v39, %v272
    %v300 = vmul.f32 %v40, %v272
    %v301 = vmul.f32 %v41, %v272
    %v302 = vmul.f32 %v42, %v272
    %v303 = vmul.f32 %v43, %v272
    %v304 = vmul.f32 %v44, %v272
    %v305 = vmul.f32 %v45, %v272
    %v306 = vmul.f32 %v46, %v272
    %v307 = vmul.f32 %v47, %v272
    %v308 = vmul.f32 %v48, %v272
    %v309 = vmul.f32 %v49, %v272
    %v310 = vmul.f32 %v50, %v272
    %v311 = vmul.f32 %v51, %v272
    %v312 = vmul.f32 %v52, %v272
    %v313 = vmul.f32 %v53, %v272
    %v314 = vmul.f32 %v54, %v272
    %v315 = vmul.f32 %v55, %v272
    %v316 = vmul.f32 %v56, %v272
    %v317 = vmul.f32 %v57, %v272
    %v318 = vmul.f32 %v58, %v272
    %v319 = vmul.f32 %v59, %v272
    %v320 = vmul.f32 %v60, %v272
    %v321 = vmul.f32 %v61, %v272
    %v322 = vmul.f32 %v62, %v272
    %v323 = vmul.f32 %v63, %v272
    %v324 = vmul.f32 %v64, %v272
    %v325 = vmul.f32 %v65, %v272
    %v326 = vmul.f32 %v66, %v272
    %v327 = vmul.f32 %v67, %v272
    %v328 = vmul.f32 %v68, %v272
    %v329 = vmul.f32 %v69, %v272
    %v330 = vmul.f32 %v70, %v272
    %v331 = vmul.f32 %v71, %v272
    %v332 = vmul.f32 %v72, %v272
    %v333 = vmul.f32 %v73, %v272
    %v334 = vmul.f32 %v74, %v272
    %v335 = vmul.f32 %v75, %v272
    %v336 = vmul.f32 %v76, %v272
    %v337 = vmul.f32 %v77, %v272
    %v338 = vmul.f32 %v78, %v272
    %v339 = vmul.f32 %v79, %v272
    %v340 = vmul.f32 %v80, %v272
    %v341 = vmul.f32 %v81, %v272
    %v342 = vmul.f32 %v82, %v272
    %v343 = vmul.f32 %v83, %v272
    %v344 = vmul.f32 %v84, %v272
    %v345 = vmul.f32 %v85, %v272
    %v346 = vmul.f32 %v86, %v272
    %v347 = vmul.f32 %v87, %v272
    %v348 = vmul.f32 %v88, %v272
    %v349 = vmul.f32 %v89, %v272
    %v350 = vmul.f32 %v90, %v272
    %v351 = vmul.f32 %v91, %v272
    %v352 = vmul.f32 %v92, %v272
    %v353 = vmul.f32 %v93, %v272
    %v354 = vmul.f32 %v94, %v272
    %v355 = vmul.f32 %v95, %v272
    %v356 = vmul.f32 %v96, %v272
    %v357 = vmul.f32 %v97, %v272
    %v358 = vmul.f32 %v98, %v272
    %v359 = vmul.f32 %v99, %v272
    %v360 = vmul.f32 %v100, %v272
    %v361 = vmul.f32 %v101, %v272
    %v362 = vmul.f32 %v102, %v272
    %v363 = vmul.f32 %v103, %v272
    %v364 = vmul.f32 %v104, %v272
    %v365 = vmul.f32 %v105, %v272
    %v366 = vmul.f32 %v106, %v272
    %v367 = vmul.f32 %v107, %v272
    %v368 = vmul.f32 %v108, %v272
    %v369 = vmul.f32 %v109, %v272
    %v370 = vmul.f32 %v110, %v272
    %v371 = vmul.f32 %v111, %v272
    %v372 = vmul.f32 %v112, %v272
    %v373 = vmul.f32 %v113, %v272
    %v374 = vmul.f32 %v114, %v272
    %v375 = vmul.f32 %v115, %v272
    %v376 = vmul.f32 %v116, %v272
    %v377 = vmul.f32 %v117, %v272
    %v378 = vmul.f32 %v118, %v272
    %v379 = vmul.f32 %v119, %v272
    %v380 = vmul.f32 %v120, %v272
    %v381 = vmul.f32 %v121, %v272
    %v382 = vmul.f32 %v122, %v272
    %v383 = vmul.f32 %v123, %v272
    %v384 = vmul.f32 %v124, %v272
    %v385 = vmul.f32 %v125, %v272
    %v386 = vmul.f32 %v126, %v272
    %v387 = vmul.f32 %v127, %v272
    %v388 = vmul.f32 %v128, %v272
    %v389 = vmul.f32 %v129, %v272
    %v390 = vmul.f32 %v130, %v272
    %v391 = vmul.f32 %v131, %v272
    %v392 = vmul.f32 %v132, %v272
    %v393 = vmul.f32 %v133, %v272
    %v394 = vmul.f32 %v134, %v272
    %v395 = vmul.f32 %v135, %v272
    %v396 = vmul.f32 %v136, %v272
    %v397 = vmul.f32 %v137, %v272
    %v398 = vmul.f32 %v138, %v272
    %v399 = vmul.f32 %v139, %v272
    %v400 = vmul.f32 %v140, %v272
    %v401 = vmul.f32 %v141, %v272
    %v402 = vmul.f32 %v142, %v272
    %v403 = vmul.f32 %v143, %v272
    %v404 = vmul.f32 %v144, %v272
    %v405 = vmul.f32 %v145, %v272
    %v406 = vmul.f32 %v146, %v272
    %v407 = vmul.f32 %v147, %v272
    %v408 = vmul.f32 %v148, %v272
    %v409 = vmul.f32 %v149, %v272
    %v410 = vmul.f32 %v150, %v272
    %v411 = vmul.f32 %v151, %v272
    %v412 = vmul.f32 %v152, %v272
    %v413 = vmul.f32 %v153, %v272
    %v414 = vmul.f32 %v154, %v272
    %v415 = vmul.f32 %v155, %v272
    %v416 = vmul.f32 %v156, %v272
    %v417 = vmul.f32 %v157, %v272
    %v418 = vmul.f32 %v158, %v272
    %v419 = vmul.f32 %v159, %v272
    %v420 = vmul.f32 %v160, %v272
    %v421 = vmul.f32 %v161, %v272
    %v422 = vmul.f32 %v162, %v272
    %v423 = vmul.f32 %v163, %v272
    %v424 = vmul.f32 %v164, %v272
    %v425 = vmul.f32 %v165, %v272
    %v426 = vmul.f32 %v166, %v272
    %v427 = vmul.f32 %v167, %v272
    %v428 = vmul.f32 %v168, %v272
    %v429 = vmul.f32 %v169, %v272
    %v430 = vmul.f32 %v170, %v272
    %v431 = vmul.f32 %v171, %v272
    %v432 = vmul.f32 %v172, %v272
    %v433 = vmul.f32 %v173, %v272
    %v434 = vmul.f32 %v174, %v272
    %v435 = vmul.f32 %v175, %v272
    %v436 = vmul.f32 %v176, %v272
    %v437 = vmul.f32 %v177, %v272
    %v438 = vmul.f32 %v178, %v272
    %v439 = vmul.f32 %v179, %v272
    %v440 = vmul.f32 %v180, %v272
    %v441 = vmul.f32 %v181, %v272
    %v442 = vmul.f32 %v182, %v272
    %v443 = vmul.f32 %v183, %v272
    %v444 = vmul.f32 %v184, %v272
    %v445 = vmul.f32 %v185, %v272
    %v446 = vmul.f32 %v186, %v272
    %v447 = vmul.f32 %v187, %v272
    %v448 = vmul.f32 %v188, %v272
    %v449 = vmul.f32 %v189, %v272
    %v450 = vmul.f32 %v190, %v272
    %v451 = vmul.f32 %v191, %v272
    %v452 = vmul.f32 %v192, %v272
    %v453 = vmul.f32 %v193, %v272
    %v454 = vmul.f32 %v194, %v272
    %v455 = vmul.f32 %v195, %v272
    %v456 = vmul.f32 %v196, %v272
    %v457 = vmul.f32 %v197, %v272
    %v458 = vmul.f32 %v198, %v272
    %v459 = vmul.f32 %v199, %v272
    %v460 = vmul.f32 %v200, %v272
    %v461 = vmul.f32 %v201, %v272
    %v462 = vmul.f32 %v202, %v272
    %v463 = vmul.f32 %v203, %v272
    %v464 = vmul.f32 %v204, %v272
    %v465 = vmul.f32 %v205, %v272
    %v466 = vmul.f32 %v206, %v272
    %v467 = vmul.f32 %v207, %v272
    %v468 = vmul.f32 %v208, %v272
    %v469 = vmul.f32 %v209, %v272
    %v470 = vmul.f32 %v210, %v272
    %v471 = vmul.f32 %v211, %v272
    %v472 = vmul.f32 %v212, %v272
    %v473 = vmul.f32 %v213, %v272
    %v474 = vmul.f32 %v214, %v272
    %v475 = vmul.f32 %v215, %v272
    %v476 = vmul.f32 %v216, %v272
    %v477 = vmul.f32 %v217, %v272
    %v478 = vmul.f32 %v218, %v272
    %v479 = vmul.f32 %v219, %v272
    %v480 = vmul.f32 %v220, %v272
    %v481 = vmul.f32 %v221, %v272
    %v482 = vmul.f32 %v222, %v272
    %v483 = vmul.f32 %v223, %v272
    %v484 = vmul.f32 %v224, %v272
    %v485 = vmul.f32 %v225, %v272
    %v486 = vmul.f32 %v226, %v272
    %v487 = vmul.f32 %v227, %v272
    %v488 = vmul.f32 %v228, %v272
    %v489 = vmul.f32 %v229, %v272
    %v490 = vmul.f32 %v230, %v272
    %v491 = vmul.f32 %v231, %v272
    %v492 = vmul.f32 %v232, %v272
    %v493 = vmul.f32 %v233, %v272
    %v494 = vmul.f32 %v234, %v272
    %v495 = vmul.f32 %v235, %v272
    %v496 = vmul.f32 %v236, %v272
    %v497 = vmul.f32 %v237, %v272
    %v498 = vmul.f32 %v238, %v272
    %v499 = vmul.f32 %v239, %v272
    %v500 = vmul.f32 %v240, %v272
    %v501 = vmul.f32 %v241, %v272
    %v502 = vmul.f32 %v242, %v272
    %v503 = vmul.f32 %v243, %v272
    %v504 = vmul.f32 %v244, %v272
    %v505 = vmul.f32 %v245, %v272
    %v506 = vmul.f32 %v246, %v272
    %v507 = vmul.f32 %v247, %v272
    %v508 = vmul.f32 %v248, %v272
    %v509 = vmul.f32 %v249, %v272
    %v510 = vmul.f32 %v250, %v272
    %v511 = vmul.f32 %v251, %v272
    %v512 = vmul.f32 %v252, %v272
    %v513 = vmul.f32 %v253, %v272
    %v514 = vmul.f32 %v254, %v272
    %v515 = vmul.f32 %v255, %v272
    %v516 = vmul.f32 %v256, %v272
    %v517 = vmul.f32 %v257, %v272
    %v518 = vmul.f32 %v258, %v272
    %v519 = vmul.f32 %v259, %v272
    %v520 = vmul.f32 %v260, %v272
    %v521 = vmul.f32 %v261, %v272
    %v522 = vmul.f32 %v262, %v272
    %v523 = vmul.f32 %v263, %v272
    %v524 = vmul.f32 %v264, %v272
    %v525 = vmul.f32 %v265, %v272
    %v526 = vmul.f32 %v266, %v272
    %v527 = vmul.f32 %v267, %v272
    %v528 = vmul.f32 %v268, %v272
    %v529 = vmul.f32 %v269, %v272
    %vm530 = vcmask 523264
    %v531 = vsel %vm530, %v274, 0.0
    %532 = vadd.xlane.f32.xlu0 %v531
    %v533 = vpop.xlane.xlu0 %532
    %v534 = vsel %vm530, %v275, 0.0
    %535 = vadd.xlane.f32.xlu0 %v534
    %v536 = vpop.xlane.xlu0 %535
    %v537 = vsel %vm530, %v276, 0.0
    %538 = vadd.xlane.f32.xlu0 %v537
    %v539 = vpop.xlane.xlu0 %538
    %v540 = vsel %vm530, %v277, 0.0
    %541 = vadd.xlane.f32.xlu0 %v540
    %v542 = vpop.xlane.xlu0 %541
    %v543 = vsel %vm530, %v278, 0.0
    %544 = vadd.xlane.f32.xlu0 %v543
    %v545 = vpop.xlane.xlu0 %544
    %v546 = vsel %vm530, %v279, 0.0
    %547 = vadd.xlane.f32.xlu0 %v546
    %v548 = vpop.xlane.xlu0 %547
    %v549 = vsel %vm530, %v280, 0.0
    %550 = vadd.xlane.f32.xlu0 %v549
    %v551 = vpop.xlane.xlu0 %550
    %v552 = vsel %vm530, %v281, 0.0
    %553 = vadd.xlane.f32.xlu0 %v552
    %v554 = vpop.xlane.xlu0 %553
    %v555 = vsel %vm530, %v282, 0.0
    %556 = vadd.xlane.f32.xlu0 %v555
    %v557 = vpop.xlane.xlu0 %556
    %v558 = vsel %vm530, %v283, 0.0
    %559 = vadd.xlane.f32.xlu0 %v558
    %v560 = vpop.xlane.xlu0 %559
    %v561 = vsel %vm530, %v284, 0.0
    %562 = vadd.xlane.f32.xlu0 %v561
    %v563 = vpop.xlane.xlu0 %562
    %v564 = vsel %vm530, %v285, 0.0
    %565 = vadd.xlane.f32.xlu0 %v564
    %v566 = vpop.xlane.xlu0 %565
    %v567 = vsel %vm530, %v286, 0.0
    %568 = vadd.xlane.f32.xlu0 %v567
    %v569 = vpop.xlane.xlu0 %568
    %v570 = vsel %vm530, %v287, 0.0
    %571 = vadd.xlane.f32.xlu0 %v570
    %v572 = vpop.xlane.xlu0 %571
    %v573 = vsel %vm530, %v288, 0.0
    %574 = vadd.xlane.f32.xlu0 %v573
    %v575 = vpop.xlane.xlu0 %574
    %v576 = vsel %vm530, %v289, 0.0
    %577 = vadd.xlane.f32.xlu0 %v576
    %v578 = vpop.xlane.xlu0 %577
    %v579 = vsel %vm530, %v290, 0.0
    %580 = vadd.xlane.f32.xlu0 %v579
    %v581 = vpop.xlane.xlu0 %580
    %v582 = vsel %vm530, %v291, 0.0
    %583 = vadd.xlane.f32.xlu0 %v582
    %v584 = vpop.xlane.xlu0 %583
    %v585 = vsel %vm530, %v292, 0.0
    %586 = vadd.xlane.f32.xlu0 %v585
    %v587 = vpop.xlane.xlu0 %586
    %v588 = vsel %vm530, %v293, 0.0
    %589 = vadd.xlane.f32.xlu0 %v588
    %v590 = vpop.xlane.xlu0 %589
    %v591 = vsel %vm530, %v294, 0.0
    %592 = vadd.xlane.f32.xlu0 %v591
    %v593 = vpop.xlane.xlu0 %592
    %v594 = vsel %vm530, %v295, 0.0
    %595 = vadd.xlane.f32.xlu0 %v594
    %v596 = vpop.xlane.xlu0 %595
    %v597 = vsel %vm530, %v296, 0.0
    %598 = vadd.xlane.f32.xlu0 %v597
    %v599 = vpop.xlane.xlu0 %598
    %v600 = vsel %vm530, %v297, 0.0
    %601 = vadd.xlane.f32.xlu0 %v600
    %v602 = vpop.xlane.xlu0 %601
    %v603 = vsel %vm530, %v298, 0.0
    %604 = vadd.xlane.f32.xlu0 %v603
    %v605 = vpop.xlane.xlu0 %604
    %v606 = vsel %vm530, %v299, 0.0
    %607 = vadd.xlane.f32.xlu0 %v606
    %v608 = vpop.xlane.xlu0 %607
    %v609 = vsel %vm530, %v300, 0.0
    %610 = vadd.xlane.f32.xlu0 %v609
    %v611 = vpop.xlane.xlu0 %610
    %v612 = vsel %vm530, %v301, 0.0
    %613 = vadd.xlane.f32.xlu0 %v612
    %v614 = vpop.xlane.xlu0 %613
    %v615 = vsel %vm530, %v302, 0.0
    %616 = vadd.xlane.f32.xlu0 %v615
    %v617 = vpop.xlane.xlu0 %616
    %v618 = vsel %vm530, %v303, 0.0
    %619 = vadd.xlane.f32.xlu0 %v618
    %v620 = vpop.xlane.xlu0 %619
    %v621 = vsel %vm530, %v304, 0.0
    %622 = vadd.xlane.f32.xlu0 %v621
    %v623 = vpop.xlane.xlu0 %622
    %v624 = vsel %vm530, %v305, 0.0
    %625 = vadd.xlane.f32.xlu0 %v624
    %v626 = vpop.xlane.xlu0 %625
    %v627 = vsel %vm530, %v306, 0.0
    %628 = vadd.xlane.f32.xlu0 %v627
    %v629 = vpop.xlane.xlu0 %628
    %v630 = vsel %vm530, %v307, 0.0
    %631 = vadd.xlane.f32.xlu0 %v630
    %v632 = vpop.xlane.xlu0 %631
    %v633 = vsel %vm530, %v308, 0.0
    %634 = vadd.xlane.f32.xlu0 %v633
    %v635 = vpop.xlane.xlu0 %634
    %v636 = vsel %vm530, %v309, 0.0
    %637 = vadd.xlane.f32.xlu0 %v636
    %v638 = vpop.xlane.xlu0 %637
    %v639 = vsel %vm530, %v310, 0.0
    %640 = vadd.xlane.f32.xlu0 %v639
    %v641 = vpop.xlane.xlu0 %640
    %v642 = vsel %vm530, %v311, 0.0
    %643 = vadd.xlane.f32.xlu0 %v642
    %v644 = vpop.xlane.xlu0 %643
    %v645 = vsel %vm530, %v312, 0.0
    %646 = vadd.xlane.f32.xlu0 %v645
    %v647 = vpop.xlane.xlu0 %646
    %v648 = vsel %vm530, %v313, 0.0
    %649 = vadd.xlane.f32.xlu0 %v648
    %v650 = vpop.xlane.xlu0 %649
    %v651 = vsel %vm530, %v314, 0.0
    %652 = vadd.xlane.f32.xlu0 %v651
    %v653 = vpop.xlane.xlu0 %652
    %v654 = vsel %vm530, %v315, 0.0
    %655 = vadd.xlane.f32.xlu0 %v654
    %v656 = vpop.xlane.xlu0 %655
    %v657 = vsel %vm530, %v316, 0.0
    %658 = vadd.xlane.f32.xlu0 %v657
    %v659 = vpop.xlane.xlu0 %658
    %v660 = vsel %vm530, %v317, 0.0
    %661 = vadd.xlane.f32.xlu0 %v660
    %v662 = vpop.xlane.xlu0 %661
    %v663 = vsel %vm530, %v318, 0.0
    %664 = vadd.xlane.f32.xlu0 %v663
    %v665 = vpop.xlane.xlu0 %664
    %v666 = vsel %vm530, %v319, 0.0
    %667 = vadd.xlane.f32.xlu0 %v666
    %v668 = vpop.xlane.xlu0 %667
    %v669 = vsel %vm530, %v320, 0.0
    %670 = vadd.xlane.f32.xlu0 %v669
    %v671 = vpop.xlane.xlu0 %670
    %v672 = vsel %vm530, %v321, 0.0
    %673 = vadd.xlane.f32.xlu0 %v672
    %v674 = vpop.xlane.xlu0 %673
    %v675 = vsel %vm530, %v322, 0.0
    %676 = vadd.xlane.f32.xlu0 %v675
    %v677 = vpop.xlane.xlu0 %676
    %v678 = vsel %vm530, %v323, 0.0
    %679 = vadd.xlane.f32.xlu0 %v678
    %v680 = vpop.xlane.xlu0 %679
    %v681 = vsel %vm530, %v324, 0.0
    %682 = vadd.xlane.f32.xlu0 %v681
    %v683 = vpop.xlane.xlu0 %682
    %v684 = vsel %vm530, %v325, 0.0
    %685 = vadd.xlane.f32.xlu0 %v684
    %v686 = vpop.xlane.xlu0 %685
    %v687 = vsel %vm530, %v326, 0.0
    %688 = vadd.xlane.f32.xlu0 %v687
    %v689 = vpop.xlane.xlu0 %688
    %v690 = vsel %vm530, %v327, 0.0
    %691 = vadd.xlane.f32.xlu0 %v690
    %v692 = vpop.xlane.xlu0 %691
    %v693 = vsel %vm530, %v328, 0.0
    %694 = vadd.xlane.f32.xlu0 %v693
    %v695 = vpop.xlane.xlu0 %694
    %v696 = vsel %vm530, %v329, 0.0
    %697 = vadd.xlane.f32.xlu0 %v696
    %v698 = vpop.xlane.xlu0 %697
    %v699 = vsel %vm530, %v330, 0.0
    %700 = vadd.xlane.f32.xlu0 %v699
    %v701 = vpop.xlane.xlu0 %700
    %v702 = vsel %vm530, %v331, 0.0
    %703 = vadd.xlane.f32.xlu0 %v702
    %v704 = vpop.xlane.xlu0 %703
    %v705 = vsel %vm530, %v332, 0.0
    %706 = vadd.xlane.f32.xlu0 %v705
    %v707 = vpop.xlane.xlu0 %706
    %v708 = vsel %vm530, %v333, 0.0
    %709 = vadd.xlane.f32.xlu0 %v708
    %v710 = vpop.xlane.xlu0 %709
    %v711 = vsel %vm530, %v334, 0.0
    %712 = vadd.xlane.f32.xlu0 %v711
    %v713 = vpop.xlane.xlu0 %712
    %v714 = vsel %vm530, %v335, 0.0
    %715 = vadd.xlane.f32.xlu0 %v714
    %v716 = vpop.xlane.xlu0 %715
    %v717 = vsel %vm530, %v336, 0.0
    %718 = vadd.xlane.f32.xlu0 %v717
    %v719 = vpop.xlane.xlu0 %718
    %v720 = vsel %vm530, %v337, 0.0
    %721 = vadd.xlane.f32.xlu0 %v720
    %v722 = vpop.xlane.xlu0 %721
    %v723 = vsel %vm530, %v338, 0.0
    %724 = vadd.xlane.f32.xlu0 %v723
    %v725 = vpop.xlane.xlu0 %724
    %v726 = vsel %vm530, %v339, 0.0
    %727 = vadd.xlane.f32.xlu0 %v726
    %v728 = vpop.xlane.xlu0 %727
    %v729 = vsel %vm530, %v340, 0.0
    %730 = vadd.xlane.f32.xlu0 %v729
    %v731 = vpop.xlane.xlu0 %730
    %v732 = vsel %vm530, %v341, 0.0
    %733 = vadd.xlane.f32.xlu0 %v732
    %v734 = vpop.xlane.xlu0 %733
    %v735 = vsel %vm530, %v342, 0.0
    %736 = vadd.xlane.f32.xlu0 %v735
    %v737 = vpop.xlane.xlu0 %736
    %v738 = vsel %vm530, %v343, 0.0
    %739 = vadd.xlane.f32.xlu0 %v738
    %v740 = vpop.xlane.xlu0 %739
    %v741 = vsel %vm530, %v344, 0.0
    %742 = vadd.xlane.f32.xlu0 %v741
    %v743 = vpop.xlane.xlu0 %742
    %v744 = vsel %vm530, %v345, 0.0
    %745 = vadd.xlane.f32.xlu0 %v744
    %v746 = vpop.xlane.xlu0 %745
    %v747 = vsel %vm530, %v346, 0.0
    %748 = vadd.xlane.f32.xlu0 %v747
    %v749 = vpop.xlane.xlu0 %748
    %v750 = vsel %vm530, %v347, 0.0
    %751 = vadd.xlane.f32.xlu0 %v750
    %v752 = vpop.xlane.xlu0 %751
    %v753 = vsel %vm530, %v348, 0.0
    %754 = vadd.xlane.f32.xlu0 %v753
    %v755 = vpop.xlane.xlu0 %754
    %v756 = vsel %vm530, %v349, 0.0
    %757 = vadd.xlane.f32.xlu0 %v756
    %v758 = vpop.xlane.xlu0 %757
    %v759 = vsel %vm530, %v350, 0.0
    %760 = vadd.xlane.f32.xlu0 %v759
    %v761 = vpop.xlane.xlu0 %760
    %v762 = vsel %vm530, %v351, 0.0
    %763 = vadd.xlane.f32.xlu0 %v762
    %v764 = vpop.xlane.xlu0 %763
    %v765 = vsel %vm530, %v352, 0.0
    %766 = vadd.xlane.f32.xlu0 %v765
    %v767 = vpop.xlane.xlu0 %766
    %v768 = vsel %vm530, %v353, 0.0
    %769 = vadd.xlane.f32.xlu0 %v768
    %v770 = vpop.xlane.xlu0 %769
    %v771 = vsel %vm530, %v354, 0.0
    %772 = vadd.xlane.f32.xlu0 %v771
    %v773 = vpop.xlane.xlu0 %772
    %v774 = vsel %vm530, %v355, 0.0
    %775 = vadd.xlane.f32.xlu0 %v774
    %v776 = vpop.xlane.xlu0 %775
    %v777 = vsel %vm530, %v356, 0.0
    %778 = vadd.xlane.f32.xlu0 %v777
    %v779 = vpop.xlane.xlu0 %778
    %v780 = vsel %vm530, %v357, 0.0
    %781 = vadd.xlane.f32.xlu0 %v780
    %v782 = vpop.xlane.xlu0 %781
    %v783 = vsel %vm530, %v358, 0.0
    %784 = vadd.xlane.f32.xlu0 %v783
    %v785 = vpop.xlane.xlu0 %784
    %v786 = vsel %vm530, %v359, 0.0
    %787 = vadd.xlane.f32.xlu0 %v786
    %v788 = vpop.xlane.xlu0 %787
    %v789 = vsel %vm530, %v360, 0.0
    %790 = vadd.xlane.f32.xlu0 %v789
    %v791 = vpop.xlane.xlu0 %790
    %v792 = vsel %vm530, %v361, 0.0
    %793 = vadd.xlane.f32.xlu0 %v792
    %v794 = vpop.xlane.xlu0 %793
    %v795 = vsel %vm530, %v362, 0.0
    %796 = vadd.xlane.f32.xlu0 %v795
    %v797 = vpop.xlane.xlu0 %796
    %v798 = vsel %vm530, %v363, 0.0
    %799 = vadd.xlane.f32.xlu0 %v798
    %v800 = vpop.xlane.xlu0 %799
    %v801 = vsel %vm530, %v364, 0.0
    %802 = vadd.xlane.f32.xlu0 %v801
    %v803 = vpop.xlane.xlu0 %802
    %v804 = vsel %vm530, %v365, 0.0
    %805 = vadd.xlane.f32.xlu0 %v804
    %v806 = vpop.xlane.xlu0 %805
    %v807 = vsel %vm530, %v366, 0.0
    %808 = vadd.xlane.f32.xlu0 %v807
    %v809 = vpop.xlane.xlu0 %808
    %v810 = vsel %vm530, %v367, 0.0
    %811 = vadd.xlane.f32.xlu0 %v810
    %v812 = vpop.xlane.xlu0 %811
    %v813 = vsel %vm530, %v368, 0.0
    %814 = vadd.xlane.f32.xlu0 %v813
    %v815 = vpop.xlane.xlu0 %814
    %v816 = vsel %vm530, %v369, 0.0
    %817 = vadd.xlane.f32.xlu0 %v816
    %v818 = vpop.xlane.xlu0 %817
    %v819 = vsel %vm530, %v370, 0.0
    %820 = vadd.xlane.f32.xlu0 %v819
    %v821 = vpop.xlane.xlu0 %820
    %v822 = vsel %vm530, %v371, 0.0
    %823 = vadd.xlane.f32.xlu0 %v822
    %v824 = vpop.xlane.xlu0 %823
    %v825 = vsel %vm530, %v372, 0.0
    %826 = vadd.xlane.f32.xlu0 %v825
    %v827 = vpop.xlane.xlu0 %826
    %v828 = vsel %vm530, %v373, 0.0
    %829 = vadd.xlane.f32.xlu0 %v828
    %v830 = vpop.xlane.xlu0 %829
    %v831 = vsel %vm530, %v374, 0.0
    %832 = vadd.xlane.f32.xlu0 %v831
    %v833 = vpop.xlane.xlu0 %832
    %v834 = vsel %vm530, %v375, 0.0
    %835 = vadd.xlane.f32.xlu0 %v834
    %v836 = vpop.xlane.xlu0 %835
    %v837 = vsel %vm530, %v376, 0.0
    %838 = vadd.xlane.f32.xlu0 %v837
    %v839 = vpop.xlane.xlu0 %838
    %v840 = vsel %vm530, %v377, 0.0
    %841 = vadd.xlane.f32.xlu0 %v840
    %v842 = vpop.xlane.xlu0 %841
    %v843 = vsel %vm530, %v378, 0.0
    %844 = vadd.xlane.f32.xlu0 %v843
    %v845 = vpop.xlane.xlu0 %844
    %v846 = vsel %vm530, %v379, 0.0
    %847 = vadd.xlane.f32.xlu0 %v846
    %v848 = vpop.xlane.xlu0 %847
    %v849 = vsel %vm530, %v380, 0.0
    %850 = vadd.xlane.f32.xlu0 %v849
    %v851 = vpop.xlane.xlu0 %850
    %v852 = vsel %vm530, %v381, 0.0
    %853 = vadd.xlane.f32.xlu0 %v852
    %v854 = vpop.xlane.xlu0 %853
    %v855 = vsel %vm530, %v382, 0.0
    %856 = vadd.xlane.f32.xlu0 %v855
    %v857 = vpop.xlane.xlu0 %856
    %v858 = vsel %vm530, %v383, 0.0
    %859 = vadd.xlane.f32.xlu0 %v858
    %v860 = vpop.xlane.xlu0 %859
    %v861 = vsel %vm530, %v384, 0.0
    %862 = vadd.xlane.f32.xlu0 %v861
    %v863 = vpop.xlane.xlu0 %862
    %v864 = vsel %vm530, %v385, 0.0
    %865 = vadd.xlane.f32.xlu0 %v864
    %v866 = vpop.xlane.xlu0 %865
    %v867 = vsel %vm530, %v386, 0.0
    %868 = vadd.xlane.f32.xlu0 %v867
    %v869 = vpop.xlane.xlu0 %868
    %v870 = vsel %vm530, %v387, 0.0
    %871 = vadd.xlane.f32.xlu0 %v870
    %v872 = vpop.xlane.xlu0 %871
    %v873 = vsel %vm530, %v388, 0.0
    %874 = vadd.xlane.f32.xlu0 %v873
    %v875 = vpop.xlane.xlu0 %874
    %v876 = vsel %vm530, %v389, 0.0
    %877 = vadd.xlane.f32.xlu0 %v876
    %v878 = vpop.xlane.xlu0 %877
    %v879 = vsel %vm530, %v390, 0.0
    %880 = vadd.xlane.f32.xlu0 %v879
    %v881 = vpop.xlane.xlu0 %880
    %v882 = vsel %vm530, %v391, 0.0
    %883 = vadd.xlane.f32.xlu0 %v882
    %v884 = vpop.xlane.xlu0 %883
    %v885 = vsel %vm530, %v392, 0.0
    %886 = vadd.xlane.f32.xlu0 %v885
    %v887 = vpop.xlane.xlu0 %886
    %v888 = vsel %vm530, %v393, 0.0
    %889 = vadd.xlane.f32.xlu0 %v888
    %v890 = vpop.xlane.xlu0 %889
    %v891 = vsel %vm530, %v394, 0.0
    %892 = vadd.xlane.f32.xlu0 %v891
    %v893 = vpop.xlane.xlu0 %892
    %v894 = vsel %vm530, %v395, 0.0
    %895 = vadd.xlane.f32.xlu0 %v894
    %v896 = vpop.xlane.xlu0 %895
    %v897 = vsel %vm530, %v396, 0.0
    %898 = vadd.xlane.f32.xlu0 %v897
    %v899 = vpop.xlane.xlu0 %898
    %v900 = vsel %vm530, %v397, 0.0
    %901 = vadd.xlane.f32.xlu0 %v900
    %v902 = vpop.xlane.xlu0 %901
    %v903 = vsel %vm530, %v398, 0.0
    %904 = vadd.xlane.f32.xlu0 %v903
    %v905 = vpop.xlane.xlu0 %904
    %v906 = vsel %vm530, %v399, 0.0
    %907 = vadd.xlane.f32.xlu0 %v906
    %v908 = vpop.xlane.xlu0 %907
    %v909 = vsel %vm530, %v400, 0.0
    %910 = vadd.xlane.f32.xlu0 %v909
    %v911 = vpop.xlane.xlu0 %910
    %v912 = vsel %vm530, %v401, 0.0
    %913 = vadd.xlane.f32.xlu0 %v912
    %v914 = vpop.xlane.xlu0 %913
    %v915 = vsel %vm530, %v402, 0.0
    %916 = vadd.xlane.f32.xlu0 %v915
    %v917 = vpop.xlane.xlu0 %916
    %v918 = vsel %vm530, %v403, 0.0
    %919 = vadd.xlane.f32.xlu0 %v918
    %v920 = vpop.xlane.xlu0 %919
    %v921 = vsel %vm530, %v404, 0.0
    %922 = vadd.xlane.f32.xlu0 %v921
    %v923 = vpop.xlane.xlu0 %922
    %v924 = vsel %vm530, %v405, 0.0
    %925 = vadd.xlane.f32.xlu0 %v924
    %v926 = vpop.xlane.xlu0 %925
    %v927 = vsel %vm530, %v406, 0.0
    %928 = vadd.xlane.f32.xlu0 %v927
    %v929 = vpop.xlane.xlu0 %928
    %v930 = vsel %vm530, %v407, 0.0
    %931 = vadd.xlane.f32.xlu0 %v930
    %v932 = vpop.xlane.xlu0 %931
    %v933 = vsel %vm530, %v408, 0.0
    %934 = vadd.xlane.f32.xlu0 %v933
    %v935 = vpop.xlane.xlu0 %934
    %v936 = vsel %vm530, %v409, 0.0
    %937 = vadd.xlane.f32.xlu0 %v936
    %v938 = vpop.xlane.xlu0 %937
    %v939 = vsel %vm530, %v410, 0.0
    %940 = vadd.xlane.f32.xlu0 %v939
    %v941 = vpop.xlane.xlu0 %940
    %v942 = vsel %vm530, %v411, 0.0
    %943 = vadd.xlane.f32.xlu0 %v942
    %v944 = vpop.xlane.xlu0 %943
    %v945 = vsel %vm530, %v412, 0.0
    %946 = vadd.xlane.f32.xlu0 %v945
    %v947 = vpop.xlane.xlu0 %946
    %v948 = vsel %vm530, %v413, 0.0
    %949 = vadd.xlane.f32.xlu0 %v948
    %v950 = vpop.xlane.xlu0 %949
    %v951 = vsel %vm530, %v414, 0.0
    %952 = vadd.xlane.f32.xlu0 %v951
    %v953 = vpop.xlane.xlu0 %952
    %v954 = vsel %vm530, %v415, 0.0
    %955 = vadd.xlane.f32.xlu0 %v954
    %v956 = vpop.xlane.xlu0 %955
    %v957 = vsel %vm530, %v416, 0.0
    %958 = vadd.xlane.f32.xlu0 %v957
    %v959 = vpop.xlane.xlu0 %958
    %v960 = vsel %vm530, %v417, 0.0
    %961 = vadd.xlane.f32.xlu0 %v960
    %v962 = vpop.xlane.xlu0 %961
    %v963 = vsel %vm530, %v418, 0.0
    %964 = vadd.xlane.f32.xlu0 %v963
    %v965 = vpop.xlane.xlu0 %964
    %v966 = vsel %vm530, %v419, 0.0
    %967 = vadd.xlane.f32.xlu0 %v966
    %v968 = vpop.xlane.xlu0 %967
    %v969 = vsel %vm530, %v420, 0.0
    %970 = vadd.xlane.f32.xlu0 %v969
    %v971 = vpop.xlane.xlu0 %970
    %v972 = vsel %vm530, %v421, 0.0
    %973 = vadd.xlane.f32.xlu0 %v972
    %v974 = vpop.xlane.xlu0 %973
    %v975 = vsel %vm530, %v422, 0.0
    %976 = vadd.xlane.f32.xlu0 %v975
    %v977 = vpop.xlane.xlu0 %976
    %v978 = vsel %vm530, %v423, 0.0
    %979 = vadd.xlane.f32.xlu0 %v978
    %v980 = vpop.xlane.xlu0 %979
    %v981 = vsel %vm530, %v424, 0.0
    %982 = vadd.xlane.f32.xlu0 %v981
    %v983 = vpop.xlane.xlu0 %982
    %v984 = vsel %vm530, %v425, 0.0
    %985 = vadd.xlane.f32.xlu0 %v984
    %v986 = vpop.xlane.xlu0 %985
    %v987 = vsel %vm530, %v426, 0.0
    %988 = vadd.xlane.f32.xlu0 %v987
    %v989 = vpop.xlane.xlu0 %988
    %v990 = vsel %vm530, %v427, 0.0
    %991 = vadd.xlane.f32.xlu0 %v990
    %v992 = vpop.xlane.xlu0 %991
    %v993 = vsel %vm530, %v428, 0.0
    %994 = vadd.xlane.f32.xlu0 %v993
    %v995 = vpop.xlane.xlu0 %994
    %v996 = vsel %vm530, %v429, 0.0
    %997 = vadd.xlane.f32.xlu0 %v996
    %v998 = vpop.xlane.xlu0 %997
    %v999 = vsel %vm530, %v430, 0.0
    %1000 = vadd.xlane.f32.xlu0 %v999
    %v1001 = vpop.xlane.xlu0 %1000
    %v1002 = vsel %vm530, %v431, 0.0
    %1003 = vadd.xlane.f32.xlu0 %v1002
    %v1004 = vpop.xlane.xlu0 %1003
    %v1005 = vsel %vm530, %v432, 0.0
    %1006 = vadd.xlane.f32.xlu0 %v1005
    %v1007 = vpop.xlane.xlu0 %1006
    %v1008 = vsel %vm530, %v433, 0.0
    %1009 = vadd.xlane.f32.xlu0 %v1008
    %v1010 = vpop.xlane.xlu0 %1009
    %v1011 = vsel %vm530, %v434, 0.0
    %1012 = vadd.xlane.f32.xlu0 %v1011
    %v1013 = vpop.xlane.xlu0 %1012
    %v1014 = vsel %vm530, %v435, 0.0
    %1015 = vadd.xlane.f32.xlu0 %v1014
    %v1016 = vpop.xlane.xlu0 %1015
    %v1017 = vsel %vm530, %v436, 0.0
    %1018 = vadd.xlane.f32.xlu0 %v1017
    %v1019 = vpop.xlane.xlu0 %1018
    %v1020 = vsel %vm530, %v437, 0.0
    %1021 = vadd.xlane.f32.xlu0 %v1020
    %v1022 = vpop.xlane.xlu0 %1021
    %v1023 = vsel %vm530, %v438, 0.0
    %1024 = vadd.xlane.f32.xlu0 %v1023
    %v1025 = vpop.xlane.xlu0 %1024
    %v1026 = vsel %vm530, %v439, 0.0
    %1027 = vadd.xlane.f32.xlu0 %v1026
    %v1028 = vpop.xlane.xlu0 %1027
    %v1029 = vsel %vm530, %v440, 0.0
    %1030 = vadd.xlane.f32.xlu0 %v1029
    %v1031 = vpop.xlane.xlu0 %1030
    %v1032 = vsel %vm530, %v441, 0.0
    %1033 = vadd.xlane.f32.xlu0 %v1032
    %v1034 = vpop.xlane.xlu0 %1033
    %v1035 = vsel %vm530, %v442, 0.0
    %1036 = vadd.xlane.f32.xlu0 %v1035
    %v1037 = vpop.xlane.xlu0 %1036
    %v1038 = vsel %vm530, %v443, 0.0
    %1039 = vadd.xlane.f32.xlu0 %v1038
    %v1040 = vpop.xlane.xlu0 %1039
    %v1041 = vsel %vm530, %v444, 0.0
    %1042 = vadd.xlane.f32.xlu0 %v1041
    %v1043 = vpop.xlane.xlu0 %1042
    %v1044 = vsel %vm530, %v445, 0.0
    %1045 = vadd.xlane.f32.xlu0 %v1044
    %v1046 = vpop.xlane.xlu0 %1045
    %v1047 = vsel %vm530, %v446, 0.0
    %1048 = vadd.xlane.f32.xlu0 %v1047
    %v1049 = vpop.xlane.xlu0 %1048
    %v1050 = vsel %vm530, %v447, 0.0
    %1051 = vadd.xlane.f32.xlu0 %v1050
    %v1052 = vpop.xlane.xlu0 %1051
    %v1053 = vsel %vm530, %v448, 0.0
    %1054 = vadd.xlane.f32.xlu0 %v1053
    %v1055 = vpop.xlane.xlu0 %1054
    %v1056 = vsel %vm530, %v449, 0.0
    %1057 = vadd.xlane.f32.xlu0 %v1056
    %v1058 = vpop.xlane.xlu0 %1057
    %v1059 = vsel %vm530, %v450, 0.0
    %1060 = vadd.xlane.f32.xlu0 %v1059
    %v1061 = vpop.xlane.xlu0 %1060
    %v1062 = vsel %vm530, %v451, 0.0
    %1063 = vadd.xlane.f32.xlu0 %v1062
    %v1064 = vpop.xlane.xlu0 %1063
    %v1065 = vsel %vm530, %v452, 0.0
    %1066 = vadd.xlane.f32.xlu0 %v1065
    %v1067 = vpop.xlane.xlu0 %1066
    %v1068 = vsel %vm530, %v453, 0.0
    %1069 = vadd.xlane.f32.xlu0 %v1068
    %v1070 = vpop.xlane.xlu0 %1069
    %v1071 = vsel %vm530, %v454, 0.0
    %1072 = vadd.xlane.f32.xlu0 %v1071
    %v1073 = vpop.xlane.xlu0 %1072
    %v1074 = vsel %vm530, %v455, 0.0
    %1075 = vadd.xlane.f32.xlu0 %v1074
    %v1076 = vpop.xlane.xlu0 %1075
    %v1077 = vsel %vm530, %v456, 0.0
    %1078 = vadd.xlane.f32.xlu0 %v1077
    %v1079 = vpop.xlane.xlu0 %1078
    %v1080 = vsel %vm530, %v457, 0.0
    %1081 = vadd.xlane.f32.xlu0 %v1080
    %v1082 = vpop.xlane.xlu0 %1081
    %v1083 = vsel %vm530, %v458, 0.0
    %1084 = vadd.xlane.f32.xlu0 %v1083
    %v1085 = vpop.xlane.xlu0 %1084
    %v1086 = vsel %vm530, %v459, 0.0
    %1087 = vadd.xlane.f32.xlu0 %v1086
    %v1088 = vpop.xlane.xlu0 %1087
    %v1089 = vsel %vm530, %v460, 0.0
    %1090 = vadd.xlane.f32.xlu0 %v1089
    %v1091 = vpop.xlane.xlu0 %1090
    %v1092 = vsel %vm530, %v461, 0.0
    %1093 = vadd.xlane.f32.xlu0 %v1092
    %v1094 = vpop.xlane.xlu0 %1093
    %v1095 = vsel %vm530, %v462, 0.0
    %1096 = vadd.xlane.f32.xlu0 %v1095
    %v1097 = vpop.xlane.xlu0 %1096
    %v1098 = vsel %vm530, %v463, 0.0
    %1099 = vadd.xlane.f32.xlu0 %v1098
    %v1100 = vpop.xlane.xlu0 %1099
    %v1101 = vsel %vm530, %v464, 0.0
    %1102 = vadd.xlane.f32.xlu0 %v1101
    %v1103 = vpop.xlane.xlu0 %1102
    %v1104 = vsel %vm530, %v465, 0.0
    %1105 = vadd.xlane.f32.xlu0 %v1104
    %v1106 = vpop.xlane.xlu0 %1105
    %v1107 = vsel %vm530, %v466, 0.0
    %1108 = vadd.xlane.f32.xlu0 %v1107
    %v1109 = vpop.xlane.xlu0 %1108
    %v1110 = vsel %vm530, %v467, 0.0
    %1111 = vadd.xlane.f32.xlu0 %v1110
    %v1112 = vpop.xlane.xlu0 %1111
    %v1113 = vsel %vm530, %v468, 0.0
    %1114 = vadd.xlane.f32.xlu0 %v1113
    %v1115 = vpop.xlane.xlu0 %1114
    %v1116 = vsel %vm530, %v469, 0.0
    %1117 = vadd.xlane.f32.xlu0 %v1116
    %v1118 = vpop.xlane.xlu0 %1117
    %v1119 = vsel %vm530, %v470, 0.0
    %1120 = vadd.xlane.f32.xlu0 %v1119
    %v1121 = vpop.xlane.xlu0 %1120
    %v1122 = vsel %vm530, %v471, 0.0
    %1123 = vadd.xlane.f32.xlu0 %v1122
    %v1124 = vpop.xlane.xlu0 %1123
    %v1125 = vsel %vm530, %v472, 0.0
    %1126 = vadd.xlane.f32.xlu0 %v1125
    %v1127 = vpop.xlane.xlu0 %1126
    %v1128 = vsel %vm530, %v473, 0.0
    %1129 = vadd.xlane.f32.xlu0 %v1128
    %v1130 = vpop.xlane.xlu0 %1129
    %v1131 = vsel %vm530, %v474, 0.0
    %1132 = vadd.xlane.f32.xlu0 %v1131
    %v1133 = vpop.xlane.xlu0 %1132
    %v1134 = vsel %vm530, %v475, 0.0
    %1135 = vadd.xlane.f32.xlu0 %v1134
    %v1136 = vpop.xlane.xlu0 %1135
    %v1137 = vsel %vm530, %v476, 0.0
    %1138 = vadd.xlane.f32.xlu0 %v1137
    %v1139 = vpop.xlane.xlu0 %1138
    %v1140 = vsel %vm530, %v477, 0.0
    %1141 = vadd.xlane.f32.xlu0 %v1140
    %v1142 = vpop.xlane.xlu0 %1141
    %v1143 = vsel %vm530, %v478, 0.0
    %1144 = vadd.xlane.f32.xlu0 %v1143
    %v1145 = vpop.xlane.xlu0 %1144
    %v1146 = vsel %vm530, %v479, 0.0
    %1147 = vadd.xlane.f32.xlu0 %v1146
    %v1148 = vpop.xlane.xlu0 %1147
    %v1149 = vsel %vm530, %v480, 0.0
    %1150 = vadd.xlane.f32.xlu0 %v1149
    %v1151 = vpop.xlane.xlu0 %1150
    %v1152 = vsel %vm530, %v481, 0.0
    %1153 = vadd.xlane.f32.xlu0 %v1152
    %v1154 = vpop.xlane.xlu0 %1153
    %v1155 = vsel %vm530, %v482, 0.0
    %1156 = vadd.xlane.f32.xlu0 %v1155
    %v1157 = vpop.xlane.xlu0 %1156
    %v1158 = vsel %vm530, %v483, 0.0
    %1159 = vadd.xlane.f32.xlu0 %v1158
    %v1160 = vpop.xlane.xlu0 %1159
    %v1161 = vsel %vm530, %v484, 0.0
    %1162 = vadd.xlane.f32.xlu0 %v1161
    %v1163 = vpop.xlane.xlu0 %1162
    %v1164 = vsel %vm530, %v485, 0.0
    %1165 = vadd.xlane.f32.xlu0 %v1164
    %v1166 = vpop.xlane.xlu0 %1165
    %v1167 = vsel %vm530, %v486, 0.0
    %1168 = vadd.xlane.f32.xlu0 %v1167
    %v1169 = vpop.xlane.xlu0 %1168
    %v1170 = vsel %vm530, %v487, 0.0
    %1171 = vadd.xlane.f32.xlu0 %v1170
    %v1172 = vpop.xlane.xlu0 %1171
    %v1173 = vsel %vm530, %v488, 0.0
    %1174 = vadd.xlane.f32.xlu0 %v1173
    %v1175 = vpop.xlane.xlu0 %1174
    %v1176 = vsel %vm530, %v489, 0.0
    %1177 = vadd.xlane.f32.xlu0 %v1176
    %v1178 = vpop.xlane.xlu0 %1177
    %v1179 = vsel %vm530, %v490, 0.0
    %1180 = vadd.xlane.f32.xlu0 %v1179
    %v1181 = vpop.xlane.xlu0 %1180
    %v1182 = vsel %vm530, %v491, 0.0
    %1183 = vadd.xlane.f32.xlu0 %v1182
    %v1184 = vpop.xlane.xlu0 %1183
    %v1185 = vsel %vm530, %v492, 0.0
    %1186 = vadd.xlane.f32.xlu0 %v1185
    %v1187 = vpop.xlane.xlu0 %1186
    %v1188 = vsel %vm530, %v493, 0.0
    %1189 = vadd.xlane.f32.xlu0 %v1188
    %v1190 = vpop.xlane.xlu0 %1189
    %v1191 = vsel %vm530, %v494, 0.0
    %1192 = vadd.xlane.f32.xlu0 %v1191
    %v1193 = vpop.xlane.xlu0 %1192
    %v1194 = vsel %vm530, %v495, 0.0
    %1195 = vadd.xlane.f32.xlu0 %v1194
    %v1196 = vpop.xlane.xlu0 %1195
    %v1197 = vsel %vm530, %v496, 0.0
    %1198 = vadd.xlane.f32.xlu0 %v1197
    %v1199 = vpop.xlane.xlu0 %1198
    %v1200 = vsel %vm530, %v497, 0.0
    %1201 = vadd.xlane.f32.xlu0 %v1200
    %v1202 = vpop.xlane.xlu0 %1201
    %v1203 = vsel %vm530, %v498, 0.0
    %1204 = vadd.xlane.f32.xlu0 %v1203
    %v1205 = vpop.xlane.xlu0 %1204
    %v1206 = vsel %vm530, %v499, 0.0
    %1207 = vadd.xlane.f32.xlu0 %v1206
    %v1208 = vpop.xlane.xlu0 %1207
    %v1209 = vsel %vm530, %v500, 0.0
    %1210 = vadd.xlane.f32.xlu0 %v1209
    %v1211 = vpop.xlane.xlu0 %1210
    %v1212 = vsel %vm530, %v501, 0.0
    %1213 = vadd.xlane.f32.xlu0 %v1212
    %v1214 = vpop.xlane.xlu0 %1213
    %v1215 = vsel %vm530, %v502, 0.0
    %1216 = vadd.xlane.f32.xlu0 %v1215
    %v1217 = vpop.xlane.xlu0 %1216
    %v1218 = vsel %vm530, %v503, 0.0
    %1219 = vadd.xlane.f32.xlu0 %v1218
    %v1220 = vpop.xlane.xlu0 %1219
    %v1221 = vsel %vm530, %v504, 0.0
    %1222 = vadd.xlane.f32.xlu0 %v1221
    %v1223 = vpop.xlane.xlu0 %1222
    %v1224 = vsel %vm530, %v505, 0.0
    %1225 = vadd.xlane.f32.xlu0 %v1224
    %v1226 = vpop.xlane.xlu0 %1225
    %v1227 = vsel %vm530, %v506, 0.0
    %1228 = vadd.xlane.f32.xlu0 %v1227
    %v1229 = vpop.xlane.xlu0 %1228
    %v1230 = vsel %vm530, %v507, 0.0
    %1231 = vadd.xlane.f32.xlu0 %v1230
    %v1232 = vpop.xlane.xlu0 %1231
    %v1233 = vsel %vm530, %v508, 0.0
    %1234 = vadd.xlane.f32.xlu0 %v1233
    %v1235 = vpop.xlane.xlu0 %1234
    %v1236 = vsel %vm530, %v509, 0.0
    %1237 = vadd.xlane.f32.xlu0 %v1236
    %v1238 = vpop.xlane.xlu0 %1237
    %v1239 = vsel %vm530, %v510, 0.0
    %1240 = vadd.xlane.f32.xlu0 %v1239
    %v1241 = vpop.xlane.xlu0 %1240
    %v1242 = vsel %vm530, %v511, 0.0
    %1243 = vadd.xlane.f32.xlu0 %v1242
    %v1244 = vpop.xlane.xlu0 %1243
    %v1245 = vsel %vm530, %v512, 0.0
    %1246 = vadd.xlane.f32.xlu0 %v1245
    %v1247 = vpop.xlane.xlu0 %1246
    %v1248 = vsel %vm530, %v513, 0.0
    %1249 = vadd.xlane.f32.xlu0 %v1248
    %v1250 = vpop.xlane.xlu0 %1249
    %v1251 = vsel %vm530, %v514, 0.0
    %1252 = vadd.xlane.f32.xlu0 %v1251
    %v1253 = vpop.xlane.xlu0 %1252
    %v1254 = vsel %vm530, %v515, 0.0
    %1255 = vadd.xlane.f32.xlu0 %v1254
    %v1256 = vpop.xlane.xlu0 %1255
    %v1257 = vsel %vm530, %v516, 0.0
    %1258 = vadd.xlane.f32.xlu0 %v1257
    %v1259 = vpop.xlane.xlu0 %1258
    %v1260 = vsel %vm530, %v517, 0.0
    %1261 = vadd.xlane.f32.xlu0 %v1260
    %v1262 = vpop.xlane.xlu0 %1261
    %v1263 = vsel %vm530, %v518, 0.0
    %1264 = vadd.xlane.f32.xlu0 %v1263
    %v1265 = vpop.xlane.xlu0 %1264
    %v1266 = vsel %vm530, %v519, 0.0
    %1267 = vadd.xlane.f32.xlu0 %v1266
    %v1268 = vpop.xlane.xlu0 %1267
    %v1269 = vsel %vm530, %v520, 0.0
    %1270 = vadd.xlane.f32.xlu0 %v1269
    %v1271 = vpop.xlane.xlu0 %1270
    %v1272 = vsel %vm530, %v521, 0.0
    %1273 = vadd.xlane.f32.xlu0 %v1272
    %v1274 = vpop.xlane.xlu0 %1273
    %v1275 = vsel %vm530, %v522, 0.0
    %1276 = vadd.xlane.f32.xlu0 %v1275
    %v1277 = vpop.xlane.xlu0 %1276
    %v1278 = vsel %vm530, %v523, 0.0
    %1279 = vadd.xlane.f32.xlu0 %v1278
    %v1280 = vpop.xlane.xlu0 %1279
    %v1281 = vsel %vm530, %v524, 0.0
    %1282 = vadd.xlane.f32.xlu0 %v1281
    %v1283 = vpop.xlane.xlu0 %1282
    %v1284 = vsel %vm530, %v525, 0.0
    %1285 = vadd.xlane.f32.xlu0 %v1284
    %v1286 = vpop.xlane.xlu0 %1285
    %v1287 = vsel %vm530, %v526, 0.0
    %1288 = vadd.xlane.f32.xlu0 %v1287
    %v1289 = vpop.xlane.xlu0 %1288
    %v1290 = vsel %vm530, %v527, 0.0
    %1291 = vadd.xlane.f32.xlu0 %v1290
    %v1292 = vpop.xlane.xlu0 %1291
    %v1293 = vsel %vm530, %v528, 0.0
    %1294 = vadd.xlane.f32.xlu0 %v1293
    %v1295 = vpop.xlane.xlu0 %1294
    %v1296 = vsel %vm530, %v529, 0.0
    %1297 = vadd.xlane.f32.xlu0 %v1296
    %v1298 = vpop.xlane.xlu0 %1297
    %v1555 = vlaneseq
    %v1556 = vand.u32 %v1555, 127
    %v1557 = vperm.slane %v533, %v1556
    %v1558 = vperm.slane %v536, %v1556
    %v1559 = vperm.slane %v539, %v1556
    %v1560 = vperm.slane %v542, %v1556
    %v1561 = vperm.slane %v545, %v1556
    %v1562 = vperm.slane %v548, %v1556
    %v1563 = vperm.slane %v551, %v1556
    %v1564 = vperm.slane %v554, %v1556
    %v1565 = vperm.slane %v557, %v1556
    %v1566 = vperm.slane %v560, %v1556
    %v1567 = vperm.slane %v563, %v1556
    %v1568 = vperm.slane %v566, %v1556
    %v1569 = vperm.slane %v569, %v1556
    %v1570 = vperm.slane %v572, %v1556
    %v1571 = vperm.slane %v575, %v1556
    %v1572 = vperm.slane %v578, %v1556
    %v1573 = vperm.slane %v581, %v1556
    %v1574 = vperm.slane %v584, %v1556
    %v1575 = vperm.slane %v587, %v1556
    %v1576 = vperm.slane %v590, %v1556
    %v1577 = vperm.slane %v593, %v1556
    %v1578 = vperm.slane %v596, %v1556
    %v1579 = vperm.slane %v599, %v1556
    %v1580 = vperm.slane %v602, %v1556
    %v1581 = vperm.slane %v605, %v1556
    %v1582 = vperm.slane %v608, %v1556
    %v1583 = vperm.slane %v611, %v1556
    %v1584 = vperm.slane %v614, %v1556
    %v1585 = vperm.slane %v617, %v1556
    %v1586 = vperm.slane %v620, %v1556
    %v1587 = vperm.slane %v623, %v1556
    %v1588 = vperm.slane %v626, %v1556
    %v1589 = vperm.slane %v629, %v1556
    %v1590 = vperm.slane %v632, %v1556
    %v1591 = vperm.slane %v635, %v1556
    %v1592 = vperm.slane %v638, %v1556
    %v1593 = vperm.slane %v641, %v1556
    %v1594 = vperm.slane %v644, %v1556
    %v1595 = vperm.slane %v647, %v1556
    %v1596 = vperm.slane %v650, %v1556
    %v1597 = vperm.slane %v653, %v1556
    %v1598 = vperm.slane %v656, %v1556
    %v1599 = vperm.slane %v659, %v1556
    %v1600 = vperm.slane %v662, %v1556
    %v1601 = vperm.slane %v665, %v1556
    %v1602 = vperm.slane %v668, %v1556
    %v1603 = vperm.slane %v671, %v1556
    %v1604 = vperm.slane %v674, %v1556
    %v1605 = vperm.slane %v677, %v1556
    %v1606 = vperm.slane %v680, %v1556
    %v1607 = vperm.slane %v683, %v1556
    %v1608 = vperm.slane %v686, %v1556
    %v1609 = vperm.slane %v689, %v1556
    %v1610 = vperm.slane %v692, %v1556
    %v1611 = vperm.slane %v695, %v1556
    %v1612 = vperm.slane %v698, %v1556
    %v1613 = vperm.slane %v701, %v1556
    %v1614 = vperm.slane %v704, %v1556
    %v1615 = vperm.slane %v707, %v1556
    %v1616 = vperm.slane %v710, %v1556
    %v1617 = vperm.slane %v713, %v1556
    %v1618 = vperm.slane %v716, %v1556
    %v1619 = vperm.slane %v719, %v1556
    %v1620 = vperm.slane %v722, %v1556
    %v1621 = vperm.slane %v725, %v1556
    %v1622 = vperm.slane %v728, %v1556
    %v1623 = vperm.slane %v731, %v1556
    %v1624 = vperm.slane %v734, %v1556
    %v1625 = vperm.slane %v737, %v1556
    %v1626 = vperm.slane %v740, %v1556
    %v1627 = vperm.slane %v743, %v1556
    %v1628 = vperm.slane %v746, %v1556
    %v1629 = vperm.slane %v749, %v1556
    %v1630 = vperm.slane %v752, %v1556
    %v1631 = vperm.slane %v755, %v1556
    %v1632 = vperm.slane %v758, %v1556
    %v1633 = vperm.slane %v761, %v1556
    %v1634 = vperm.slane %v764, %v1556
    %v1635 = vperm.slane %v767, %v1556
    %v1636 = vperm.slane %v770, %v1556
    %v1637 = vperm.slane %v773, %v1556
    %v1638 = vperm.slane %v776, %v1556
    %v1639 = vperm.slane %v779, %v1556
    %v1640 = vperm.slane %v782, %v1556
    %v1641 = vperm.slane %v785, %v1556
    %v1642 = vperm.slane %v788, %v1556
    %v1643 = vperm.slane %v791, %v1556
    %v1644 = vperm.slane %v794, %v1556
    %v1645 = vperm.slane %v797, %v1556
    %v1646 = vperm.slane %v800, %v1556
    %v1647 = vperm.slane %v803, %v1556
    %v1648 = vperm.slane %v806, %v1556
    %v1649 = vperm.slane %v809, %v1556
    %v1650 = vperm.slane %v812, %v1556
    %v1651 = vperm.slane %v815, %v1556
    %v1652 = vperm.slane %v818, %v1556
    %v1653 = vperm.slane %v821, %v1556
    %v1654 = vperm.slane %v824, %v1556
    %v1655 = vperm.slane %v827, %v1556
    %v1656 = vperm.slane %v830, %v1556
    %v1657 = vperm.slane %v833, %v1556
    %v1658 = vperm.slane %v836, %v1556
    %v1659 = vperm.slane %v839, %v1556
    %v1660 = vperm.slane %v842, %v1556
    %v1661 = vperm.slane %v845, %v1556
    %v1662 = vperm.slane %v848, %v1556
    %v1663 = vperm.slane %v851, %v1556
    %v1664 = vperm.slane %v854, %v1556
    %v1665 = vperm.slane %v857, %v1556
    %v1666 = vperm.slane %v860, %v1556
    %v1667 = vperm.slane %v863, %v1556
    %v1668 = vperm.slane %v866, %v1556
    %v1669 = vperm.slane %v869, %v1556
    %v1670 = vperm.slane %v872, %v1556
    %v1671 = vperm.slane %v875, %v1556
    %v1672 = vperm.slane %v878, %v1556
    %v1673 = vperm.slane %v881, %v1556
    %v1674 = vperm.slane %v884, %v1556
    %v1675 = vperm.slane %v887, %v1556
    %v1676 = vperm.slane %v890, %v1556
    %v1677 = vperm.slane %v893, %v1556
    %v1678 = vperm.slane %v896, %v1556
    %v1679 = vperm.slane %v899, %v1556
    %v1680 = vperm.slane %v902, %v1556
    %v1681 = vperm.slane %v905, %v1556
    %v1682 = vperm.slane %v908, %v1556
    %v1683 = vperm.slane %v911, %v1556
    %v1684 = vperm.slane %v914, %v1556
    %v1685 = vperm.slane %v917, %v1556
    %v1686 = vperm.slane %v920, %v1556
    %v1687 = vperm.slane %v923, %v1556
    %v1688 = vperm.slane %v926, %v1556
    %v1689 = vperm.slane %v929, %v1556
    %v1690 = vperm.slane %v932, %v1556
    %v1691 = vperm.slane %v935, %v1556
    %v1692 = vperm.slane %v938, %v1556
    %v1693 = vperm.slane %v941, %v1556
    %v1694 = vperm.slane %v944, %v1556
    %v1695 = vperm.slane %v947, %v1556
    %v1696 = vperm.slane %v950, %v1556
    %v1697 = vperm.slane %v953, %v1556
    %v1698 = vperm.slane %v956, %v1556
    %v1699 = vperm.slane %v959, %v1556
    %v1700 = vperm.slane %v962, %v1556
    %v1701 = vperm.slane %v965, %v1556
    %v1702 = vperm.slane %v968, %v1556
    %v1703 = vperm.slane %v971, %v1556
    %v1704 = vperm.slane %v974, %v1556
    %v1705 = vperm.slane %v977, %v1556
    %v1706 = vperm.slane %v980, %v1556
    %v1707 = vperm.slane %v983, %v1556
    %v1708 = vperm.slane %v986, %v1556
    %v1709 = vperm.slane %v989, %v1556
    %v1710 = vperm.slane %v992, %v1556
    %v1711 = vperm.slane %v995, %v1556
    %v1712 = vperm.slane %v998, %v1556
    %v1713 = vperm.slane %v1001, %v1556
    %v1714 = vperm.slane %v1004, %v1556
    %v1715 = vperm.slane %v1007, %v1556
    %v1716 = vperm.slane %v1010, %v1556
    %v1717 = vperm.slane %v1013, %v1556
    %v1718 = vperm.slane %v1016, %v1556
    %v1719 = vperm.slane %v1019, %v1556
    %v1720 = vperm.slane %v1022, %v1556
    %v1721 = vperm.slane %v1025, %v1556
    %v1722 = vperm.slane %v1028, %v1556
    %v1723 = vperm.slane %v1031, %v1556
    %v1724 = vperm.slane %v1034, %v1556
    %v1725 = vperm.slane %v1037, %v1556
    %v1726 = vperm.slane %v1040, %v1556
    %v1727 = vperm.slane %v1043, %v1556
    %v1728 = vperm.slane %v1046, %v1556
    %v1729 = vperm.slane %v1049, %v1556
    %v1730 = vperm.slane %v1052, %v1556
    %v1731 = vperm.slane %v1055, %v1556
    %v1732 = vperm.slane %v1058, %v1556
    %v1733 = vperm.slane %v1061, %v1556
    %v1734 = vperm.slane %v1064, %v1556
    %v1735 = vperm.slane %v1067, %v1556
    %v1736 = vperm.slane %v1070, %v1556
    %v1737 = vperm.slane %v1073, %v1556
    %v1738 = vperm.slane %v1076, %v1556
    %v1739 = vperm.slane %v1079, %v1556
    %v1740 = vperm.slane %v1082, %v1556
    %v1741 = vperm.slane %v1085, %v1556
    %v1742 = vperm.slane %v1088, %v1556
    %v1743 = vperm.slane %v1091, %v1556
    %v1744 = vperm.slane %v1094, %v1556
    %v1745 = vperm.slane %v1097, %v1556
    %v1746 = vperm.slane %v1100, %v1556
    %v1747 = vperm.slane %v1103, %v1556
    %v1748 = vperm.slane %v1106, %v1556
    %v1749 = vperm.slane %v1109, %v1556
    %v1750 = vperm.slane %v1112, %v1556
    %v1751 = vperm.slane %v1115, %v1556
    %v1752 = vperm.slane %v1118, %v1556
    %v1753 = vperm.slane %v1121, %v1556
    %v1754 = vperm.slane %v1124, %v1556
    %v1755 = vperm.slane %v1127, %v1556
    %v1756 = vperm.slane %v1130, %v1556
    %v1757 = vperm.slane %v1133, %v1556
    %v1758 = vperm.slane %v1136, %v1556
    %v1759 = vperm.slane %v1139, %v1556
    %v1760 = vperm.slane %v1142, %v1556
    %v1761 = vperm.slane %v1145, %v1556
    %v1762 = vperm.slane %v1148, %v1556
    %v1763 = vperm.slane %v1151, %v1556
    %v1764 = vperm.slane %v1154, %v1556
    %v1765 = vperm.slane %v1157, %v1556
    %v1766 = vperm.slane %v1160, %v1556
    %v1767 = vperm.slane %v1163, %v1556
    %v1768 = vperm.slane %v1166, %v1556
    %v1769 = vperm.slane %v1169, %v1556
    %v1770 = vperm.slane %v1172, %v1556
    %v1771 = vperm.slane %v1175, %v1556
    %v1772 = vperm.slane %v1178, %v1556
    %v1773 = vperm.slane %v1181, %v1556
    %v1774 = vperm.slane %v1184, %v1556
    %v1775 = vperm.slane %v1187, %v1556
    %v1776 = vperm.slane %v1190, %v1556
    %v1777 = vperm.slane %v1193, %v1556
    %v1778 = vperm.slane %v1196, %v1556
    %v1779 = vperm.slane %v1199, %v1556
    %v1780 = vperm.slane %v1202, %v1556
    %v1781 = vperm.slane %v1205, %v1556
    %v1782 = vperm.slane %v1208, %v1556
    %v1783 = vperm.slane %v1211, %v1556
    %v1784 = vperm.slane %v1214, %v1556
    %v1785 = vperm.slane %v1217, %v1556
    %v1786 = vperm.slane %v1220, %v1556
    %v1787 = vperm.slane %v1223, %v1556
    %v1788 = vperm.slane %v1226, %v1556
    %v1789 = vperm.slane %v1229, %v1556
    %v1790 = vperm.slane %v1232, %v1556
    %v1791 = vperm.slane %v1235, %v1556
    %v1792 = vperm.slane %v1238, %v1556
    %v1793 = vperm.slane %v1241, %v1556
    %v1794 = vperm.slane %v1244, %v1556
    %v1795 = vperm.slane %v1247, %v1556
    %v1796 = vperm.slane %v1250, %v1556
    %v1797 = vperm.slane %v1253, %v1556
    %v1798 = vperm.slane %v1256, %v1556
    %v1799 = vperm.slane %v1259, %v1556
    %v1800 = vperm.slane %v1262, %v1556
    %v1801 = vperm.slane %v1265, %v1556
    %v1802 = vperm.slane %v1268, %v1556
    %v1803 = vperm.slane %v1271, %v1556
    %v1804 = vperm.slane %v1274, %v1556
    %v1805 = vperm.slane %v1277, %v1556
    %v1806 = vperm.slane %v1280, %v1556
    %v1807 = vperm.slane %v1283, %v1556
    %v1808 = vperm.slane %v1286, %v1556
    %v1809 = vperm.slane %v1289, %v1556
    %v1810 = vperm.slane %v1292, %v1556
    %v1811 = vperm.slane %v1295, %v1556
    %v1812 = vperm.slane %v1298, %v1556
    %vm1813 = vcmask 1041409
    %v1814 = vsel %vm1813, %v1558, %v1557
    %vm1815 = vcmask 1042434
    %v1816 = vsel %vm1815, %v1559, %v1814
    %vm1817 = vcmask 1043459
    %v1818 = vsel %vm1817, %v1560, %v1816
    %vm1819 = vcmask 1044484
    %v1820 = vsel %vm1819, %v1561, %v1818
    %vm1821 = vcmask 1045509
    %v1822 = vsel %vm1821, %v1562, %v1820
    %vm1823 = vcmask 1046534
    %v1824 = vsel %vm1823, %v1563, %v1822
    %vm1825 = vcmask 1047559
    %v1826 = vsel %vm1825, %v1564, %v1824
    %v1827 = vsel %vm1813, %v1566, %v1565
    %v1828 = vsel %vm1815, %v1567, %v1827
    %v1829 = vsel %vm1817, %v1568, %v1828
    %v1830 = vsel %vm1819, %v1569, %v1829
    %v1831 = vsel %vm1821, %v1570, %v1830
    %v1832 = vsel %vm1823, %v1571, %v1831
    %v1833 = vsel %vm1825, %v1572, %v1832
    %v1834 = vsel %vm1813, %v1574, %v1573
    %v1835 = vsel %vm1815, %v1575, %v1834
    %v1836 = vsel %vm1817, %v1576, %v1835
    %v1837 = vsel %vm1819, %v1577, %v1836
    %v1838 = vsel %vm1821, %v1578, %v1837
    %v1839 = vsel %vm1823, %v1579, %v1838
    %v1840 = vsel %vm1825, %v1580, %v1839
    %v1841 = vsel %vm1813, %v1582, %v1581
    %v1842 = vsel %vm1815, %v1583, %v1841
    %v1843 = vsel %vm1817, %v1584, %v1842
    %v1844 = vsel %vm1819, %v1585, %v1843
    %v1845 = vsel %vm1821, %v1586, %v1844
    %v1846 = vsel %vm1823, %v1587, %v1845
    %v1847 = vsel %vm1825, %v1588, %v1846
    %v1848 = vsel %vm1813, %v1590, %v1589
    %v1849 = vsel %vm1815, %v1591, %v1848
    %v1850 = vsel %vm1817, %v1592, %v1849
    %v1851 = vsel %vm1819, %v1593, %v1850
    %v1852 = vsel %vm1821, %v1594, %v1851
    %v1853 = vsel %vm1823, %v1595, %v1852
    %v1854 = vsel %vm1825, %v1596, %v1853
    %v1855 = vsel %vm1813, %v1598, %v1597
    %v1856 = vsel %vm1815, %v1599, %v1855
    %v1857 = vsel %vm1817, %v1600, %v1856
    %v1858 = vsel %vm1819, %v1601, %v1857
    %v1859 = vsel %vm1821, %v1602, %v1858
    %v1860 = vsel %vm1823, %v1603, %v1859
    %v1861 = vsel %vm1825, %v1604, %v1860
    %v1862 = vsel %vm1813, %v1606, %v1605
    %v1863 = vsel %vm1815, %v1607, %v1862
    %v1864 = vsel %vm1817, %v1608, %v1863
    %v1865 = vsel %vm1819, %v1609, %v1864
    %v1866 = vsel %vm1821, %v1610, %v1865
    %v1867 = vsel %vm1823, %v1611, %v1866
    %v1868 = vsel %vm1825, %v1612, %v1867
    %v1869 = vsel %vm1813, %v1614, %v1613
    %v1870 = vsel %vm1815, %v1615, %v1869
    %v1871 = vsel %vm1817, %v1616, %v1870
    %v1872 = vsel %vm1819, %v1617, %v1871
    %v1873 = vsel %vm1821, %v1618, %v1872
    %v1874 = vsel %vm1823, %v1619, %v1873
    %v1875 = vsel %vm1825, %v1620, %v1874
    %v1876 = vsel %vm1813, %v1622, %v1621
    %v1877 = vsel %vm1815, %v1623, %v1876
    %v1878 = vsel %vm1817, %v1624, %v1877
    %v1879 = vsel %vm1819, %v1625, %v1878
    %v1880 = vsel %vm1821, %v1626, %v1879
    %v1881 = vsel %vm1823, %v1627, %v1880
    %v1882 = vsel %vm1825, %v1628, %v1881
    %v1883 = vsel %vm1813, %v1630, %v1629
    %v1884 = vsel %vm1815, %v1631, %v1883
    %v1885 = vsel %vm1817, %v1632, %v1884
    %v1886 = vsel %vm1819, %v1633, %v1885
    %v1887 = vsel %vm1821, %v1634, %v1886
    %v1888 = vsel %vm1823, %v1635, %v1887
    %v1889 = vsel %vm1825, %v1636, %v1888
    %v1890 = vsel %vm1813, %v1638, %v1637
    %v1891 = vsel %vm1815, %v1639, %v1890
    %v1892 = vsel %vm1817, %v1640, %v1891
    %v1893 = vsel %vm1819, %v1641, %v1892
    %v1894 = vsel %vm1821, %v1642, %v1893
    %v1895 = vsel %vm1823, %v1643, %v1894
    %v1896 = vsel %vm1825, %v1644, %v1895
    %v1897 = vsel %vm1813, %v1646, %v1645
    %v1898 = vsel %vm1815, %v1647, %v1897
    %v1899 = vsel %vm1817, %v1648, %v1898
    %v1900 = vsel %vm1819, %v1649, %v1899
    %v1901 = vsel %vm1821, %v1650, %v1900
    %v1902 = vsel %vm1823, %v1651, %v1901
    %v1903 = vsel %vm1825, %v1652, %v1902
    %v1904 = vsel %vm1813, %v1654, %v1653
    %v1905 = vsel %vm1815, %v1655, %v1904
    %v1906 = vsel %vm1817, %v1656, %v1905
    %v1907 = vsel %vm1819, %v1657, %v1906
    %v1908 = vsel %vm1821, %v1658, %v1907
    %v1909 = vsel %vm1823, %v1659, %v1908
    %v1910 = vsel %vm1825, %v1660, %v1909
    %v1911 = vsel %vm1813, %v1662, %v1661
    %v1912 = vsel %vm1815, %v1663, %v1911
    %v1913 = vsel %vm1817, %v1664, %v1912
    %v1914 = vsel %vm1819, %v1665, %v1913
    %v1915 = vsel %vm1821, %v1666, %v1914
    %v1916 = vsel %vm1823, %v1667, %v1915
    %v1917 = vsel %vm1825, %v1668, %v1916
    %v1918 = vsel %vm1813, %v1670, %v1669
    %v1919 = vsel %vm1815, %v1671, %v1918
    %v1920 = vsel %vm1817, %v1672, %v1919
    %v1921 = vsel %vm1819, %v1673, %v1920
    %v1922 = vsel %vm1821, %v1674, %v1921
    %v1923 = vsel %vm1823, %v1675, %v1922
    %v1924 = vsel %vm1825, %v1676, %v1923
    %v1925 = vsel %vm1813, %v1678, %v1677
    %v1926 = vsel %vm1815, %v1679, %v1925
    %v1927 = vsel %vm1817, %v1680, %v1926
    %v1928 = vsel %vm1819, %v1681, %v1927
    %v1929 = vsel %vm1821, %v1682, %v1928
    %v1930 = vsel %vm1823, %v1683, %v1929
    %v1931 = vsel %vm1825, %v1684, %v1930
    %v1932 = vsel %vm1813, %v1686, %v1685
    %v1933 = vsel %vm1815, %v1687, %v1932
    %v1934 = vsel %vm1817, %v1688, %v1933
    %v1935 = vsel %vm1819, %v1689, %v1934
    %v1936 = vsel %vm1821, %v1690, %v1935
    %v1937 = vsel %vm1823, %v1691, %v1936
    %v1938 = vsel %vm1825, %v1692, %v1937
    %v1939 = vsel %vm1813, %v1694, %v1693
    %v1940 = vsel %vm1815, %v1695, %v1939
    %v1941 = vsel %vm1817, %v1696, %v1940
    %v1942 = vsel %vm1819, %v1697, %v1941
    %v1943 = vsel %vm1821, %v1698, %v1942
    %v1944 = vsel %vm1823, %v1699, %v1943
    %v1945 = vsel %vm1825, %v1700, %v1944
    %v1946 = vsel %vm1813, %v1702, %v1701
    %v1947 = vsel %vm1815, %v1703, %v1946
    %v1948 = vsel %vm1817, %v1704, %v1947
    %v1949 = vsel %vm1819, %v1705, %v1948
    %v1950 = vsel %vm1821, %v1706, %v1949
    %v1951 = vsel %vm1823, %v1707, %v1950
    %v1952 = vsel %vm1825, %v1708, %v1951
    %v1953 = vsel %vm1813, %v1710, %v1709
    %v1954 = vsel %vm1815, %v1711, %v1953
    %v1955 = vsel %vm1817, %v1712, %v1954
    %v1956 = vsel %vm1819, %v1713, %v1955
    %v1957 = vsel %vm1821, %v1714, %v1956
    %v1958 = vsel %vm1823, %v1715, %v1957
    %v1959 = vsel %vm1825, %v1716, %v1958
    %v1960 = vsel %vm1813, %v1718, %v1717
    %v1961 = vsel %vm1815, %v1719, %v1960
    %v1962 = vsel %vm1817, %v1720, %v1961
    %v1963 = vsel %vm1819, %v1721, %v1962
    %v1964 = vsel %vm1821, %v1722, %v1963
    %v1965 = vsel %vm1823, %v1723, %v1964
    %v1966 = vsel %vm1825, %v1724, %v1965
    %v1967 = vsel %vm1813, %v1726, %v1725
    %v1968 = vsel %vm1815, %v1727, %v1967
    %v1969 = vsel %vm1817, %v1728, %v1968
    %v1970 = vsel %vm1819, %v1729, %v1969
    %v1971 = vsel %vm1821, %v1730, %v1970
    %v1972 = vsel %vm1823, %v1731, %v1971
    %v1973 = vsel %vm1825, %v1732, %v1972
    %v1974 = vsel %vm1813, %v1734, %v1733
    %v1975 = vsel %vm1815, %v1735, %v1974
    %v1976 = vsel %vm1817, %v1736, %v1975
    %v1977 = vsel %vm1819, %v1737, %v1976
    %v1978 = vsel %vm1821, %v1738, %v1977
    %v1979 = vsel %vm1823, %v1739, %v1978
    %v1980 = vsel %vm1825, %v1740, %v1979
    %v1981 = vsel %vm1813, %v1742, %v1741
    %v1982 = vsel %vm1815, %v1743, %v1981
    %v1983 = vsel %vm1817, %v1744, %v1982
    %v1984 = vsel %vm1819, %v1745, %v1983
    %v1985 = vsel %vm1821, %v1746, %v1984
    %v1986 = vsel %vm1823, %v1747, %v1985
    %v1987 = vsel %vm1825, %v1748, %v1986
    %v1988 = vsel %vm1813, %v1750, %v1749
    %v1989 = vsel %vm1815, %v1751, %v1988
    %v1990 = vsel %vm1817, %v1752, %v1989
    %v1991 = vsel %vm1819, %v1753, %v1990
    %v1992 = vsel %vm1821, %v1754, %v1991
    %v1993 = vsel %vm1823, %v1755, %v1992
    %v1994 = vsel %vm1825, %v1756, %v1993
    %v1995 = vsel %vm1813, %v1758, %v1757
    %v1996 = vsel %vm1815, %v1759, %v1995
    %v1997 = vsel %vm1817, %v1760, %v1996
    %v1998 = vsel %vm1819, %v1761, %v1997
    %v1999 = vsel %vm1821, %v1762, %v1998
    %v2000 = vsel %vm1823, %v1763, %v1999
    %v2001 = vsel %vm1825, %v1764, %v2000
    %v2002 = vsel %vm1813, %v1766, %v1765
    %v2003 = vsel %vm1815, %v1767, %v2002
    %v2004 = vsel %vm1817, %v1768, %v2003
    %v2005 = vsel %vm1819, %v1769, %v2004
    %v2006 = vsel %vm1821, %v1770, %v2005
    %v2007 = vsel %vm1823, %v1771, %v2006
    %v2008 = vsel %vm1825, %v1772, %v2007
    %v2009 = vsel %vm1813, %v1774, %v1773
    %v2010 = vsel %vm1815, %v1775, %v2009
    %v2011 = vsel %vm1817, %v1776, %v2010
    %v2012 = vsel %vm1819, %v1777, %v2011
    %v2013 = vsel %vm1821, %v1778, %v2012
    %v2014 = vsel %vm1823, %v1779, %v2013
    %v2015 = vsel %vm1825, %v1780, %v2014
    %v2016 = vsel %vm1813, %v1782, %v1781
    %v2017 = vsel %vm1815, %v1783, %v2016
    %v2018 = vsel %vm1817, %v1784, %v2017
    %v2019 = vsel %vm1819, %v1785, %v2018
    %v2020 = vsel %vm1821, %v1786, %v2019
    %v2021 = vsel %vm1823, %v1787, %v2020
    %v2022 = vsel %vm1825, %v1788, %v2021
    %v2023 = vsel %vm1813, %v1790, %v1789
    %v2024 = vsel %vm1815, %v1791, %v2023
    %v2025 = vsel %vm1817, %v1792, %v2024
    %v2026 = vsel %vm1819, %v1793, %v2025
    %v2027 = vsel %vm1821, %v1794, %v2026
    %v2028 = vsel %vm1823, %v1795, %v2027
    %v2029 = vsel %vm1825, %v1796, %v2028
    %v2030 = vsel %vm1813, %v1798, %v1797
    %v2031 = vsel %vm1815, %v1799, %v2030
    %v2032 = vsel %vm1817, %v1800, %v2031
    %v2033 = vsel %vm1819, %v1801, %v2032
    %v2034 = vsel %vm1821, %v1802, %v2033
    %v2035 = vsel %vm1823, %v1803, %v2034
    %v2036 = vsel %vm1825, %v1804, %v2035
    %v2037 = vsel %vm1813, %v1806, %v1805
    %v2038 = vsel %vm1815, %v1807, %v2037
    %v2039 = vsel %vm1817, %v1808, %v2038
    %v2040 = vsel %vm1819, %v1809, %v2039
    %v2041 = vsel %vm1821, %v1810, %v2040
    %v2042 = vsel %vm1823, %v1811, %v2041
    %v2043 = vsel %vm1825, %v1812, %v2042
    %2076 = vxpose.xlu0.b32.start [1/16] %v1826, 128
    %2077 = vxpose.xlu0.b32.cont [2/16] %v1833, 128
    %2078 = vxpose.xlu0.b32.cont [3/16] %v1840, 128
    %2079 = vxpose.xlu0.b32.cont [4/16] %v1847, 128
    %2080 = vxpose.xlu0.b32.cont [5/16] %v1854, 128
    %2081 = vxpose.xlu0.b32.cont [6/16] %v1861, 128
    %2082 = vxpose.xlu0.b32.cont [7/16] %v1868, 128
    %2083 = vxpose.xlu0.b32.cont [8/16] %v1875, 128
    %2084 = vxpose.xlu0.b32.cont [9/16] %v1882, 128
    %2085 = vxpose.xlu0.b32.cont [10/16] %v1889, 128
    %2086 = vxpose.xlu0.b32.cont [11/16] %v1896, 128
    %2087 = vxpose.xlu0.b32.cont [12/16] %v1903, 128
    %2088 = vxpose.xlu0.b32.cont [13/16] %v1910, 128
    %2089 = vxpose.xlu0.b32.cont [14/16] %v1917, 128
    %2090 = vxpose.xlu0.b32.cont [15/16] %v1924, 128
    %2091 = vxpose.xlu0.b32.end [16/16] %v1931, 128
    %v2092 = vpop.trf.xlu0
    %v2093 = vpop.trf.xlu0
    %v2094 = vpop.trf.xlu0
    %v2095 = vpop.trf.xlu0
    %v2096 = vpop.trf.xlu0
    %v2097 = vpop.trf.xlu0
    %v2098 = vpop.trf.xlu0
    %v2099 = vpop.trf.xlu0
    %v2100 = vpop.trf.xlu0
    %v2101 = vpop.trf.xlu0
    %v2102 = vpop.trf.xlu0
    %v2103 = vpop.trf.xlu0
    %v2104 = vpop.trf.xlu0
    %v2105 = vpop.trf.xlu0
    %v2106 = vpop.trf.xlu0
    %v2107 = vpop.trf.xlu0
    %2108 = vxpose.xlu0.b32.start [1/16] %v1938, 128
    %2109 = vxpose.xlu0.b32.cont [2/16] %v1945, 128
    %2110 = vxpose.xlu0.b32.cont [3/16] %v1952, 128
    %2111 = vxpose.xlu0.b32.cont [4/16] %v1959, 128
    %2112 = vxpose.xlu0.b32.cont [5/16] %v1966, 128
    %2113 = vxpose.xlu0.b32.cont [6/16] %v1973, 128
    %2114 = vxpose.xlu0.b32.cont [7/16] %v1980, 128
    %2115 = vxpose.xlu0.b32.cont [8/16] %v1987, 128
    %2116 = vxpose.xlu0.b32.cont [9/16] %v1994, 128
    %2117 = vxpose.xlu0.b32.cont [10/16] %v2001, 128
    %2118 = vxpose.xlu0.b32.cont [11/16] %v2008, 128
    %2119 = vxpose.xlu0.b32.cont [12/16] %v2015, 128
    %2120 = vxpose.xlu0.b32.cont [13/16] %v2022, 128
    %2121 = vxpose.xlu0.b32.cont [14/16] %v2029, 128
    %2122 = vxpose.xlu0.b32.cont [15/16] %v2036, 128
    %2123 = vxpose.xlu0.b32.end [16/16] %v2043, 128
    %v2124 = vpop.trf.xlu0
    %v2125 = vpop.trf.xlu0
    %v2126 = vpop.trf.xlu0
    %v2127 = vpop.trf.xlu0
    %v2128 = vpop.trf.xlu0
    %v2129 = vpop.trf.xlu0
    %v2130 = vpop.trf.xlu0
    %v2131 = vpop.trf.xlu0
    %v2132 = vpop.trf.xlu0
    %v2133 = vpop.trf.xlu0
    %v2134 = vpop.trf.xlu0
    %v2135 = vpop.trf.xlu0
    %v2136 = vpop.trf.xlu0
    %v2137 = vpop.trf.xlu0
    %v2138 = vpop.trf.xlu0
    %v2139 = vpop.trf.xlu0
    %v2140 = vrot.slane %v2092, 4
    %v2141 = vmax.f32 %v2092, %v2140
    %v2142 = vrot.slane %v2141, 2
    %v2143 = vmax.f32 %v2141, %v2142
    %v2144 = vrot.slane %v2143, 1
    %v2145 = vmax.f32 %v2143, %v2144
    %v2146 = vrot.slane %v2124, 4
    %v2147 = vmax.f32 %v2124, %v2146
    %v2148 = vrot.slane %v2147, 2
    %v2149 = vmax.f32 %v2147, %v2148
    %v2150 = vrot.slane %v2149, 1
    %v2151 = vmax.f32 %v2149, %v2150
    %v2152 = vsub.f32 %v2092, %v2145
    %v2153 = vsub.f32 %v2124, %v2151
    %v2154 = vmul.f32 %v2152, 1.442695
    %v2155 = vpow.pop %v2154
    %v2156 = vmul.f32 %v2153, 1.442695
    %v2157 = vpow.pop %v2156
    %v2158 = vrot.slane %v2155, 4
    %v2159 = vadd.f32 %v2155, %v2158
    %v2160 = vrot.slane %v2159, 2
    %v2161 = vadd.f32 %v2159, %v2160
    %v2162 = vrot.slane %v2161, 1
    %v2163 = vadd.f32 %v2161, %v2162
    %v2164 = vrot.slane %v2157, 4
    %v2165 = vadd.f32 %v2157, %v2164
    %v2166 = vrot.slane %v2165, 2
    %v2167 = vadd.f32 %v2165, %v2166
    %v2168 = vrot.slane %v2167, 1
    %v2169 = vadd.f32 %v2167, %v2168
    %v2170 = vrcp.pop %v2163
    %v2171 = vmul.f32 %v2163, %v2170
    %v2172 = vsub.f32 1.0, %v2171
    %v2173 = vmul.f32 %v2170, %v2172
    %v2174 = vadd.f32 %v2170, %v2173
    %vm2175 = vweird.f32 %v2163
    %vm2176 = vweird.f32 %v2170
    %vm2177 = vmor %vm2175, %vm2176
    %v2178 = vsel %vm2177, %v2170, %v2174
    %v2179 = vand.u32 2147483647, %v2163
    %vm2180 = vcmp.eq.f32.partialorder %v2179, 8.507059e+37
    %v2181 = vand.u32 %v2163, 2147483648
    %v2182 = vor.u32 1.1754944e-38, %v2181
    %v2183 = vsel %vm2180, %v2182, %v2178
    %v2184 = vmul.f32 %v2155, %v2183
    %v2185 = vrcp.pop %v2169
    %v2186 = vmul.f32 %v2169, %v2185
    %v2187 = vsub.f32 1.0, %v2186
    %v2188 = vmul.f32 %v2185, %v2187
    %v2189 = vadd.f32 %v2185, %v2188
    %vm2190 = vweird.f32 %v2169
    %vm2191 = vweird.f32 %v2185
    %vm2192 = vmor %vm2190, %vm2191
    %v2193 = vsel %vm2192, %v2185, %v2189
    %v2194 = vand.u32 2147483647, %v2169
    %vm2195 = vcmp.eq.f32.partialorder %v2194, 8.507059e+37
    %v2196 = vand.u32 %v2169, 2147483648
    %v2197 = vor.u32 1.1754944e-38, %v2196
    %v2198 = vsel %vm2195, %v2197, %v2193
    %v2199 = vmul.f32 %v2157, %v2198
    %2200 = vst [vmem:[#allocation2] sm:$0xff] %v2184
    %2201 = vst [vmem:[#allocation2 + $0x8] sm:$0xff] %v2199
    %2202 = vxpose.xlu0.b32.start [1/16] %v2184, 128
    %2203 = vxpose.xlu0.b32.cont [2/16] 0.0, 128
    %2204 = vxpose.xlu0.b32.cont [3/16] 0.0, 128
    %2205 = vxpose.xlu0.b32.cont [4/16] 0.0, 128
    %2206 = vxpose.xlu0.b32.cont [5/16] 0.0, 128
    %2207 = vxpose.xlu0.b32.cont [6/16] 0.0, 128
    %2208 = vxpose.xlu0.b32.cont [7/16] 0.0, 128
    %2209 = vxpose.xlu0.b32.cont [8/16] 0.0, 128
    %2210 = vxpose.xlu0.b32.cont [9/16] 0.0, 128
    %2211 = vxpose.xlu0.b32.cont [10/16] 0.0, 128
    %2212 = vxpose.xlu0.b32.cont [11/16] 0.0, 128
    %2213 = vxpose.xlu0.b32.cont [12/16] 0.0, 128
    %2214 = vxpose.xlu0.b32.cont [13/16] 0.0, 128
    %2215 = vxpose.xlu0.b32.cont [14/16] 0.0, 128
    %2216 = vxpose.xlu0.b32.cont [15/16] 0.0, 128
    %2217 = vxpose.xlu0.b32.end [16/16] 0.0, 128
    %v2218 = vpop.trf.xlu0
    %v2219 = vpop.trf.xlu0
    %v2220 = vpop.trf.xlu0
    %v2221 = vpop.trf.xlu0
    %v2222 = vpop.trf.xlu0
    %v2223 = vpop.trf.xlu0
    %v2224 = vpop.trf.xlu0
    %v2225 = vpop.trf.xlu0
    %v2226 = vpop.trf.xlu0
    %v2227 = vpop.trf.xlu0
    %v2228 = vpop.trf.xlu0
    %v2229 = vpop.trf.xlu0
    %v2230 = vpop.trf.xlu0
    %v2231 = vpop.trf.xlu0
    %v2232 = vpop.trf.xlu0
    %v2233 = vpop.trf.xlu0
    %2234 = vxpose.xlu0.b32.start [1/16] %v2199, 128
    %2235 = vxpose.xlu0.b32.cont [2/16] 0.0, 128
    %2236 = vxpose.xlu0.b32.cont [3/16] 0.0, 128
    %2237 = vxpose.xlu0.b32.cont [4/16] 0.0, 128
    %2238 = vxpose.xlu0.b32.cont [5/16] 0.0, 128
    %2239 = vxpose.xlu0.b32.cont [6/16] 0.0, 128
    %2240 = vxpose.xlu0.b32.cont [7/16] 0.0, 128
    %2241 = vxpose.xlu0.b32.cont [8/16] 0.0, 128
    %2242 = vxpose.xlu0.b32.cont [9/16] 0.0, 128
    %2243 = vxpose.xlu0.b32.cont [10/16] 0.0, 128
    %2244 = vxpose.xlu0.b32.cont [11/16] 0.0, 128
    %2245 = vxpose.xlu0.b32.cont [12/16] 0.0, 128
    %2246 = vxpose.xlu0.b32.cont [13/16] 0.0, 128
    %2247 = vxpose.xlu0.b32.cont [14/16] 0.0, 128
    %2248 = vxpose.xlu0.b32.cont [15/16] 0.0, 128
    %2249 = vxpose.xlu0.b32.end [16/16] 0.0, 128
    %v2250 = vpop.trf.xlu0
    %v2251 = vpop.trf.xlu0
    %v2252 = vpop.trf.xlu0
    %v2253 = vpop.trf.xlu0
    %v2254 = vpop.trf.xlu0
    %v2255 = vpop.trf.xlu0
    %v2256 = vpop.trf.xlu0
    %v2257 = vpop.trf.xlu0
    %v2258 = vpop.trf.xlu0
    %v2259 = vpop.trf.xlu0
    %v2260 = vpop.trf.xlu0
    %v2261 = vpop.trf.xlu0
    %v2262 = vpop.trf.xlu0
    %v2263 = vpop.trf.xlu0
    %v2264 = vpop.trf.xlu0
    %v2265 = vpop.trf.xlu0
    %v2266 = vperm.slane %v2218, 0
    %v2267 = vlaneseq
    %v2268 = vshrl.u32 %v2267, 7
    %2270 = vset.pattern.permute.xlu0 %v2268
    %2271 = vperm.xlu0 %2270, %v2266
    %v2272 = vpop.permute.xlu0 %2271
    %v2273 = vperm.slane %v2218, 1
    %v2274 = vlaneseq
    %v2275 = vshrl.u32 %v2274, 7
    %2277 = vset.pattern.permute.xlu0 %v2275
    %2278 = vperm.xlu0 %2277, %v2273
    %v2279 = vpop.permute.xlu0 %2278
    %v2280 = vperm.slane %v2218, 2
    %v2281 = vlaneseq
    %v2282 = vshrl.u32 %v2281, 7
    %2284 = vset.pattern.permute.xlu0 %v2282
    %2285 = vperm.xlu0 %2284, %v2280
    %v2286 = vpop.permute.xlu0 %2285
    %v2287 = vperm.slane %v2218, 3
    %v2288 = vlaneseq
    %v2289 = vshrl.u32 %v2288, 7
    %2291 = vset.pattern.permute.xlu0 %v2289
    %2292 = vperm.xlu0 %2291, %v2287
    %v2293 = vpop.permute.xlu0 %2292
    %v2294 = vperm.slane %v2218, 4
    %v2295 = vlaneseq
    %v2296 = vshrl.u32 %v2295, 7
    %2298 = vset.pattern.permute.xlu0 %v2296
    %2299 = vperm.xlu0 %2298, %v2294
    %v2300 = vpop.permute.xlu0 %2299
    %v2301 = vperm.slane %v2218, 5
    %v2302 = vlaneseq
    %v2303 = vshrl.u32 %v2302, 7
    %2305 = vset.pattern.permute.xlu0 %v2303
    %2306 = vperm.xlu0 %2305, %v2301
    %v2307 = vpop.permute.xlu0 %2306
    %v2308 = vperm.slane %v2218, 6
    %v2309 = vlaneseq
    %v2310 = vshrl.u32 %v2309, 7
    %2312 = vset.pattern.permute.xlu0 %v2310
    %2313 = vperm.xlu0 %2312, %v2308
    %v2314 = vpop.permute.xlu0 %2313
    %v2315 = vperm.slane %v2218, 7
    %v2316 = vlaneseq
    %v2317 = vshrl.u32 %v2316, 7
    %2319 = vset.pattern.permute.xlu0 %v2317
    %2320 = vperm.xlu0 %2319, %v2315
    %v2321 = vpop.permute.xlu0 %2320
    %v2322 = vperm.slane %v2219, 0
    %v2323 = vlaneseq
    %v2324 = vshrl.u32 %v2323, 7
    %2326 = vset.pattern.permute.xlu0 %v2324
    %2327 = vperm.xlu0 %2326, %v2322
    %v2328 = vpop.permute.xlu0 %2327
    %v2329 = vperm.slane %v2219, 1
    %v2330 = vlaneseq
    %v2331 = vshrl.u32 %v2330, 7
    %2333 = vset.pattern.permute.xlu0 %v2331
    %2334 = vperm.xlu0 %2333, %v2329
    %v2335 = vpop.permute.xlu0 %2334
    %v2336 = vperm.slane %v2219, 2
    %v2337 = vlaneseq
    %v2338 = vshrl.u32 %v2337, 7
    %2340 = vset.pattern.permute.xlu0 %v2338
    %2341 = vperm.xlu0 %2340, %v2336
    %v2342 = vpop.permute.xlu0 %2341
    %v2343 = vperm.slane %v2219, 3
    %v2344 = vlaneseq
    %v2345 = vshrl.u32 %v2344, 7
    %2347 = vset.pattern.permute.xlu0 %v2345
    %2348 = vperm.xlu0 %2347, %v2343
    %v2349 = vpop.permute.xlu0 %2348
    %v2350 = vperm.slane %v2219, 4
    %v2351 = vlaneseq
    %v2352 = vshrl.u32 %v2351, 7
    %2354 = vset.pattern.permute.xlu0 %v2352
    %2355 = vperm.xlu0 %2354, %v2350
    %v2356 = vpop.permute.xlu0 %2355
    %v2357 = vperm.slane %v2219, 5
    %v2358 = vlaneseq
    %v2359 = vshrl.u32 %v2358, 7
    %2361 = vset.pattern.permute.xlu0 %v2359
    %2362 = vperm.xlu0 %2361, %v2357
    %v2363 = vpop.permute.xlu0 %2362
    %v2364 = vperm.slane %v2219, 6
    %v2365 = vlaneseq
    %v2366 = vshrl.u32 %v2365, 7
    %2368 = vset.pattern.permute.xlu0 %v2366
    %2369 = vperm.xlu0 %2368, %v2364
    %v2370 = vpop.permute.xlu0 %2369
    %v2371 = vperm.slane %v2219, 7
    %v2372 = vlaneseq
    %v2373 = vshrl.u32 %v2372, 7
    %2375 = vset.pattern.permute.xlu0 %v2373
    %2376 = vperm.xlu0 %2375, %v2371
    %v2377 = vpop.permute.xlu0 %2376
    %v2378 = vperm.slane %v2220, 0
    %v2379 = vlaneseq
    %v2380 = vshrl.u32 %v2379, 7
    %2382 = vset.pattern.permute.xlu0 %v2380
    %2383 = vperm.xlu0 %2382, %v2378
    %v2384 = vpop.permute.xlu0 %2383
    %v2385 = vperm.slane %v2220, 1
    %v2386 = vlaneseq
    %v2387 = vshrl.u32 %v2386, 7
    %2389 = vset.pattern.permute.xlu0 %v2387
    %2390 = vperm.xlu0 %2389, %v2385
    %v2391 = vpop.permute.xlu0 %2390
    %v2392 = vperm.slane %v2220, 2
    %v2393 = vlaneseq
    %v2394 = vshrl.u32 %v2393, 7
    %2396 = vset.pattern.permute.xlu0 %v2394
    %2397 = vperm.xlu0 %2396, %v2392
    %v2398 = vpop.permute.xlu0 %2397
    %v2399 = vperm.slane %v2220, 3
    %v2400 = vlaneseq
    %v2401 = vshrl.u32 %v2400, 7
    %2403 = vset.pattern.permute.xlu0 %v2401
    %2404 = vperm.xlu0 %2403, %v2399
    %v2405 = vpop.permute.xlu0 %2404
    %v2406 = vperm.slane %v2220, 4
    %v2407 = vlaneseq
    %v2408 = vshrl.u32 %v2407, 7
    %2410 = vset.pattern.permute.xlu0 %v2408
    %2411 = vperm.xlu0 %2410, %v2406
    %v2412 = vpop.permute.xlu0 %2411
    %v2413 = vperm.slane %v2220, 5
    %v2414 = vlaneseq
    %v2415 = vshrl.u32 %v2414, 7
    %2417 = vset.pattern.permute.xlu0 %v2415
    %2418 = vperm.xlu0 %2417, %v2413
    %v2419 = vpop.permute.xlu0 %2418
    %v2420 = vperm.slane %v2220, 6
    %v2421 = vlaneseq
    %v2422 = vshrl.u32 %v2421, 7
    %2424 = vset.pattern.permute.xlu0 %v2422
    %2425 = vperm.xlu0 %2424, %v2420
    %v2426 = vpop.permute.xlu0 %2425
    %v2427 = vperm.slane %v2220, 7
    %v2428 = vlaneseq
    %v2429 = vshrl.u32 %v2428, 7
    %2431 = vset.pattern.permute.xlu0 %v2429
    %2432 = vperm.xlu0 %2431, %v2427
    %v2433 = vpop.permute.xlu0 %2432
    %v2434 = vperm.slane %v2221, 0
    %v2435 = vlaneseq
    %v2436 = vshrl.u32 %v2435, 7
    %2438 = vset.pattern.permute.xlu0 %v2436
    %2439 = vperm.xlu0 %2438, %v2434
    %v2440 = vpop.permute.xlu0 %2439
    %v2441 = vperm.slane %v2221, 1
    %v2442 = vlaneseq
    %v2443 = vshrl.u32 %v2442, 7
    %2445 = vset.pattern.permute.xlu0 %v2443
    %2446 = vperm.xlu0 %2445, %v2441
    %v2447 = vpop.permute.xlu0 %2446
    %v2448 = vperm.slane %v2221, 2
    %v2449 = vlaneseq
    %v2450 = vshrl.u32 %v2449, 7
    %2452 = vset.pattern.permute.xlu0 %v2450
    %2453 = vperm.xlu0 %2452, %v2448
    %v2454 = vpop.permute.xlu0 %2453
    %v2455 = vperm.slane %v2221, 3
    %v2456 = vlaneseq
    %v2457 = vshrl.u32 %v2456, 7
    %2459 = vset.pattern.permute.xlu0 %v2457
    %2460 = vperm.xlu0 %2459, %v2455
    %v2461 = vpop.permute.xlu0 %2460
    %v2462 = vperm.slane %v2221, 4
    %v2463 = vlaneseq
    %v2464 = vshrl.u32 %v2463, 7
    %2466 = vset.pattern.permute.xlu0 %v2464
    %2467 = vperm.xlu0 %2466, %v2462
    %v2468 = vpop.permute.xlu0 %2467
    %v2469 = vperm.slane %v2221, 5
    %v2470 = vlaneseq
    %v2471 = vshrl.u32 %v2470, 7
    %2473 = vset.pattern.permute.xlu0 %v2471
    %2474 = vperm.xlu0 %2473, %v2469
    %v2475 = vpop.permute.xlu0 %2474
    %v2476 = vperm.slane %v2221, 6
    %v2477 = vlaneseq
    %v2478 = vshrl.u32 %v2477, 7
    %2480 = vset.pattern.permute.xlu0 %v2478
    %2481 = vperm.xlu0 %2480, %v2476
    %v2482 = vpop.permute.xlu0 %2481
    %v2483 = vperm.slane %v2221, 7
    %v2484 = vlaneseq
    %v2485 = vshrl.u32 %v2484, 7
    %2487 = vset.pattern.permute.xlu0 %v2485
    %2488 = vperm.xlu0 %2487, %v2483
    %v2489 = vpop.permute.xlu0 %2488
    %v2490 = vperm.slane %v2222, 0
    %v2491 = vlaneseq
    %v2492 = vshrl.u32 %v2491, 7
    %2494 = vset.pattern.permute.xlu0 %v2492
    %2495 = vperm.xlu0 %2494, %v2490
    %v2496 = vpop.permute.xlu0 %2495
    %v2497 = vperm.slane %v2222, 1
    %v2498 = vlaneseq
    %v2499 = vshrl.u32 %v2498, 7
    %2501 = vset.pattern.permute.xlu0 %v2499
    %2502 = vperm.xlu0 %2501, %v2497
    %v2503 = vpop.permute.xlu0 %2502
    %v2504 = vperm.slane %v2222, 2
    %v2505 = vlaneseq
    %v2506 = vshrl.u32 %v2505, 7
    %2508 = vset.pattern.permute.xlu0 %v2506
    %2509 = vperm.xlu0 %2508, %v2504
    %v2510 = vpop.permute.xlu0 %2509
    %v2511 = vperm.slane %v2222, 3
    %v2512 = vlaneseq
    %v2513 = vshrl.u32 %v2512, 7
    %2515 = vset.pattern.permute.xlu0 %v2513
    %2516 = vperm.xlu0 %2515, %v2511
    %v2517 = vpop.permute.xlu0 %2516
    %v2518 = vperm.slane %v2222, 4
    %v2519 = vlaneseq
    %v2520 = vshrl.u32 %v2519, 7
    %2522 = vset.pattern.permute.xlu0 %v2520
    %2523 = vperm.xlu0 %2522, %v2518
    %v2524 = vpop.permute.xlu0 %2523
    %v2525 = vperm.slane %v2222, 5
    %v2526 = vlaneseq
    %v2527 = vshrl.u32 %v2526, 7
    %2529 = vset.pattern.permute.xlu0 %v2527
    %2530 = vperm.xlu0 %2529, %v2525
    %v2531 = vpop.permute.xlu0 %2530
    %v2532 = vperm.slane %v2222, 6
    %v2533 = vlaneseq
    %v2534 = vshrl.u32 %v2533, 7
    %2536 = vset.pattern.permute.xlu0 %v2534
    %2537 = vperm.xlu0 %2536, %v2532
    %v2538 = vpop.permute.xlu0 %2537
    %v2539 = vperm.slane %v2222, 7
    %v2540 = vlaneseq
    %v2541 = vshrl.u32 %v2540, 7
    %2543 = vset.pattern.permute.xlu0 %v2541
    %2544 = vperm.xlu0 %2543, %v2539
    %v2545 = vpop.permute.xlu0 %2544
    %v2546 = vperm.slane %v2223, 0
    %v2547 = vlaneseq
    %v2548 = vshrl.u32 %v2547, 7
    %2550 = vset.pattern.permute.xlu0 %v2548
    %2551 = vperm.xlu0 %2550, %v2546
    %v2552 = vpop.permute.xlu0 %2551
    %v2553 = vperm.slane %v2223, 1
    %v2554 = vlaneseq
    %v2555 = vshrl.u32 %v2554, 7
    %2557 = vset.pattern.permute.xlu0 %v2555
    %2558 = vperm.xlu0 %2557, %v2553
    %v2559 = vpop.permute.xlu0 %2558
    %v2560 = vperm.slane %v2223, 2
    %v2561 = vlaneseq
    %v2562 = vshrl.u32 %v2561, 7
    %2564 = vset.pattern.permute.xlu0 %v2562
    %2565 = vperm.xlu0 %2564, %v2560
    %v2566 = vpop.permute.xlu0 %2565
    %v2567 = vperm.slane %v2223, 3
    %v2568 = vlaneseq
    %v2569 = vshrl.u32 %v2568, 7
    %2571 = vset.pattern.permute.xlu0 %v2569
    %2572 = vperm.xlu0 %2571, %v2567
    %v2573 = vpop.permute.xlu0 %2572
    %v2574 = vperm.slane %v2223, 4
    %v2575 = vlaneseq
    %v2576 = vshrl.u32 %v2575, 7
    %2578 = vset.pattern.permute.xlu0 %v2576
    %2579 = vperm.xlu0 %2578, %v2574
    %v2580 = vpop.permute.xlu0 %2579
    %v2581 = vperm.slane %v2223, 5
    %v2582 = vlaneseq
    %v2583 = vshrl.u32 %v2582, 7
    %2585 = vset.pattern.permute.xlu0 %v2583
    %2586 = vperm.xlu0 %2585, %v2581
    %v2587 = vpop.permute.xlu0 %2586
    %v2588 = vperm.slane %v2223, 6
    %v2589 = vlaneseq
    %v2590 = vshrl.u32 %v2589, 7
    %2592 = vset.pattern.permute.xlu0 %v2590
    %2593 = vperm.xlu0 %2592, %v2588
    %v2594 = vpop.permute.xlu0 %2593
    %v2595 = vperm.slane %v2223, 7
    %v2596 = vlaneseq
    %v2597 = vshrl.u32 %v2596, 7
    %2599 = vset.pattern.permute.xlu0 %v2597
    %2600 = vperm.xlu0 %2599, %v2595
    %v2601 = vpop.permute.xlu0 %2600
    %v2602 = vperm.slane %v2224, 0
    %v2603 = vlaneseq
    %v2604 = vshrl.u32 %v2603, 7
    %2606 = vset.pattern.permute.xlu0 %v2604
    %2607 = vperm.xlu0 %2606, %v2602
    %v2608 = vpop.permute.xlu0 %2607
    %v2609 = vperm.slane %v2224, 1
    %v2610 = vlaneseq
    %v2611 = vshrl.u32 %v2610, 7
    %2613 = vset.pattern.permute.xlu0 %v2611
    %2614 = vperm.xlu0 %2613, %v2609
    %v2615 = vpop.permute.xlu0 %2614
    %v2616 = vperm.slane %v2224, 2
    %v2617 = vlaneseq
    %v2618 = vshrl.u32 %v2617, 7
    %2620 = vset.pattern.permute.xlu0 %v2618
    %2621 = vperm.xlu0 %2620, %v2616
    %v2622 = vpop.permute.xlu0 %2621
    %v2623 = vperm.slane %v2224, 3
    %v2624 = vlaneseq
    %v2625 = vshrl.u32 %v2624, 7
    %2627 = vset.pattern.permute.xlu0 %v2625
    %2628 = vperm.xlu0 %2627, %v2623
    %v2629 = vpop.permute.xlu0 %2628
    %v2630 = vperm.slane %v2224, 4
    %v2631 = vlaneseq
    %v2632 = vshrl.u32 %v2631, 7
    %2634 = vset.pattern.permute.xlu0 %v2632
    %2635 = vperm.xlu0 %2634, %v2630
    %v2636 = vpop.permute.xlu0 %2635
    %v2637 = vperm.slane %v2224, 5
    %v2638 = vlaneseq
    %v2639 = vshrl.u32 %v2638, 7
    %2641 = vset.pattern.permute.xlu0 %v2639
    %2642 = vperm.xlu0 %2641, %v2637
    %v2643 = vpop.permute.xlu0 %2642
    %v2644 = vperm.slane %v2224, 6
    %v2645 = vlaneseq
    %v2646 = vshrl.u32 %v2645, 7
    %2648 = vset.pattern.permute.xlu0 %v2646
    %2649 = vperm.xlu0 %2648, %v2644
    %v2650 = vpop.permute.xlu0 %2649
    %v2651 = vperm.slane %v2224, 7
    %v2652 = vlaneseq
    %v2653 = vshrl.u32 %v2652, 7
    %2655 = vset.pattern.permute.xlu0 %v2653
    %2656 = vperm.xlu0 %2655, %v2651
    %v2657 = vpop.permute.xlu0 %2656
    %v2658 = vperm.slane %v2225, 0
    %v2659 = vlaneseq
    %v2660 = vshrl.u32 %v2659, 7
    %2662 = vset.pattern.permute.xlu0 %v2660
    %2663 = vperm.xlu0 %2662, %v2658
    %v2664 = vpop.permute.xlu0 %2663
    %v2665 = vperm.slane %v2225, 1
    %v2666 = vlaneseq
    %v2667 = vshrl.u32 %v2666, 7
    %2669 = vset.pattern.permute.xlu0 %v2667
    %2670 = vperm.xlu0 %2669, %v2665
    %v2671 = vpop.permute.xlu0 %2670
    %v2672 = vperm.slane %v2225, 2
    %v2673 = vlaneseq
    %v2674 = vshrl.u32 %v2673, 7
    %2676 = vset.pattern.permute.xlu0 %v2674
    %2677 = vperm.xlu0 %2676, %v2672
    %v2678 = vpop.permute.xlu0 %2677
    %v2679 = vperm.slane %v2225, 3
    %v2680 = vlaneseq
    %v2681 = vshrl.u32 %v2680, 7
    %2683 = vset.pattern.permute.xlu0 %v2681
    %2684 = vperm.xlu0 %2683, %v2679
    %v2685 = vpop.permute.xlu0 %2684
    %v2686 = vperm.slane %v2225, 4
    %v2687 = vlaneseq
    %v2688 = vshrl.u32 %v2687, 7
    %2690 = vset.pattern.permute.xlu0 %v2688
    %2691 = vperm.xlu0 %2690, %v2686
    %v2692 = vpop.permute.xlu0 %2691
    %v2693 = vperm.slane %v2225, 5
    %v2694 = vlaneseq
    %v2695 = vshrl.u32 %v2694, 7
    %2697 = vset.pattern.permute.xlu0 %v2695
    %2698 = vperm.xlu0 %2697, %v2693
    %v2699 = vpop.permute.xlu0 %2698
    %v2700 = vperm.slane %v2225, 6
    %v2701 = vlaneseq
    %v2702 = vshrl.u32 %v2701, 7
    %2704 = vset.pattern.permute.xlu0 %v2702
    %2705 = vperm.xlu0 %2704, %v2700
    %v2706 = vpop.permute.xlu0 %2705
    %v2707 = vperm.slane %v2225, 7
    %v2708 = vlaneseq
    %v2709 = vshrl.u32 %v2708, 7
    %2711 = vset.pattern.permute.xlu0 %v2709
    %2712 = vperm.xlu0 %2711, %v2707
    %v2713 = vpop.permute.xlu0 %2712
    %v2714 = vperm.slane %v2226, 0
    %v2715 = vlaneseq
    %v2716 = vshrl.u32 %v2715, 7
    %2718 = vset.pattern.permute.xlu0 %v2716
    %2719 = vperm.xlu0 %2718, %v2714
    %v2720 = vpop.permute.xlu0 %2719
    %v2721 = vperm.slane %v2226, 1
    %v2722 = vlaneseq
    %v2723 = vshrl.u32 %v2722, 7
    %2725 = vset.pattern.permute.xlu0 %v2723
    %2726 = vperm.xlu0 %2725, %v2721
    %v2727 = vpop.permute.xlu0 %2726
    %v2728 = vperm.slane %v2226, 2
    %v2729 = vlaneseq
    %v2730 = vshrl.u32 %v2729, 7
    %2732 = vset.pattern.permute.xlu0 %v2730
    %2733 = vperm.xlu0 %2732, %v2728
    %v2734 = vpop.permute.xlu0 %2733
    %v2735 = vperm.slane %v2226, 3
    %v2736 = vlaneseq
    %v2737 = vshrl.u32 %v2736, 7
    %2739 = vset.pattern.permute.xlu0 %v2737
    %2740 = vperm.xlu0 %2739, %v2735
    %v2741 = vpop.permute.xlu0 %2740
    %v2742 = vperm.slane %v2226, 4
    %v2743 = vlaneseq
    %v2744 = vshrl.u32 %v2743, 7
    %2746 = vset.pattern.permute.xlu0 %v2744
    %2747 = vperm.xlu0 %2746, %v2742
    %v2748 = vpop.permute.xlu0 %2747
    %v2749 = vperm.slane %v2226, 5
    %v2750 = vlaneseq
    %v2751 = vshrl.u32 %v2750, 7
    %2753 = vset.pattern.permute.xlu0 %v2751
    %2754 = vperm.xlu0 %2753, %v2749
    %v2755 = vpop.permute.xlu0 %2754
    %v2756 = vperm.slane %v2226, 6
    %v2757 = vlaneseq
    %v2758 = vshrl.u32 %v2757, 7
    %2760 = vset.pattern.permute.xlu0 %v2758
    %2761 = vperm.xlu0 %2760, %v2756
    %v2762 = vpop.permute.xlu0 %2761
    %v2763 = vperm.slane %v2226, 7
    %v2764 = vlaneseq
    %v2765 = vshrl.u32 %v2764, 7
    %2767 = vset.pattern.permute.xlu0 %v2765
    %2768 = vperm.xlu0 %2767, %v2763
    %v2769 = vpop.permute.xlu0 %2768
    %v2770 = vperm.slane %v2227, 0
    %v2771 = vlaneseq
    %v2772 = vshrl.u32 %v2771, 7
    %2774 = vset.pattern.permute.xlu0 %v2772
    %2775 = vperm.xlu0 %2774, %v2770
    %v2776 = vpop.permute.xlu0 %2775
    %v2777 = vperm.slane %v2227, 1
    %v2778 = vlaneseq
    %v2779 = vshrl.u32 %v2778, 7
    %2781 = vset.pattern.permute.xlu0 %v2779
    %2782 = vperm.xlu0 %2781, %v2777
    %v2783 = vpop.permute.xlu0 %2782
    %v2784 = vperm.slane %v2227, 2
    %v2785 = vlaneseq
    %v2786 = vshrl.u32 %v2785, 7
    %2788 = vset.pattern.permute.xlu0 %v2786
    %2789 = vperm.xlu0 %2788, %v2784
    %v2790 = vpop.permute.xlu0 %2789
    %v2791 = vperm.slane %v2227, 3
    %v2792 = vlaneseq
    %v2793 = vshrl.u32 %v2792, 7
    %2795 = vset.pattern.permute.xlu0 %v2793
    %2796 = vperm.xlu0 %2795, %v2791
    %v2797 = vpop.permute.xlu0 %2796
    %v2798 = vperm.slane %v2227, 4
    %v2799 = vlaneseq
    %v2800 = vshrl.u32 %v2799, 7
    %2802 = vset.pattern.permute.xlu0 %v2800
    %2803 = vperm.xlu0 %2802, %v2798
    %v2804 = vpop.permute.xlu0 %2803
    %v2805 = vperm.slane %v2227, 5
    %v2806 = vlaneseq
    %v2807 = vshrl.u32 %v2806, 7
    %2809 = vset.pattern.permute.xlu0 %v2807
    %2810 = vperm.xlu0 %2809, %v2805
    %v2811 = vpop.permute.xlu0 %2810
    %v2812 = vperm.slane %v2227, 6
    %v2813 = vlaneseq
    %v2814 = vshrl.u32 %v2813, 7
    %2816 = vset.pattern.permute.xlu0 %v2814
    %2817 = vperm.xlu0 %2816, %v2812
    %v2818 = vpop.permute.xlu0 %2817
    %v2819 = vperm.slane %v2227, 7
    %v2820 = vlaneseq
    %v2821 = vshrl.u32 %v2820, 7
    %2823 = vset.pattern.permute.xlu0 %v2821
    %2824 = vperm.xlu0 %2823, %v2819
    %v2825 = vpop.permute.xlu0 %2824
    %v2826 = vperm.slane %v2228, 0
    %v2827 = vlaneseq
    %v2828 = vshrl.u32 %v2827, 7
    %2830 = vset.pattern.permute.xlu0 %v2828
    %2831 = vperm.xlu0 %2830, %v2826
    %v2832 = vpop.permute.xlu0 %2831
    %v2833 = vperm.slane %v2228, 1
    %v2834 = vlaneseq
    %v2835 = vshrl.u32 %v2834, 7
    %2837 = vset.pattern.permute.xlu0 %v2835
    %2838 = vperm.xlu0 %2837, %v2833
    %v2839 = vpop.permute.xlu0 %2838
    %v2840 = vperm.slane %v2228, 2
    %v2841 = vlaneseq
    %v2842 = vshrl.u32 %v2841, 7
    %2844 = vset.pattern.permute.xlu0 %v2842
    %2845 = vperm.xlu0 %2844, %v2840
    %v2846 = vpop.permute.xlu0 %2845
    %v2847 = vperm.slane %v2228, 3
    %v2848 = vlaneseq
    %v2849 = vshrl.u32 %v2848, 7
    %2851 = vset.pattern.permute.xlu0 %v2849
    %2852 = vperm.xlu0 %2851, %v2847
    %v2853 = vpop.permute.xlu0 %2852
    %v2854 = vperm.slane %v2228, 4
    %v2855 = vlaneseq
    %v2856 = vshrl.u32 %v2855, 7
    %2858 = vset.pattern.permute.xlu0 %v2856
    %2859 = vperm.xlu0 %2858, %v2854
    %v2860 = vpop.permute.xlu0 %2859
    %v2861 = vperm.slane %v2228, 5
    %v2862 = vlaneseq
    %v2863 = vshrl.u32 %v2862, 7
    %2865 = vset.pattern.permute.xlu0 %v2863
    %2866 = vperm.xlu0 %2865, %v2861
    %v2867 = vpop.permute.xlu0 %2866
    %v2868 = vperm.slane %v2228, 6
    %v2869 = vlaneseq
    %v2870 = vshrl.u32 %v2869, 7
    %2872 = vset.pattern.permute.xlu0 %v2870
    %2873 = vperm.xlu0 %2872, %v2868
    %v2874 = vpop.permute.xlu0 %2873
    %v2875 = vperm.slane %v2228, 7
    %v2876 = vlaneseq
    %v2877 = vshrl.u32 %v2876, 7
    %2879 = vset.pattern.permute.xlu0 %v2877
    %2880 = vperm.xlu0 %2879, %v2875
    %v2881 = vpop.permute.xlu0 %2880
    %v2882 = vperm.slane %v2229, 0
    %v2883 = vlaneseq
    %v2884 = vshrl.u32 %v2883, 7
    %2886 = vset.pattern.permute.xlu0 %v2884
    %2887 = vperm.xlu0 %2886, %v2882
    %v2888 = vpop.permute.xlu0 %2887
    %v2889 = vperm.slane %v2229, 1
    %v2890 = vlaneseq
    %v2891 = vshrl.u32 %v2890, 7
    %2893 = vset.pattern.permute.xlu0 %v2891
    %2894 = vperm.xlu0 %2893, %v2889
    %v2895 = vpop.permute.xlu0 %2894
    %v2896 = vperm.slane %v2229, 2
    %v2897 = vlaneseq
    %v2898 = vshrl.u32 %v2897, 7
    %2900 = vset.pattern.permute.xlu0 %v2898
    %2901 = vperm.xlu0 %2900, %v2896
    %v2902 = vpop.permute.xlu0 %2901
    %v2903 = vperm.slane %v2229, 3
    %v2904 = vlaneseq
    %v2905 = vshrl.u32 %v2904, 7
    %2907 = vset.pattern.permute.xlu0 %v2905
    %2908 = vperm.xlu0 %2907, %v2903
    %v2909 = vpop.permute.xlu0 %2908
    %v2910 = vperm.slane %v2229, 4
    %v2911 = vlaneseq
    %v2912 = vshrl.u32 %v2911, 7
    %2914 = vset.pattern.permute.xlu0 %v2912
    %2915 = vperm.xlu0 %2914, %v2910
    %v2916 = vpop.permute.xlu0 %2915
    %v2917 = vperm.slane %v2229, 5
    %v2918 = vlaneseq
    %v2919 = vshrl.u32 %v2918, 7
    %2921 = vset.pattern.permute.xlu0 %v2919
    %2922 = vperm.xlu0 %2921, %v2917
    %v2923 = vpop.permute.xlu0 %2922
    %v2924 = vperm.slane %v2229, 6
    %v2925 = vlaneseq
    %v2926 = vshrl.u32 %v2925, 7
    %2928 = vset.pattern.permute.xlu0 %v2926
    %2929 = vperm.xlu0 %2928, %v2924
    %v2930 = vpop.permute.xlu0 %2929
    %v2931 = vperm.slane %v2229, 7
    %v2932 = vlaneseq
    %v2933 = vshrl.u32 %v2932, 7
    %2935 = vset.pattern.permute.xlu0 %v2933
    %2936 = vperm.xlu0 %2935, %v2931
    %v2937 = vpop.permute.xlu0 %2936
    %v2938 = vperm.slane %v2230, 0
    %v2939 = vlaneseq
    %v2940 = vshrl.u32 %v2939, 7
    %2942 = vset.pattern.permute.xlu0 %v2940
    %2943 = vperm.xlu0 %2942, %v2938
    %v2944 = vpop.permute.xlu0 %2943
    %v2945 = vperm.slane %v2230, 1
    %v2946 = vlaneseq
    %v2947 = vshrl.u32 %v2946, 7
    %2949 = vset.pattern.permute.xlu0 %v2947
    %2950 = vperm.xlu0 %2949, %v2945
    %v2951 = vpop.permute.xlu0 %2950
    %v2952 = vperm.slane %v2230, 2
    %v2953 = vlaneseq
    %v2954 = vshrl.u32 %v2953, 7
    %2956 = vset.pattern.permute.xlu0 %v2954
    %2957 = vperm.xlu0 %2956, %v2952
    %v2958 = vpop.permute.xlu0 %2957
    %v2959 = vperm.slane %v2230, 3
    %v2960 = vlaneseq
    %v2961 = vshrl.u32 %v2960, 7
    %2963 = vset.pattern.permute.xlu0 %v2961
    %2964 = vperm.xlu0 %2963, %v2959
    %v2965 = vpop.permute.xlu0 %2964
    %v2966 = vperm.slane %v2230, 4
    %v2967 = vlaneseq
    %v2968 = vshrl.u32 %v2967, 7
    %2970 = vset.pattern.permute.xlu0 %v2968
    %2971 = vperm.xlu0 %2970, %v2966
    %v2972 = vpop.permute.xlu0 %2971
    %v2973 = vperm.slane %v2230, 5
    %v2974 = vlaneseq
    %v2975 = vshrl.u32 %v2974, 7
    %2977 = vset.pattern.permute.xlu0 %v2975
    %2978 = vperm.xlu0 %2977, %v2973
    %v2979 = vpop.permute.xlu0 %2978
    %v2980 = vperm.slane %v2230, 6
    %v2981 = vlaneseq
    %v2982 = vshrl.u32 %v2981, 7
    %2984 = vset.pattern.permute.xlu0 %v2982
    %2985 = vperm.xlu0 %2984, %v2980
    %v2986 = vpop.permute.xlu0 %2985
    %v2987 = vperm.slane %v2230, 7
    %v2988 = vlaneseq
    %v2989 = vshrl.u32 %v2988, 7
    %2991 = vset.pattern.permute.xlu0 %v2989
    %2992 = vperm.xlu0 %2991, %v2987
    %v2993 = vpop.permute.xlu0 %2992
    %v2994 = vperm.slane %v2231, 0
    %v2995 = vlaneseq
    %v2996 = vshrl.u32 %v2995, 7
    %2998 = vset.pattern.permute.xlu0 %v2996
    %2999 = vperm.xlu0 %2998, %v2994
    %v3000 = vpop.permute.xlu0 %2999
    %v3001 = vperm.slane %v2231, 1
    %v3002 = vlaneseq
    %v3003 = vshrl.u32 %v3002, 7
    %3005 = vset.pattern.permute.xlu0 %v3003
    %3006 = vperm.xlu0 %3005, %v3001
    %v3007 = vpop.permute.xlu0 %3006
    %v3008 = vperm.slane %v2231, 2
    %v3009 = vlaneseq
    %v3010 = vshrl.u32 %v3009, 7
    %3012 = vset.pattern.permute.xlu0 %v3010
    %3013 = vperm.xlu0 %3012, %v3008
    %v3014 = vpop.permute.xlu0 %3013
    %v3015 = vperm.slane %v2231, 3
    %v3016 = vlaneseq
    %v3017 = vshrl.u32 %v3016, 7
    %3019 = vset.pattern.permute.xlu0 %v3017
    %3020 = vperm.xlu0 %3019, %v3015
    %v3021 = vpop.permute.xlu0 %3020
    %v3022 = vperm.slane %v2231, 4
    %v3023 = vlaneseq
    %v3024 = vshrl.u32 %v3023, 7
    %3026 = vset.pattern.permute.xlu0 %v3024
    %3027 = vperm.xlu0 %3026, %v3022
    %v3028 = vpop.permute.xlu0 %3027
    %v3029 = vperm.slane %v2231, 5
    %v3030 = vlaneseq
    %v3031 = vshrl.u32 %v3030, 7
    %3033 = vset.pattern.permute.xlu0 %v3031
    %3034 = vperm.xlu0 %3033, %v3029
    %v3035 = vpop.permute.xlu0 %3034
    %v3036 = vperm.slane %v2231, 6
    %v3037 = vlaneseq
    %v3038 = vshrl.u32 %v3037, 7
    %3040 = vset.pattern.permute.xlu0 %v3038
    %3041 = vperm.xlu0 %3040, %v3036
    %v3042 = vpop.permute.xlu0 %3041
    %v3043 = vperm.slane %v2231, 7
    %v3044 = vlaneseq
    %v3045 = vshrl.u32 %v3044, 7
    %3047 = vset.pattern.permute.xlu0 %v3045
    %3048 = vperm.xlu0 %3047, %v3043
    %v3049 = vpop.permute.xlu0 %3048
    %v3050 = vperm.slane %v2232, 0
    %v3051 = vlaneseq
    %v3052 = vshrl.u32 %v3051, 7
    %3054 = vset.pattern.permute.xlu0 %v3052
    %3055 = vperm.xlu0 %3054, %v3050
    %v3056 = vpop.permute.xlu0 %3055
    %v3057 = vperm.slane %v2232, 1
    %v3058 = vlaneseq
    %v3059 = vshrl.u32 %v3058, 7
    %3061 = vset.pattern.permute.xlu0 %v3059
    %3062 = vperm.xlu0 %3061, %v3057
    %v3063 = vpop.permute.xlu0 %3062
    %v3064 = vperm.slane %v2232, 2
    %v3065 = vlaneseq
    %v3066 = vshrl.u32 %v3065, 7
    %3068 = vset.pattern.permute.xlu0 %v3066
    %3069 = vperm.xlu0 %3068, %v3064
    %v3070 = vpop.permute.xlu0 %3069
    %v3071 = vperm.slane %v2232, 3
    %v3072 = vlaneseq
    %v3073 = vshrl.u32 %v3072, 7
    %3075 = vset.pattern.permute.xlu0 %v3073
    %3076 = vperm.xlu0 %3075, %v3071
    %v3077 = vpop.permute.xlu0 %3076
    %v3078 = vperm.slane %v2232, 4
    %v3079 = vlaneseq
    %v3080 = vshrl.u32 %v3079, 7
    %3082 = vset.pattern.permute.xlu0 %v3080
    %3083 = vperm.xlu0 %3082, %v3078
    %v3084 = vpop.permute.xlu0 %3083
    %v3085 = vperm.slane %v2232, 5
    %v3086 = vlaneseq
    %v3087 = vshrl.u32 %v3086, 7
    %3089 = vset.pattern.permute.xlu0 %v3087
    %3090 = vperm.xlu0 %3089, %v3085
    %v3091 = vpop.permute.xlu0 %3090
    %v3092 = vperm.slane %v2232, 6
    %v3093 = vlaneseq
    %v3094 = vshrl.u32 %v3093, 7
    %3096 = vset.pattern.permute.xlu0 %v3094
    %3097 = vperm.xlu0 %3096, %v3092
    %v3098 = vpop.permute.xlu0 %3097
    %v3099 = vperm.slane %v2232, 7
    %v3100 = vlaneseq
    %v3101 = vshrl.u32 %v3100, 7
    %3103 = vset.pattern.permute.xlu0 %v3101
    %3104 = vperm.xlu0 %3103, %v3099
    %v3105 = vpop.permute.xlu0 %3104
    %v3106 = vperm.slane %v2233, 0
    %v3107 = vlaneseq
    %v3108 = vshrl.u32 %v3107, 7
    %3110 = vset.pattern.permute.xlu0 %v3108
    %3111 = vperm.xlu0 %3110, %v3106
    %v3112 = vpop.permute.xlu0 %3111
    %v3113 = vperm.slane %v2233, 1
    %v3114 = vlaneseq
    %v3115 = vshrl.u32 %v3114, 7
    %3117 = vset.pattern.permute.xlu0 %v3115
    %3118 = vperm.xlu0 %3117, %v3113
    %v3119 = vpop.permute.xlu0 %3118
    %v3120 = vperm.slane %v2233, 2
    %v3121 = vlaneseq
    %v3122 = vshrl.u32 %v3121, 7
    %3124 = vset.pattern.permute.xlu0 %v3122
    %3125 = vperm.xlu0 %3124, %v3120
    %v3126 = vpop.permute.xlu0 %3125
    %v3127 = vperm.slane %v2233, 3
    %v3128 = vlaneseq
    %v3129 = vshrl.u32 %v3128, 7
    %3131 = vset.pattern.permute.xlu0 %v3129
    %3132 = vperm.xlu0 %3131, %v3127
    %v3133 = vpop.permute.xlu0 %3132
    %v3134 = vperm.slane %v2233, 4
    %v3135 = vlaneseq
    %v3136 = vshrl.u32 %v3135, 7
    %3138 = vset.pattern.permute.xlu0 %v3136
    %3139 = vperm.xlu0 %3138, %v3134
    %v3140 = vpop.permute.xlu0 %3139
    %v3141 = vperm.slane %v2233, 5
    %v3142 = vlaneseq
    %v3143 = vshrl.u32 %v3142, 7
    %3145 = vset.pattern.permute.xlu0 %v3143
    %3146 = vperm.xlu0 %3145, %v3141
    %v3147 = vpop.permute.xlu0 %3146
    %v3148 = vperm.slane %v2233, 6
    %v3149 = vlaneseq
    %v3150 = vshrl.u32 %v3149, 7
    %3152 = vset.pattern.permute.xlu0 %v3150
    %3153 = vperm.xlu0 %3152, %v3148
    %v3154 = vpop.permute.xlu0 %3153
    %v3155 = vperm.slane %v2233, 7
    %v3156 = vlaneseq
    %v3157 = vshrl.u32 %v3156, 7
    %3159 = vset.pattern.permute.xlu0 %v3157
    %3160 = vperm.xlu0 %3159, %v3155
    %v3161 = vpop.permute.xlu0 %3160
    %v3162 = vperm.slane %v2250, 0
    %v3163 = vlaneseq
    %v3164 = vshrl.u32 %v3163, 7
    %3166 = vset.pattern.permute.xlu0 %v3164
    %3167 = vperm.xlu0 %3166, %v3162
    %v3168 = vpop.permute.xlu0 %3167
    %v3169 = vperm.slane %v2250, 1
    %v3170 = vlaneseq
    %v3171 = vshrl.u32 %v3170, 7
    %3173 = vset.pattern.permute.xlu0 %v3171
    %3174 = vperm.xlu0 %3173, %v3169
    %v3175 = vpop.permute.xlu0 %3174
    %v3176 = vperm.slane %v2250, 2
    %v3177 = vlaneseq
    %v3178 = vshrl.u32 %v3177, 7
    %3180 = vset.pattern.permute.xlu0 %v3178
    %3181 = vperm.xlu0 %3180, %v3176
    %v3182 = vpop.permute.xlu0 %3181
    %v3183 = vperm.slane %v2250, 3
    %v3184 = vlaneseq
    %v3185 = vshrl.u32 %v3184, 7
    %3187 = vset.pattern.permute.xlu0 %v3185
    %3188 = vperm.xlu0 %3187, %v3183
    %v3189 = vpop.permute.xlu0 %3188
    %v3190 = vperm.slane %v2250, 4
    %v3191 = vlaneseq
    %v3192 = vshrl.u32 %v3191, 7
    %3194 = vset.pattern.permute.xlu0 %v3192
    %3195 = vperm.xlu0 %3194, %v3190
    %v3196 = vpop.permute.xlu0 %3195
    %v3197 = vperm.slane %v2250, 5
    %v3198 = vlaneseq
    %v3199 = vshrl.u32 %v3198, 7
    %3201 = vset.pattern.permute.xlu0 %v3199
    %3202 = vperm.xlu0 %3201, %v3197
    %v3203 = vpop.permute.xlu0 %3202
    %v3204 = vperm.slane %v2250, 6
    %v3205 = vlaneseq
    %v3206 = vshrl.u32 %v3205, 7
    %3208 = vset.pattern.permute.xlu0 %v3206
    %3209 = vperm.xlu0 %3208, %v3204
    %v3210 = vpop.permute.xlu0 %3209
    %v3211 = vperm.slane %v2250, 7
    %v3212 = vlaneseq
    %v3213 = vshrl.u32 %v3212, 7
    %3215 = vset.pattern.permute.xlu0 %v3213
    %3216 = vperm.xlu0 %3215, %v3211
    %v3217 = vpop.permute.xlu0 %3216
    %v3218 = vperm.slane %v2251, 0
    %v3219 = vlaneseq
    %v3220 = vshrl.u32 %v3219, 7
    %3222 = vset.pattern.permute.xlu0 %v3220
    %3223 = vperm.xlu0 %3222, %v3218
    %v3224 = vpop.permute.xlu0 %3223
    %v3225 = vperm.slane %v2251, 1
    %v3226 = vlaneseq
    %v3227 = vshrl.u32 %v3226, 7
    %3229 = vset.pattern.permute.xlu0 %v3227
    %3230 = vperm.xlu0 %3229, %v3225
    %v3231 = vpop.permute.xlu0 %3230
    %v3232 = vperm.slane %v2251, 2
    %v3233 = vlaneseq
    %v3234 = vshrl.u32 %v3233, 7
    %3236 = vset.pattern.permute.xlu0 %v3234
    %3237 = vperm.xlu0 %3236, %v3232
    %v3238 = vpop.permute.xlu0 %3237
    %v3239 = vperm.slane %v2251, 3
    %v3240 = vlaneseq
    %v3241 = vshrl.u32 %v3240, 7
    %3243 = vset.pattern.permute.xlu0 %v3241
    %3244 = vperm.xlu0 %3243, %v3239
    %v3245 = vpop.permute.xlu0 %3244
    %v3246 = vperm.slane %v2251, 4
    %v3247 = vlaneseq
    %v3248 = vshrl.u32 %v3247, 7
    %3250 = vset.pattern.permute.xlu0 %v3248
    %3251 = vperm.xlu0 %3250, %v3246
    %v3252 = vpop.permute.xlu0 %3251
    %v3253 = vperm.slane %v2251, 5
    %v3254 = vlaneseq
    %v3255 = vshrl.u32 %v3254, 7
    %3257 = vset.pattern.permute.xlu0 %v3255
    %3258 = vperm.xlu0 %3257, %v3253
    %v3259 = vpop.permute.xlu0 %3258
    %v3260 = vperm.slane %v2251, 6
    %v3261 = vlaneseq
    %v3262 = vshrl.u32 %v3261, 7
    %3264 = vset.pattern.permute.xlu0 %v3262
    %3265 = vperm.xlu0 %3264, %v3260
    %v3266 = vpop.permute.xlu0 %3265
    %v3267 = vperm.slane %v2251, 7
    %v3268 = vlaneseq
    %v3269 = vshrl.u32 %v3268, 7
    %3271 = vset.pattern.permute.xlu0 %v3269
    %3272 = vperm.xlu0 %3271, %v3267
    %v3273 = vpop.permute.xlu0 %3272
    %v3274 = vperm.slane %v2252, 0
    %v3275 = vlaneseq
    %v3276 = vshrl.u32 %v3275, 7
    %3278 = vset.pattern.permute.xlu0 %v3276
    %3279 = vperm.xlu0 %3278, %v3274
    %v3280 = vpop.permute.xlu0 %3279
    %v3281 = vperm.slane %v2252, 1
    %v3282 = vlaneseq
    %v3283 = vshrl.u32 %v3282, 7
    %3285 = vset.pattern.permute.xlu0 %v3283
    %3286 = vperm.xlu0 %3285, %v3281
    %v3287 = vpop.permute.xlu0 %3286
    %v3288 = vperm.slane %v2252, 2
    %v3289 = vlaneseq
    %v3290 = vshrl.u32 %v3289, 7
    %3292 = vset.pattern.permute.xlu0 %v3290
    %3293 = vperm.xlu0 %3292, %v3288
    %v3294 = vpop.permute.xlu0 %3293
    %v3295 = vperm.slane %v2252, 3
    %v3296 = vlaneseq
    %v3297 = vshrl.u32 %v3296, 7
    %3299 = vset.pattern.permute.xlu0 %v3297
    %3300 = vperm.xlu0 %3299, %v3295
    %v3301 = vpop.permute.xlu0 %3300
    %v3302 = vperm.slane %v2252, 4
    %v3303 = vlaneseq
    %v3304 = vshrl.u32 %v3303, 7
    %3306 = vset.pattern.permute.xlu0 %v3304
    %3307 = vperm.xlu0 %3306, %v3302
    %v3308 = vpop.permute.xlu0 %3307
    %v3309 = vperm.slane %v2252, 5
    %v3310 = vlaneseq
    %v3311 = vshrl.u32 %v3310, 7
    %3313 = vset.pattern.permute.xlu0 %v3311
    %3314 = vperm.xlu0 %3313, %v3309
    %v3315 = vpop.permute.xlu0 %3314
    %v3316 = vperm.slane %v2252, 6
    %v3317 = vlaneseq
    %v3318 = vshrl.u32 %v3317, 7
    %3320 = vset.pattern.permute.xlu0 %v3318
    %3321 = vperm.xlu0 %3320, %v3316
    %v3322 = vpop.permute.xlu0 %3321
    %v3323 = vperm.slane %v2252, 7
    %v3324 = vlaneseq
    %v3325 = vshrl.u32 %v3324, 7
    %3327 = vset.pattern.permute.xlu0 %v3325
    %3328 = vperm.xlu0 %3327, %v3323
    %v3329 = vpop.permute.xlu0 %3328
    %v3330 = vperm.slane %v2253, 0
    %v3331 = vlaneseq
    %v3332 = vshrl.u32 %v3331, 7
    %3334 = vset.pattern.permute.xlu0 %v3332
    %3335 = vperm.xlu0 %3334, %v3330
    %v3336 = vpop.permute.xlu0 %3335
    %v3337 = vperm.slane %v2253, 1
    %v3338 = vlaneseq
    %v3339 = vshrl.u32 %v3338, 7
    %3341 = vset.pattern.permute.xlu0 %v3339
    %3342 = vperm.xlu0 %3341, %v3337
    %v3343 = vpop.permute.xlu0 %3342
    %v3344 = vperm.slane %v2253, 2
    %v3345 = vlaneseq
    %v3346 = vshrl.u32 %v3345, 7
    %3348 = vset.pattern.permute.xlu0 %v3346
    %3349 = vperm.xlu0 %3348, %v3344
    %v3350 = vpop.permute.xlu0 %3349
    %v3351 = vperm.slane %v2253, 3
    %v3352 = vlaneseq
    %v3353 = vshrl.u32 %v3352, 7
    %3355 = vset.pattern.permute.xlu0 %v3353
    %3356 = vperm.xlu0 %3355, %v3351
    %v3357 = vpop.permute.xlu0 %3356
    %v3358 = vperm.slane %v2253, 4
    %v3359 = vlaneseq
    %v3360 = vshrl.u32 %v3359, 7
    %3362 = vset.pattern.permute.xlu0 %v3360
    %3363 = vperm.xlu0 %3362, %v3358
    %v3364 = vpop.permute.xlu0 %3363
    %v3365 = vperm.slane %v2253, 5
    %v3366 = vlaneseq
    %v3367 = vshrl.u32 %v3366, 7
    %3369 = vset.pattern.permute.xlu0 %v3367
    %3370 = vperm.xlu0 %3369, %v3365
    %v3371 = vpop.permute.xlu0 %3370
    %v3372 = vperm.slane %v2253, 6
    %v3373 = vlaneseq
    %v3374 = vshrl.u32 %v3373, 7
    %3376 = vset.pattern.permute.xlu0 %v3374
    %3377 = vperm.xlu0 %3376, %v3372
    %v3378 = vpop.permute.xlu0 %3377
    %v3379 = vperm.slane %v2253, 7
    %v3380 = vlaneseq
    %v3381 = vshrl.u32 %v3380, 7
    %3383 = vset.pattern.permute.xlu0 %v3381
    %3384 = vperm.xlu0 %3383, %v3379
    %v3385 = vpop.permute.xlu0 %3384
    %v3386 = vperm.slane %v2254, 0
    %v3387 = vlaneseq
    %v3388 = vshrl.u32 %v3387, 7
    %3390 = vset.pattern.permute.xlu0 %v3388
    %3391 = vperm.xlu0 %3390, %v3386
    %v3392 = vpop.permute.xlu0 %3391
    %v3393 = vperm.slane %v2254, 1
    %v3394 = vlaneseq
    %v3395 = vshrl.u32 %v3394, 7
    %3397 = vset.pattern.permute.xlu0 %v3395
    %3398 = vperm.xlu0 %3397, %v3393
    %v3399 = vpop.permute.xlu0 %3398
    %v3400 = vperm.slane %v2254, 2
    %v3401 = vlaneseq
    %v3402 = vshrl.u32 %v3401, 7
    %3404 = vset.pattern.permute.xlu0 %v3402
    %3405 = vperm.xlu0 %3404, %v3400
    %v3406 = vpop.permute.xlu0 %3405
    %v3407 = vperm.slane %v2254, 3
    %v3408 = vlaneseq
    %v3409 = vshrl.u32 %v3408, 7
    %3411 = vset.pattern.permute.xlu0 %v3409
    %3412 = vperm.xlu0 %3411, %v3407
    %v3413 = vpop.permute.xlu0 %3412
    %v3414 = vperm.slane %v2254, 4
    %v3415 = vlaneseq
    %v3416 = vshrl.u32 %v3415, 7
    %3418 = vset.pattern.permute.xlu0 %v3416
    %3419 = vperm.xlu0 %3418, %v3414
    %v3420 = vpop.permute.xlu0 %3419
    %v3421 = vperm.slane %v2254, 5
    %v3422 = vlaneseq
    %v3423 = vshrl.u32 %v3422, 7
    %3425 = vset.pattern.permute.xlu0 %v3423
    %3426 = vperm.xlu0 %3425, %v3421
    %v3427 = vpop.permute.xlu0 %3426
    %v3428 = vperm.slane %v2254, 6
    %v3429 = vlaneseq
    %v3430 = vshrl.u32 %v3429, 7
    %3432 = vset.pattern.permute.xlu0 %v3430
    %3433 = vperm.xlu0 %3432, %v3428
    %v3434 = vpop.permute.xlu0 %3433
    %v3435 = vperm.slane %v2254, 7
    %v3436 = vlaneseq
    %v3437 = vshrl.u32 %v3436, 7
    %3439 = vset.pattern.permute.xlu0 %v3437
    %3440 = vperm.xlu0 %3439, %v3435
    %v3441 = vpop.permute.xlu0 %3440
    %v3442 = vperm.slane %v2255, 0
    %v3443 = vlaneseq
    %v3444 = vshrl.u32 %v3443, 7
    %3446 = vset.pattern.permute.xlu0 %v3444
    %3447 = vperm.xlu0 %3446, %v3442
    %v3448 = vpop.permute.xlu0 %3447
    %v3449 = vperm.slane %v2255, 1
    %v3450 = vlaneseq
    %v3451 = vshrl.u32 %v3450, 7
    %3453 = vset.pattern.permute.xlu0 %v3451
    %3454 = vperm.xlu0 %3453, %v3449
    %v3455 = vpop.permute.xlu0 %3454
    %v3456 = vperm.slane %v2255, 2
    %v3457 = vlaneseq
    %v3458 = vshrl.u32 %v3457, 7
    %3460 = vset.pattern.permute.xlu0 %v3458
    %3461 = vperm.xlu0 %3460, %v3456
    %v3462 = vpop.permute.xlu0 %3461
    %v3463 = vperm.slane %v2255, 3
    %v3464 = vlaneseq
    %v3465 = vshrl.u32 %v3464, 7
    %3467 = vset.pattern.permute.xlu0 %v3465
    %3468 = vperm.xlu0 %3467, %v3463
    %v3469 = vpop.permute.xlu0 %3468
    %v3470 = vperm.slane %v2255, 4
    %v3471 = vlaneseq
    %v3472 = vshrl.u32 %v3471, 7
    %3474 = vset.pattern.permute.xlu0 %v3472
    %3475 = vperm.xlu0 %3474, %v3470
    %v3476 = vpop.permute.xlu0 %3475
    %v3477 = vperm.slane %v2255, 5
    %v3478 = vlaneseq
    %v3479 = vshrl.u32 %v3478, 7
    %3481 = vset.pattern.permute.xlu0 %v3479
    %3482 = vperm.xlu0 %3481, %v3477
    %v3483 = vpop.permute.xlu0 %3482
    %v3484 = vperm.slane %v2255, 6
    %v3485 = vlaneseq
    %v3486 = vshrl.u32 %v3485, 7
    %3488 = vset.pattern.permute.xlu0 %v3486
    %3489 = vperm.xlu0 %3488, %v3484
    %v3490 = vpop.permute.xlu0 %3489
    %v3491 = vperm.slane %v2255, 7
    %v3492 = vlaneseq
    %v3493 = vshrl.u32 %v3492, 7
    %3495 = vset.pattern.permute.xlu0 %v3493
    %3496 = vperm.xlu0 %3495, %v3491
    %v3497 = vpop.permute.xlu0 %3496
    %v3498 = vperm.slane %v2256, 0
    %v3499 = vlaneseq
    %v3500 = vshrl.u32 %v3499, 7
    %3502 = vset.pattern.permute.xlu0 %v3500
    %3503 = vperm.xlu0 %3502, %v3498
    %v3504 = vpop.permute.xlu0 %3503
    %v3505 = vperm.slane %v2256, 1
    %v3506 = vlaneseq
    %v3507 = vshrl.u32 %v3506, 7
    %3509 = vset.pattern.permute.xlu0 %v3507
    %3510 = vperm.xlu0 %3509, %v3505
    %v3511 = vpop.permute.xlu0 %3510
    %v3512 = vperm.slane %v2256, 2
    %v3513 = vlaneseq
    %v3514 = vshrl.u32 %v3513, 7
    %3516 = vset.pattern.permute.xlu0 %v3514
    %3517 = vperm.xlu0 %3516, %v3512
    %v3518 = vpop.permute.xlu0 %3517
    %v3519 = vperm.slane %v2256, 3
    %v3520 = vlaneseq
    %v3521 = vshrl.u32 %v3520, 7
    %3523 = vset.pattern.permute.xlu0 %v3521
    %3524 = vperm.xlu0 %3523, %v3519
    %v3525 = vpop.permute.xlu0 %3524
    %v3526 = vperm.slane %v2256, 4
    %v3527 = vlaneseq
    %v3528 = vshrl.u32 %v3527, 7
    %3530 = vset.pattern.permute.xlu0 %v3528
    %3531 = vperm.xlu0 %3530, %v3526
    %v3532 = vpop.permute.xlu0 %3531
    %v3533 = vperm.slane %v2256, 5
    %v3534 = vlaneseq
    %v3535 = vshrl.u32 %v3534, 7
    %3537 = vset.pattern.permute.xlu0 %v3535
    %3538 = vperm.xlu0 %3537, %v3533
    %v3539 = vpop.permute.xlu0 %3538
    %v3540 = vperm.slane %v2256, 6
    %v3541 = vlaneseq
    %v3542 = vshrl.u32 %v3541, 7
    %3544 = vset.pattern.permute.xlu0 %v3542
    %3545 = vperm.xlu0 %3544, %v3540
    %v3546 = vpop.permute.xlu0 %3545
    %v3547 = vperm.slane %v2256, 7
    %v3548 = vlaneseq
    %v3549 = vshrl.u32 %v3548, 7
    %3551 = vset.pattern.permute.xlu0 %v3549
    %3552 = vperm.xlu0 %3551, %v3547
    %v3553 = vpop.permute.xlu0 %3552
    %v3554 = vperm.slane %v2257, 0
    %v3555 = vlaneseq
    %v3556 = vshrl.u32 %v3555, 7
    %3558 = vset.pattern.permute.xlu0 %v3556
    %3559 = vperm.xlu0 %3558, %v3554
    %v3560 = vpop.permute.xlu0 %3559
    %v3561 = vperm.slane %v2257, 1
    %v3562 = vlaneseq
    %v3563 = vshrl.u32 %v3562, 7
    %3565 = vset.pattern.permute.xlu0 %v3563
    %3566 = vperm.xlu0 %3565, %v3561
    %v3567 = vpop.permute.xlu0 %3566
    %v3568 = vperm.slane %v2257, 2
    %v3569 = vlaneseq
    %v3570 = vshrl.u32 %v3569, 7
    %3572 = vset.pattern.permute.xlu0 %v3570
    %3573 = vperm.xlu0 %3572, %v3568
    %v3574 = vpop.permute.xlu0 %3573
    %v3575 = vperm.slane %v2257, 3
    %v3576 = vlaneseq
    %v3577 = vshrl.u32 %v3576, 7
    %3579 = vset.pattern.permute.xlu0 %v3577
    %3580 = vperm.xlu0 %3579, %v3575
    %v3581 = vpop.permute.xlu0 %3580
    %v3582 = vperm.slane %v2257, 4
    %v3583 = vlaneseq
    %v3584 = vshrl.u32 %v3583, 7
    %3586 = vset.pattern.permute.xlu0 %v3584
    %3587 = vperm.xlu0 %3586, %v3582
    %v3588 = vpop.permute.xlu0 %3587
    %v3589 = vperm.slane %v2257, 5
    %v3590 = vlaneseq
    %v3591 = vshrl.u32 %v3590, 7
    %3593 = vset.pattern.permute.xlu0 %v3591
    %3594 = vperm.xlu0 %3593, %v3589
    %v3595 = vpop.permute.xlu0 %3594
    %v3596 = vperm.slane %v2257, 6
    %v3597 = vlaneseq
    %v3598 = vshrl.u32 %v3597, 7
    %3600 = vset.pattern.permute.xlu0 %v3598
    %3601 = vperm.xlu0 %3600, %v3596
    %v3602 = vpop.permute.xlu0 %3601
    %v3603 = vperm.slane %v2257, 7
    %v3604 = vlaneseq
    %v3605 = vshrl.u32 %v3604, 7
    %3607 = vset.pattern.permute.xlu0 %v3605
    %3608 = vperm.xlu0 %3607, %v3603
    %v3609 = vpop.permute.xlu0 %3608
    %v3610 = vperm.slane %v2258, 0
    %v3611 = vlaneseq
    %v3612 = vshrl.u32 %v3611, 7
    %3614 = vset.pattern.permute.xlu0 %v3612
    %3615 = vperm.xlu0 %3614, %v3610
    %v3616 = vpop.permute.xlu0 %3615
    %v3617 = vperm.slane %v2258, 1
    %v3618 = vlaneseq
    %v3619 = vshrl.u32 %v3618, 7
    %3621 = vset.pattern.permute.xlu0 %v3619
    %3622 = vperm.xlu0 %3621, %v3617
    %v3623 = vpop.permute.xlu0 %3622
    %v3624 = vperm.slane %v2258, 2
    %v3625 = vlaneseq
    %v3626 = vshrl.u32 %v3625, 7
    %3628 = vset.pattern.permute.xlu0 %v3626
    %3629 = vperm.xlu0 %3628, %v3624
    %v3630 = vpop.permute.xlu0 %3629
    %v3631 = vperm.slane %v2258, 3
    %v3632 = vlaneseq
    %v3633 = vshrl.u32 %v3632, 7
    %3635 = vset.pattern.permute.xlu0 %v3633
    %3636 = vperm.xlu0 %3635, %v3631
    %v3637 = vpop.permute.xlu0 %3636
    %v3638 = vperm.slane %v2258, 4
    %v3639 = vlaneseq
    %v3640 = vshrl.u32 %v3639, 7
    %3642 = vset.pattern.permute.xlu0 %v3640
    %3643 = vperm.xlu0 %3642, %v3638
    %v3644 = vpop.permute.xlu0 %3643
    %v3645 = vperm.slane %v2258, 5
    %v3646 = vlaneseq
    %v3647 = vshrl.u32 %v3646, 7
    %3649 = vset.pattern.permute.xlu0 %v3647
    %3650 = vperm.xlu0 %3649, %v3645
    %v3651 = vpop.permute.xlu0 %3650
    %v3652 = vperm.slane %v2258, 6
    %v3653 = vlaneseq
    %v3654 = vshrl.u32 %v3653, 7
    %3656 = vset.pattern.permute.xlu0 %v3654
    %3657 = vperm.xlu0 %3656, %v3652
    %v3658 = vpop.permute.xlu0 %3657
    %v3659 = vperm.slane %v2258, 7
    %v3660 = vlaneseq
    %v3661 = vshrl.u32 %v3660, 7
    %3663 = vset.pattern.permute.xlu0 %v3661
    %3664 = vperm.xlu0 %3663, %v3659
    %v3665 = vpop.permute.xlu0 %3664
    %v3666 = vperm.slane %v2259, 0
    %v3667 = vlaneseq
    %v3668 = vshrl.u32 %v3667, 7
    %3670 = vset.pattern.permute.xlu0 %v3668
    %3671 = vperm.xlu0 %3670, %v3666
    %v3672 = vpop.permute.xlu0 %3671
    %v3673 = vperm.slane %v2259, 1
    %v3674 = vlaneseq
    %v3675 = vshrl.u32 %v3674, 7
    %3677 = vset.pattern.permute.xlu0 %v3675
    %3678 = vperm.xlu0 %3677, %v3673
    %v3679 = vpop.permute.xlu0 %3678
    %v3680 = vperm.slane %v2259, 2
    %v3681 = vlaneseq
    %v3682 = vshrl.u32 %v3681, 7
    %3684 = vset.pattern.permute.xlu0 %v3682
    %3685 = vperm.xlu0 %3684, %v3680
    %v3686 = vpop.permute.xlu0 %3685
    %v3687 = vperm.slane %v2259, 3
    %v3688 = vlaneseq
    %v3689 = vshrl.u32 %v3688, 7
    %3691 = vset.pattern.permute.xlu0 %v3689
    %3692 = vperm.xlu0 %3691, %v3687
    %v3693 = vpop.permute.xlu0 %3692
    %v3694 = vperm.slane %v2259, 4
    %v3695 = vlaneseq
    %v3696 = vshrl.u32 %v3695, 7
    %3698 = vset.pattern.permute.xlu0 %v3696
    %3699 = vperm.xlu0 %3698, %v3694
    %v3700 = vpop.permute.xlu0 %3699
    %v3701 = vperm.slane %v2259, 5
    %v3702 = vlaneseq
    %v3703 = vshrl.u32 %v3702, 7
    %3705 = vset.pattern.permute.xlu0 %v3703
    %3706 = vperm.xlu0 %3705, %v3701
    %v3707 = vpop.permute.xlu0 %3706
    %v3708 = vperm.slane %v2259, 6
    %v3709 = vlaneseq
    %v3710 = vshrl.u32 %v3709, 7
    %3712 = vset.pattern.permute.xlu0 %v3710
    %3713 = vperm.xlu0 %3712, %v3708
    %v3714 = vpop.permute.xlu0 %3713
    %v3715 = vperm.slane %v2259, 7
    %v3716 = vlaneseq
    %v3717 = vshrl.u32 %v3716, 7
    %3719 = vset.pattern.permute.xlu0 %v3717
    %3720 = vperm.xlu0 %3719, %v3715
    %v3721 = vpop.permute.xlu0 %3720
    %v3722 = vperm.slane %v2260, 0
    %v3723 = vlaneseq
    %v3724 = vshrl.u32 %v3723, 7
    %3726 = vset.pattern.permute.xlu0 %v3724
    %3727 = vperm.xlu0 %3726, %v3722
    %v3728 = vpop.permute.xlu0 %3727
    %v3729 = vperm.slane %v2260, 1
    %v3730 = vlaneseq
    %v3731 = vshrl.u32 %v3730, 7
    %3733 = vset.pattern.permute.xlu0 %v3731
    %3734 = vperm.xlu0 %3733, %v3729
    %v3735 = vpop.permute.xlu0 %3734
    %v3736 = vperm.slane %v2260, 2
    %v3737 = vlaneseq
    %v3738 = vshrl.u32 %v3737, 7
    %3740 = vset.pattern.permute.xlu0 %v3738
    %3741 = vperm.xlu0 %3740, %v3736
    %v3742 = vpop.permute.xlu0 %3741
    %v3743 = vperm.slane %v2260, 3
    %v3744 = vlaneseq
    %v3745 = vshrl.u32 %v3744, 7
    %3747 = vset.pattern.permute.xlu0 %v3745
    %3748 = vperm.xlu0 %3747, %v3743
    %v3749 = vpop.permute.xlu0 %3748
    %v3750 = vperm.slane %v2260, 4
    %v3751 = vlaneseq
    %v3752 = vshrl.u32 %v3751, 7
    %3754 = vset.pattern.permute.xlu0 %v3752
    %3755 = vperm.xlu0 %3754, %v3750
    %v3756 = vpop.permute.xlu0 %3755
    %v3757 = vperm.slane %v2260, 5
    %v3758 = vlaneseq
    %v3759 = vshrl.u32 %v3758, 7
    %3761 = vset.pattern.permute.xlu0 %v3759
    %3762 = vperm.xlu0 %3761, %v3757
    %v3763 = vpop.permute.xlu0 %3762
    %v3764 = vperm.slane %v2260, 6
    %v3765 = vlaneseq
    %v3766 = vshrl.u32 %v3765, 7
    %3768 = vset.pattern.permute.xlu0 %v3766
    %3769 = vperm.xlu0 %3768, %v3764
    %v3770 = vpop.permute.xlu0 %3769
    %v3771 = vperm.slane %v2260, 7
    %v3772 = vlaneseq
    %v3773 = vshrl.u32 %v3772, 7
    %3775 = vset.pattern.permute.xlu0 %v3773
    %3776 = vperm.xlu0 %3775, %v3771
    %v3777 = vpop.permute.xlu0 %3776
    %v3778 = vperm.slane %v2261, 0
    %v3779 = vlaneseq
    %v3780 = vshrl.u32 %v3779, 7
    %3782 = vset.pattern.permute.xlu0 %v3780
    %3783 = vperm.xlu0 %3782, %v3778
    %v3784 = vpop.permute.xlu0 %3783
    %v3785 = vperm.slane %v2261, 1
    %v3786 = vlaneseq
    %v3787 = vshrl.u32 %v3786, 7
    %3789 = vset.pattern.permute.xlu0 %v3787
    %3790 = vperm.xlu0 %3789, %v3785
    %v3791 = vpop.permute.xlu0 %3790
    %v3792 = vperm.slane %v2261, 2
    %v3793 = vlaneseq
    %v3794 = vshrl.u32 %v3793, 7
    %3796 = vset.pattern.permute.xlu0 %v3794
    %3797 = vperm.xlu0 %3796, %v3792
    %v3798 = vpop.permute.xlu0 %3797
    %v3799 = vperm.slane %v2261, 3
    %v3800 = vlaneseq
    %v3801 = vshrl.u32 %v3800, 7
    %3803 = vset.pattern.permute.xlu0 %v3801
    %3804 = vperm.xlu0 %3803, %v3799
    %v3805 = vpop.permute.xlu0 %3804
    %v3806 = vperm.slane %v2261, 4
    %v3807 = vlaneseq
    %v3808 = vshrl.u32 %v3807, 7
    %3810 = vset.pattern.permute.xlu0 %v3808
    %3811 = vperm.xlu0 %3810, %v3806
    %v3812 = vpop.permute.xlu0 %3811
    %v3813 = vperm.slane %v2261, 5
    %v3814 = vlaneseq
    %v3815 = vshrl.u32 %v3814, 7
    %3817 = vset.pattern.permute.xlu0 %v3815
    %3818 = vperm.xlu0 %3817, %v3813
    %v3819 = vpop.permute.xlu0 %3818
    %v3820 = vperm.slane %v2261, 6
    %v3821 = vlaneseq
    %v3822 = vshrl.u32 %v3821, 7
    %3824 = vset.pattern.permute.xlu0 %v3822
    %3825 = vperm.xlu0 %3824, %v3820
    %v3826 = vpop.permute.xlu0 %3825
    %v3827 = vperm.slane %v2261, 7
    %v3828 = vlaneseq
    %v3829 = vshrl.u32 %v3828, 7
    %3831 = vset.pattern.permute.xlu0 %v3829
    %3832 = vperm.xlu0 %3831, %v3827
    %v3833 = vpop.permute.xlu0 %3832
    %v3834 = vperm.slane %v2262, 0
    %v3835 = vlaneseq
    %v3836 = vshrl.u32 %v3835, 7
    %3838 = vset.pattern.permute.xlu0 %v3836
    %3839 = vperm.xlu0 %3838, %v3834
    %v3840 = vpop.permute.xlu0 %3839
    %v3841 = vperm.slane %v2262, 1
    %v3842 = vlaneseq
    %v3843 = vshrl.u32 %v3842, 7
    %3845 = vset.pattern.permute.xlu0 %v3843
    %3846 = vperm.xlu0 %3845, %v3841
    %v3847 = vpop.permute.xlu0 %3846
    %v3848 = vperm.slane %v2262, 2
    %v3849 = vlaneseq
    %v3850 = vshrl.u32 %v3849, 7
    %3852 = vset.pattern.permute.xlu0 %v3850
    %3853 = vperm.xlu0 %3852, %v3848
    %v3854 = vpop.permute.xlu0 %3853
    %v3855 = vperm.slane %v2262, 3
    %v3856 = vlaneseq
    %v3857 = vshrl.u32 %v3856, 7
    %3859 = vset.pattern.permute.xlu0 %v3857
    %3860 = vperm.xlu0 %3859, %v3855
    %v3861 = vpop.permute.xlu0 %3860
    %v3862 = vperm.slane %v2262, 4
    %v3863 = vlaneseq
    %v3864 = vshrl.u32 %v3863, 7
    %3866 = vset.pattern.permute.xlu0 %v3864
    %3867 = vperm.xlu0 %3866, %v3862
    %v3868 = vpop.permute.xlu0 %3867
    %v3869 = vperm.slane %v2262, 5
    %v3870 = vlaneseq
    %v3871 = vshrl.u32 %v3870, 7
    %3873 = vset.pattern.permute.xlu0 %v3871
    %3874 = vperm.xlu0 %3873, %v3869
    %v3875 = vpop.permute.xlu0 %3874
    %v3876 = vperm.slane %v2262, 6
    %v3877 = vlaneseq
    %v3878 = vshrl.u32 %v3877, 7
    %3880 = vset.pattern.permute.xlu0 %v3878
    %3881 = vperm.xlu0 %3880, %v3876
    %v3882 = vpop.permute.xlu0 %3881
    %v3883 = vperm.slane %v2262, 7
    %v3884 = vlaneseq
    %v3885 = vshrl.u32 %v3884, 7
    %3887 = vset.pattern.permute.xlu0 %v3885
    %3888 = vperm.xlu0 %3887, %v3883
    %v3889 = vpop.permute.xlu0 %3888
    %v3890 = vperm.slane %v2263, 0
    %v3891 = vlaneseq
    %v3892 = vshrl.u32 %v3891, 7
    %3894 = vset.pattern.permute.xlu0 %v3892
    %3895 = vperm.xlu0 %3894, %v3890
    %v3896 = vpop.permute.xlu0 %3895
    %v3897 = vperm.slane %v2263, 1
    %v3898 = vlaneseq
    %v3899 = vshrl.u32 %v3898, 7
    %3901 = vset.pattern.permute.xlu0 %v3899
    %3902 = vperm.xlu0 %3901, %v3897
    %v3903 = vpop.permute.xlu0 %3902
    %v3904 = vperm.slane %v2263, 2
    %v3905 = vlaneseq
    %v3906 = vshrl.u32 %v3905, 7
    %3908 = vset.pattern.permute.xlu0 %v3906
    %3909 = vperm.xlu0 %3908, %v3904
    %v3910 = vpop.permute.xlu0 %3909
    %v3911 = vperm.slane %v2263, 3
    %v3912 = vlaneseq
    %v3913 = vshrl.u32 %v3912, 7
    %3915 = vset.pattern.permute.xlu0 %v3913
    %3916 = vperm.xlu0 %3915, %v3911
    %v3917 = vpop.permute.xlu0 %3916
    %v3918 = vperm.slane %v2263, 4
    %v3919 = vlaneseq
    %v3920 = vshrl.u32 %v3919, 7
    %3922 = vset.pattern.permute.xlu0 %v3920
    %3923 = vperm.xlu0 %3922, %v3918
    %v3924 = vpop.permute.xlu0 %3923
    %v3925 = vperm.slane %v2263, 5
    %v3926 = vlaneseq
    %v3927 = vshrl.u32 %v3926, 7
    %3929 = vset.pattern.permute.xlu0 %v3927
    %3930 = vperm.xlu0 %3929, %v3925
    %v3931 = vpop.permute.xlu0 %3930
    %v3932 = vperm.slane %v2263, 6
    %v3933 = vlaneseq
    %v3934 = vshrl.u32 %v3933, 7
    %3936 = vset.pattern.permute.xlu0 %v3934
    %3937 = vperm.xlu0 %3936, %v3932
    %v3938 = vpop.permute.xlu0 %3937
    %v3939 = vperm.slane %v2263, 7
    %v3940 = vlaneseq
    %v3941 = vshrl.u32 %v3940, 7
    %3943 = vset.pattern.permute.xlu0 %v3941
    %3944 = vperm.xlu0 %3943, %v3939
    %v3945 = vpop.permute.xlu0 %3944
    %v3946 = vperm.slane %v2264, 0
    %v3947 = vlaneseq
    %v3948 = vshrl.u32 %v3947, 7
    %3950 = vset.pattern.permute.xlu0 %v3948
    %3951 = vperm.xlu0 %3950, %v3946
    %v3952 = vpop.permute.xlu0 %3951
    %v3953 = vperm.slane %v2264, 1
    %v3954 = vlaneseq
    %v3955 = vshrl.u32 %v3954, 7
    %3957 = vset.pattern.permute.xlu0 %v3955
    %3958 = vperm.xlu0 %3957, %v3953
    %v3959 = vpop.permute.xlu0 %3958
    %v3960 = vperm.slane %v2264, 2
    %v3961 = vlaneseq
    %v3962 = vshrl.u32 %v3961, 7
    %3964 = vset.pattern.permute.xlu0 %v3962
    %3965 = vperm.xlu0 %3964, %v3960
    %v3966 = vpop.permute.xlu0 %3965
    %v3967 = vperm.slane %v2264, 3
    %v3968 = vlaneseq
    %v3969 = vshrl.u32 %v3968, 7
    %3971 = vset.pattern.permute.xlu0 %v3969
    %3972 = vperm.xlu0 %3971, %v3967
    %v3973 = vpop.permute.xlu0 %3972
    %v3974 = vperm.slane %v2264, 4
    %v3975 = vlaneseq
    %v3976 = vshrl.u32 %v3975, 7
    %3978 = vset.pattern.permute.xlu0 %v3976
    %3979 = vperm.xlu0 %3978, %v3974
    %v3980 = vpop.permute.xlu0 %3979
    %v3981 = vperm.slane %v2264, 5
    %v3982 = vlaneseq
    %v3983 = vshrl.u32 %v3982, 7
    %3985 = vset.pattern.permute.xlu0 %v3983
    %3986 = vperm.xlu0 %3985, %v3981
    %v3987 = vpop.permute.xlu0 %3986
    %v3988 = vperm.slane %v2264, 6
    %v3989 = vlaneseq
    %v3990 = vshrl.u32 %v3989, 7
    %3992 = vset.pattern.permute.xlu0 %v3990
    %3993 = vperm.xlu0 %3992, %v3988
    %v3994 = vpop.permute.xlu0 %3993
    %v3995 = vperm.slane %v2264, 7
    %v3996 = vlaneseq
    %v3997 = vshrl.u32 %v3996, 7
    %3999 = vset.pattern.permute.xlu0 %v3997
    %4000 = vperm.xlu0 %3999, %v3995
    %v4001 = vpop.permute.xlu0 %4000
    %v4002 = vperm.slane %v2265, 0
    %v4003 = vlaneseq
    %v4004 = vshrl.u32 %v4003, 7
    %4006 = vset.pattern.permute.xlu0 %v4004
    %4007 = vperm.xlu0 %4006, %v4002
    %v4008 = vpop.permute.xlu0 %4007
    %v4009 = vperm.slane %v2265, 1
    %v4010 = vlaneseq
    %v4011 = vshrl.u32 %v4010, 7
    %4013 = vset.pattern.permute.xlu0 %v4011
    %4014 = vperm.xlu0 %4013, %v4009
    %v4015 = vpop.permute.xlu0 %4014
    %v4016 = vperm.slane %v2265, 2
    %v4017 = vlaneseq
    %v4018 = vshrl.u32 %v4017, 7
    %4020 = vset.pattern.permute.xlu0 %v4018
    %4021 = vperm.xlu0 %4020, %v4016
    %v4022 = vpop.permute.xlu0 %4021
    %v4023 = vperm.slane %v2265, 3
    %v4024 = vlaneseq
    %v4025 = vshrl.u32 %v4024, 7
    %4027 = vset.pattern.permute.xlu0 %v4025
    %4028 = vperm.xlu0 %4027, %v4023
    %v4029 = vpop.permute.xlu0 %4028
    %v4030 = vperm.slane %v2265, 4
    %v4031 = vlaneseq
    %v4032 = vshrl.u32 %v4031, 7
    %4034 = vset.pattern.permute.xlu0 %v4032
    %4035 = vperm.xlu0 %4034, %v4030
    %v4036 = vpop.permute.xlu0 %4035
    %v4037 = vperm.slane %v2265, 5
    %v4038 = vlaneseq
    %v4039 = vshrl.u32 %v4038, 7
    %4041 = vset.pattern.permute.xlu0 %v4039
    %4042 = vperm.xlu0 %4041, %v4037
    %v4043 = vpop.permute.xlu0 %4042
    %v4044 = vperm.slane %v2265, 6
    %v4045 = vlaneseq
    %v4046 = vshrl.u32 %v4045, 7
    %4048 = vset.pattern.permute.xlu0 %v4046
    %4049 = vperm.xlu0 %4048, %v4044
    %v4050 = vpop.permute.xlu0 %4049
    %v4051 = vperm.slane %v2265, 7
    %v4052 = vlaneseq
    %v4053 = vshrl.u32 %v4052, 7
    %4055 = vset.pattern.permute.xlu0 %v4053
    %4056 = vperm.xlu0 %4055, %v4051
    %v4057 = vpop.permute.xlu0 %4056
    %v4058 = vmul.f32 %v14, %v2272
    %v4059 = vmul.f32 %v15, %v2279
    %v4060 = vmul.f32 %v16, %v2286
    %v4061 = vmul.f32 %v17, %v2293
    %v4062 = vmul.f32 %v18, %v2300
    %v4063 = vmul.f32 %v19, %v2307
    %v4064 = vmul.f32 %v20, %v2314
    %v4065 = vmul.f32 %v21, %v2321
    %v4066 = vmul.f32 %v22, %v2328
    %v4067 = vmul.f32 %v23, %v2335
    %v4068 = vmul.f32 %v24, %v2342
    %v4069 = vmul.f32 %v25, %v2349
    %v4070 = vmul.f32 %v26, %v2356
    %v4071 = vmul.f32 %v27, %v2363
    %v4072 = vmul.f32 %v28, %v2370
    %v4073 = vmul.f32 %v29, %v2377
    %v4074 = vmul.f32 %v30, %v2384
    %v4075 = vmul.f32 %v31, %v2391
    %v4076 = vmul.f32 %v32, %v2398
    %v4077 = vmul.f32 %v33, %v2405
    %v4078 = vmul.f32 %v34, %v2412
    %v4079 = vmul.f32 %v35, %v2419
    %v4080 = vmul.f32 %v36, %v2426
    %v4081 = vmul.f32 %v37, %v2433
    %v4082 = vmul.f32 %v38, %v2440
    %v4083 = vmul.f32 %v39, %v2447
    %v4084 = vmul.f32 %v40, %v2454
    %v4085 = vmul.f32 %v41, %v2461
    %v4086 = vmul.f32 %v42, %v2468
    %v4087 = vmul.f32 %v43, %v2475
    %v4088 = vmul.f32 %v44, %v2482
    %v4089 = vmul.f32 %v45, %v2489
    %v4090 = vmul.f32 %v46, %v2496
    %v4091 = vmul.f32 %v47, %v2503
    %v4092 = vmul.f32 %v48, %v2510
    %v4093 = vmul.f32 %v49, %v2517
    %v4094 = vmul.f32 %v50, %v2524
    %v4095 = vmul.f32 %v51, %v2531
    %v4096 = vmul.f32 %v52, %v2538
    %v4097 = vmul.f32 %v53, %v2545
    %v4098 = vmul.f32 %v54, %v2552
    %v4099 = vmul.f32 %v55, %v2559
    %v4100 = vmul.f32 %v56, %v2566
    %v4101 = vmul.f32 %v57, %v2573
    %v4102 = vmul.f32 %v58, %v2580
    %v4103 = vmul.f32 %v59, %v2587
    %v4104 = vmul.f32 %v60, %v2594
    %v4105 = vmul.f32 %v61, %v2601
    %v4106 = vmul.f32 %v62, %v2608
    %v4107 = vmul.f32 %v63, %v2615
    %v4108 = vmul.f32 %v64, %v2622
    %v4109 = vmul.f32 %v65, %v2629
    %v4110 = vmul.f32 %v66, %v2636
    %v4111 = vmul.f32 %v67, %v2643
    %v4112 = vmul.f32 %v68, %v2650
    %v4113 = vmul.f32 %v69, %v2657
    %v4114 = vmul.f32 %v70, %v2664
    %v4115 = vmul.f32 %v71, %v2671
    %v4116 = vmul.f32 %v72, %v2678
    %v4117 = vmul.f32 %v73, %v2685
    %v4118 = vmul.f32 %v74, %v2692
    %v4119 = vmul.f32 %v75, %v2699
    %v4120 = vmul.f32 %v76, %v2706
    %v4121 = vmul.f32 %v77, %v2713
    %v4122 = vmul.f32 %v78, %v2720
    %v4123 = vmul.f32 %v79, %v2727
    %v4124 = vmul.f32 %v80, %v2734
    %v4125 = vmul.f32 %v81, %v2741
    %v4126 = vmul.f32 %v82, %v2748
    %v4127 = vmul.f32 %v83, %v2755
    %v4128 = vmul.f32 %v84, %v2762
    %v4129 = vmul.f32 %v85, %v2769
    %v4130 = vmul.f32 %v86, %v2776
    %v4131 = vmul.f32 %v87, %v2783
    %v4132 = vmul.f32 %v88, %v2790
    %v4133 = vmul.f32 %v89, %v2797
    %v4134 = vmul.f32 %v90, %v2804
    %v4135 = vmul.f32 %v91, %v2811
    %v4136 = vmul.f32 %v92, %v2818
    %v4137 = vmul.f32 %v93, %v2825
    %v4138 = vmul.f32 %v94, %v2832
    %v4139 = vmul.f32 %v95, %v2839
    %v4140 = vmul.f32 %v96, %v2846
    %v4141 = vmul.f32 %v97, %v2853
    %v4142 = vmul.f32 %v98, %v2860
    %v4143 = vmul.f32 %v99, %v2867
    %v4144 = vmul.f32 %v100, %v2874
    %v4145 = vmul.f32 %v101, %v2881
    %v4146 = vmul.f32 %v102, %v2888
    %v4147 = vmul.f32 %v103, %v2895
    %v4148 = vmul.f32 %v104, %v2902
    %v4149 = vmul.f32 %v105, %v2909
    %v4150 = vmul.f32 %v106, %v2916
    %v4151 = vmul.f32 %v107, %v2923
    %v4152 = vmul.f32 %v108, %v2930
    %v4153 = vmul.f32 %v109, %v2937
    %v4154 = vmul.f32 %v110, %v2944
    %v4155 = vmul.f32 %v111, %v2951
    %v4156 = vmul.f32 %v112, %v2958
    %v4157 = vmul.f32 %v113, %v2965
    %v4158 = vmul.f32 %v114, %v2972
    %v4159 = vmul.f32 %v115, %v2979
    %v4160 = vmul.f32 %v116, %v2986
    %v4161 = vmul.f32 %v117, %v2993
    %v4162 = vmul.f32 %v118, %v3000
    %v4163 = vmul.f32 %v119, %v3007
    %v4164 = vmul.f32 %v120, %v3014
    %v4165 = vmul.f32 %v121, %v3021
    %v4166 = vmul.f32 %v122, %v3028
    %v4167 = vmul.f32 %v123, %v3035
    %v4168 = vmul.f32 %v124, %v3042
    %v4169 = vmul.f32 %v125, %v3049
    %v4170 = vmul.f32 %v126, %v3056
    %v4171 = vmul.f32 %v127, %v3063
    %v4172 = vmul.f32 %v128, %v3070
    %v4173 = vmul.f32 %v129, %v3077
    %v4174 = vmul.f32 %v130, %v3084
    %v4175 = vmul.f32 %v131, %v3091
    %v4176 = vmul.f32 %v132, %v3098
    %v4177 = vmul.f32 %v133, %v3105
    %v4178 = vmul.f32 %v134, %v3112
    %v4179 = vmul.f32 %v135, %v3119
    %v4180 = vmul.f32 %v136, %v3126
    %v4181 = vmul.f32 %v137, %v3133
    %v4182 = vmul.f32 %v138, %v3140
    %v4183 = vmul.f32 %v139, %v3147
    %v4184 = vmul.f32 %v140, %v3154
    %v4185 = vmul.f32 %v141, %v3161
    %v4186 = vmul.f32 %v142, %v3168
    %v4187 = vmul.f32 %v143, %v3175
    %v4188 = vmul.f32 %v144, %v3182
    %v4189 = vmul.f32 %v145, %v3189
    %v4190 = vmul.f32 %v146, %v3196
    %v4191 = vmul.f32 %v147, %v3203
    %v4192 = vmul.f32 %v148, %v3210
    %v4193 = vmul.f32 %v149, %v3217
    %v4194 = vmul.f32 %v150, %v3224
    %v4195 = vmul.f32 %v151, %v3231
    %v4196 = vmul.f32 %v152, %v3238
    %v4197 = vmul.f32 %v153, %v3245
    %v4198 = vmul.f32 %v154, %v3252
    %v4199 = vmul.f32 %v155, %v3259
    %v4200 = vmul.f32 %v156, %v3266
    %v4201 = vmul.f32 %v157, %v3273
    %v4202 = vmul.f32 %v158, %v3280
    %v4203 = vmul.f32 %v159, %v3287
    %v4204 = vmul.f32 %v160, %v3294
    %v4205 = vmul.f32 %v161, %v3301
    %v4206 = vmul.f32 %v162, %v3308
    %v4207 = vmul.f32 %v163, %v3315
    %v4208 = vmul.f32 %v164, %v3322
    %v4209 = vmul.f32 %v165, %v3329
    %v4210 = vmul.f32 %v166, %v3336
    %v4211 = vmul.f32 %v167, %v3343
    %v4212 = vmul.f32 %v168, %v3350
    %v4213 = vmul.f32 %v169, %v3357
    %v4214 = vmul.f32 %v170, %v3364
    %v4215 = vmul.f32 %v171, %v3371
    %v4216 = vmul.f32 %v172, %v3378
    %v4217 = vmul.f32 %v173, %v3385
    %v4218 = vmul.f32 %v174, %v3392
    %v4219 = vmul.f32 %v175, %v3399
    %v4220 = vmul.f32 %v176, %v3406
    %v4221 = vmul.f32 %v177, %v3413
    %v4222 = vmul.f32 %v178, %v3420
    %v4223 = vmul.f32 %v179, %v3427
    %v4224 = vmul.f32 %v180, %v3434
    %v4225 = vmul.f32 %v181, %v3441
    %v4226 = vmul.f32 %v182, %v3448
    %v4227 = vmul.f32 %v183, %v3455
    %v4228 = vmul.f32 %v184, %v3462
    %v4229 = vmul.f32 %v185, %v3469
    %v4230 = vmul.f32 %v186, %v3476
    %v4231 = vmul.f32 %v187, %v3483
    %v4232 = vmul.f32 %v188, %v3490
    %v4233 = vmul.f32 %v189, %v3497
    %v4234 = vmul.f32 %v190, %v3504
    %v4235 = vmul.f32 %v191, %v3511
    %v4236 = vmul.f32 %v192, %v3518
    %v4237 = vmul.f32 %v193, %v3525
    %v4238 = vmul.f32 %v194, %v3532
    %v4239 = vmul.f32 %v195, %v3539
    %v4240 = vmul.f32 %v196, %v3546
    %v4241 = vmul.f32 %v197, %v3553
    %v4242 = vmul.f32 %v198, %v3560
    %v4243 = vmul.f32 %v199, %v3567
    %v4244 = vmul.f32 %v200, %v3574
    %v4245 = vmul.f32 %v201, %v3581
    %v4246 = vmul.f32 %v202, %v3588
    %v4247 = vmul.f32 %v203, %v3595
    %v4248 = vmul.f32 %v204, %v3602
    %v4249 = vmul.f32 %v205, %v3609
    %v4250 = vmul.f32 %v206, %v3616
    %v4251 = vmul.f32 %v207, %v3623
    %v4252 = vmul.f32 %v208, %v3630
    %v4253 = vmul.f32 %v209, %v3637
    %v4254 = vmul.f32 %v210, %v3644
    %v4255 = vmul.f32 %v211, %v3651
    %v4256 = vmul.f32 %v212, %v3658
    %v4257 = vmul.f32 %v213, %v3665
    %v4258 = vmul.f32 %v214, %v3672
    %v4259 = vmul.f32 %v215, %v3679
    %v4260 = vmul.f32 %v216, %v3686
    %v4261 = vmul.f32 %v217, %v3693
    %v4262 = vmul.f32 %v218, %v3700
    %v4263 = vmul.f32 %v219, %v3707
    %v4264 = vmul.f32 %v220, %v3714
    %v4265 = vmul.f32 %v221, %v3721
    %v4266 = vmul.f32 %v222, %v3728
    %v4267 = vmul.f32 %v223, %v3735
    %v4268 = vmul.f32 %v224, %v3742
    %v4269 = vmul.f32 %v225, %v3749
    %v4270 = vmul.f32 %v226, %v3756
    %v4271 = vmul.f32 %v227, %v3763
    %v4272 = vmul.f32 %v228, %v3770
    %v4273 = vmul.f32 %v229, %v3777
    %v4274 = vmul.f32 %v230, %v3784
    %v4275 = vmul.f32 %v231, %v3791
    %v4276 = vmul.f32 %v232, %v3798
    %v4277 = vmul.f32 %v233, %v3805
    %v4278 = vmul.f32 %v234, %v3812
    %v4279 = vmul.f32 %v235, %v3819
    %v4280 = vmul.f32 %v236, %v3826
    %v4281 = vmul.f32 %v237, %v3833
    %v4282 = vmul.f32 %v238, %v3840
    %v4283 = vmul.f32 %v239, %v3847
    %v4284 = vmul.f32 %v240, %v3854
    %v4285 = vmul.f32 %v241, %v3861
    %v4286 = vmul.f32 %v242, %v3868
    %v4287 = vmul.f32 %v243, %v3875
    %v4288 = vmul.f32 %v244, %v3882
    %v4289 = vmul.f32 %v245, %v3889
    %v4290 = vmul.f32 %v246, %v3896
    %v4291 = vmul.f32 %v247, %v3903
    %v4292 = vmul.f32 %v248, %v3910
    %v4293 = vmul.f32 %v249, %v3917
    %v4294 = vmul.f32 %v250, %v3924
    %v4295 = vmul.f32 %v251, %v3931
    %v4296 = vmul.f32 %v252, %v3938
    %v4297 = vmul.f32 %v253, %v3945
    %v4298 = vmul.f32 %v254, %v3952
    %v4299 = vmul.f32 %v255, %v3959
    %v4300 = vmul.f32 %v256, %v3966
    %v4301 = vmul.f32 %v257, %v3973
    %v4302 = vmul.f32 %v258, %v3980
    %v4303 = vmul.f32 %v259, %v3987
    %v4304 = vmul.f32 %v260, %v3994
    %v4305 = vmul.f32 %v261, %v4001
    %v4306 = vmul.f32 %v262, %v4008
    %v4307 = vmul.f32 %v263, %v4015
    %v4308 = vmul.f32 %v264, %v4022
    %v4309 = vmul.f32 %v265, %v4029
    %v4310 = vmul.f32 %v266, %v4036
    %v4311 = vmul.f32 %v267, %v4043
    %v4312 = vmul.f32 %v268, %v4050
    %v4313 = vmul.f32 %v269, %v4057
    %v4314 = vsel %vm530, %v4058, 0.0
    %v4315 = vrot.slane %v4314, 4
    %v4316 = vadd.f32 %v4314, %v4315
    %v4317 = vrot.slane %v4316, 2
    %v4318 = vadd.f32 %v4316, %v4317
    %v4319 = vrot.slane %v4318, 1
    %v4320 = vadd.f32 %v4318, %v4319
    %v4321 = vsel %vm530, %v4059, 0.0
    %v4322 = vrot.slane %v4321, 4
    %v4323 = vadd.f32 %v4321, %v4322
    %v4324 = vrot.slane %v4323, 2
    %v4325 = vadd.f32 %v4323, %v4324
    %v4326 = vrot.slane %v4325, 1
    %v4327 = vadd.f32 %v4325, %v4326
    %v4328 = vsel %vm530, %v4060, 0.0
    %v4329 = vrot.slane %v4328, 4
    %v4330 = vadd.f32 %v4328, %v4329
    %v4331 = vrot.slane %v4330, 2
    %v4332 = vadd.f32 %v4330, %v4331
    %v4333 = vrot.slane %v4332, 1
    %v4334 = vadd.f32 %v4332, %v4333
    %v4335 = vsel %vm530, %v4061, 0.0
    %v4336 = vrot.slane %v4335, 4
    %v4337 = vadd.f32 %v4335, %v4336
    %v4338 = vrot.slane %v4337, 2
    %v4339 = vadd.f32 %v4337, %v4338
    %v4340 = vrot.slane %v4339, 1
    %v4341 = vadd.f32 %v4339, %v4340
    %v4342 = vsel %vm530, %v4062, 0.0
    %v4343 = vrot.slane %v4342, 4
    %v4344 = vadd.f32 %v4342, %v4343
    %v4345 = vrot.slane %v4344, 2
    %v4346 = vadd.f32 %v4344, %v4345
    %v4347 = vrot.slane %v4346, 1
    %v4348 = vadd.f32 %v4346, %v4347
    %v4349 = vsel %vm530, %v4063, 0.0
    %v4350 = vrot.slane %v4349, 4
    %v4351 = vadd.f32 %v4349, %v4350
    %v4352 = vrot.slane %v4351, 2
    %v4353 = vadd.f32 %v4351, %v4352
    %v4354 = vrot.slane %v4353, 1
    %v4355 = vadd.f32 %v4353, %v4354
    %v4356 = vsel %vm530, %v4064, 0.0
    %v4357 = vrot.slane %v4356, 4
    %v4358 = vadd.f32 %v4356, %v4357
    %v4359 = vrot.slane %v4358, 2
    %v4360 = vadd.f32 %v4358, %v4359
    %v4361 = vrot.slane %v4360, 1
    %v4362 = vadd.f32 %v4360, %v4361
    %v4363 = vsel %vm530, %v4065, 0.0
    %v4364 = vrot.slane %v4363, 4
    %v4365 = vadd.f32 %v4363, %v4364
    %v4366 = vrot.slane %v4365, 2
    %v4367 = vadd.f32 %v4365, %v4366
    %v4368 = vrot.slane %v4367, 1
    %v4369 = vadd.f32 %v4367, %v4368
    %v4370 = vsel %vm530, %v4066, 0.0
    %v4371 = vrot.slane %v4370, 4
    %v4372 = vadd.f32 %v4370, %v4371
    %v4373 = vrot.slane %v4372, 2
    %v4374 = vadd.f32 %v4372, %v4373
    %v4375 = vrot.slane %v4374, 1
    %v4376 = vadd.f32 %v4374, %v4375
    %v4377 = vsel %vm530, %v4067, 0.0
    %v4378 = vrot.slane %v4377, 4
    %v4379 = vadd.f32 %v4377, %v4378
    %v4380 = vrot.slane %v4379, 2
    %v4381 = vadd.f32 %v4379, %v4380
    %v4382 = vrot.slane %v4381, 1
    %v4383 = vadd.f32 %v4381, %v4382
    %v4384 = vsel %vm530, %v4068, 0.0
    %v4385 = vrot.slane %v4384, 4
    %v4386 = vadd.f32 %v4384, %v4385
    %v4387 = vrot.slane %v4386, 2
    %v4388 = vadd.f32 %v4386, %v4387
    %v4389 = vrot.slane %v4388, 1
    %v4390 = vadd.f32 %v4388, %v4389
    %v4391 = vsel %vm530, %v4069, 0.0
    %v4392 = vrot.slane %v4391, 4
    %v4393 = vadd.f32 %v4391, %v4392
    %v4394 = vrot.slane %v4393, 2
    %v4395 = vadd.f32 %v4393, %v4394
    %v4396 = vrot.slane %v4395, 1
    %v4397 = vadd.f32 %v4395, %v4396
    %v4398 = vsel %vm530, %v4070, 0.0
    %v4399 = vrot.slane %v4398, 4
    %v4400 = vadd.f32 %v4398, %v4399
    %v4401 = vrot.slane %v4400, 2
    %v4402 = vadd.f32 %v4400, %v4401
    %v4403 = vrot.slane %v4402, 1
    %v4404 = vadd.f32 %v4402, %v4403
    %v4405 = vsel %vm530, %v4071, 0.0
    %v4406 = vrot.slane %v4405, 4
    %v4407 = vadd.f32 %v4405, %v4406
    %v4408 = vrot.slane %v4407, 2
    %v4409 = vadd.f32 %v4407, %v4408
    %v4410 = vrot.slane %v4409, 1
    %v4411 = vadd.f32 %v4409, %v4410
    %v4412 = vsel %vm530, %v4072, 0.0
    %v4413 = vrot.slane %v4412, 4
    %v4414 = vadd.f32 %v4412, %v4413
    %v4415 = vrot.slane %v4414, 2
    %v4416 = vadd.f32 %v4414, %v4415
    %v4417 = vrot.slane %v4416, 1
    %v4418 = vadd.f32 %v4416, %v4417
    %v4419 = vsel %vm530, %v4073, 0.0
    %v4420 = vrot.slane %v4419, 4
    %v4421 = vadd.f32 %v4419, %v4420
    %v4422 = vrot.slane %v4421, 2
    %v4423 = vadd.f32 %v4421, %v4422
    %v4424 = vrot.slane %v4423, 1
    %v4425 = vadd.f32 %v4423, %v4424
    %v4426 = vsel %vm530, %v4074, 0.0
    %v4427 = vrot.slane %v4426, 4
    %v4428 = vadd.f32 %v4426, %v4427
    %v4429 = vrot.slane %v4428, 2
    %v4430 = vadd.f32 %v4428, %v4429
    %v4431 = vrot.slane %v4430, 1
    %v4432 = vadd.f32 %v4430, %v4431
    %v4433 = vsel %vm530, %v4075, 0.0
    %v4434 = vrot.slane %v4433, 4
    %v4435 = vadd.f32 %v4433, %v4434
    %v4436 = vrot.slane %v4435, 2
    %v4437 = vadd.f32 %v4435, %v4436
    %v4438 = vrot.slane %v4437, 1
    %v4439 = vadd.f32 %v4437, %v4438
    %v4440 = vsel %vm530, %v4076, 0.0
    %v4441 = vrot.slane %v4440, 4
    %v4442 = vadd.f32 %v4440, %v4441
    %v4443 = vrot.slane %v4442, 2
    %v4444 = vadd.f32 %v4442, %v4443
    %v4445 = vrot.slane %v4444, 1
    %v4446 = vadd.f32 %v4444, %v4445
    %v4447 = vsel %vm530, %v4077, 0.0
    %v4448 = vrot.slane %v4447, 4
    %v4449 = vadd.f32 %v4447, %v4448
    %v4450 = vrot.slane %v4449, 2
    %v4451 = vadd.f32 %v4449, %v4450
    %v4452 = vrot.slane %v4451, 1
    %v4453 = vadd.f32 %v4451, %v4452
    %v4454 = vsel %vm530, %v4078, 0.0
    %v4455 = vrot.slane %v4454, 4
    %v4456 = vadd.f32 %v4454, %v4455
    %v4457 = vrot.slane %v4456, 2
    %v4458 = vadd.f32 %v4456, %v4457
    %v4459 = vrot.slane %v4458, 1
    %v4460 = vadd.f32 %v4458, %v4459
    %v4461 = vsel %vm530, %v4079, 0.0
    %v4462 = vrot.slane %v4461, 4
    %v4463 = vadd.f32 %v4461, %v4462
    %v4464 = vrot.slane %v4463, 2
    %v4465 = vadd.f32 %v4463, %v4464
    %v4466 = vrot.slane %v4465, 1
    %v4467 = vadd.f32 %v4465, %v4466
    %v4468 = vsel %vm530, %v4080, 0.0
    %v4469 = vrot.slane %v4468, 4
    %v4470 = vadd.f32 %v4468, %v4469
    %v4471 = vrot.slane %v4470, 2
    %v4472 = vadd.f32 %v4470, %v4471
    %v4473 = vrot.slane %v4472, 1
    %v4474 = vadd.f32 %v4472, %v4473
    %v4475 = vsel %vm530, %v4081, 0.0
    %v4476 = vrot.slane %v4475, 4
    %v4477 = vadd.f32 %v4475, %v4476
    %v4478 = vrot.slane %v4477, 2
    %v4479 = vadd.f32 %v4477, %v4478
    %v4480 = vrot.slane %v4479, 1
    %v4481 = vadd.f32 %v4479, %v4480
    %v4482 = vsel %vm530, %v4082, 0.0
    %v4483 = vrot.slane %v4482, 4
    %v4484 = vadd.f32 %v4482, %v4483
    %v4485 = vrot.slane %v4484, 2
    %v4486 = vadd.f32 %v4484, %v4485
    %v4487 = vrot.slane %v4486, 1
    %v4488 = vadd.f32 %v4486, %v4487
    %v4489 = vsel %vm530, %v4083, 0.0
    %v4490 = vrot.slane %v4489, 4
    %v4491 = vadd.f32 %v4489, %v4490
    %v4492 = vrot.slane %v4491, 2
    %v4493 = vadd.f32 %v4491, %v4492
    %v4494 = vrot.slane %v4493, 1
    %v4495 = vadd.f32 %v4493, %v4494
    %v4496 = vsel %vm530, %v4084, 0.0
    %v4497 = vrot.slane %v4496, 4
    %v4498 = vadd.f32 %v4496, %v4497
    %v4499 = vrot.slane %v4498, 2
    %v4500 = vadd.f32 %v4498, %v4499
    %v4501 = vrot.slane %v4500, 1
    %v4502 = vadd.f32 %v4500, %v4501
    %v4503 = vsel %vm530, %v4085, 0.0
    %v4504 = vrot.slane %v4503, 4
    %v4505 = vadd.f32 %v4503, %v4504
    %v4506 = vrot.slane %v4505, 2
    %v4507 = vadd.f32 %v4505, %v4506
    %v4508 = vrot.slane %v4507, 1
    %v4509 = vadd.f32 %v4507, %v4508
    %v4510 = vsel %vm530, %v4086, 0.0
    %v4511 = vrot.slane %v4510, 4
    %v4512 = vadd.f32 %v4510, %v4511
    %v4513 = vrot.slane %v4512, 2
    %v4514 = vadd.f32 %v4512, %v4513
    %v4515 = vrot.slane %v4514, 1
    %v4516 = vadd.f32 %v4514, %v4515
    %v4517 = vsel %vm530, %v4087, 0.0
    %v4518 = vrot.slane %v4517, 4
    %v4519 = vadd.f32 %v4517, %v4518
    %v4520 = vrot.slane %v4519, 2
    %v4521 = vadd.f32 %v4519, %v4520
    %v4522 = vrot.slane %v4521, 1
    %v4523 = vadd.f32 %v4521, %v4522
    %v4524 = vsel %vm530, %v4088, 0.0
    %v4525 = vrot.slane %v4524, 4
    %v4526 = vadd.f32 %v4524, %v4525
    %v4527 = vrot.slane %v4526, 2
    %v4528 = vadd.f32 %v4526, %v4527
    %v4529 = vrot.slane %v4528, 1
    %v4530 = vadd.f32 %v4528, %v4529
    %v4531 = vsel %vm530, %v4089, 0.0
    %v4532 = vrot.slane %v4531, 4
    %v4533 = vadd.f32 %v4531, %v4532
    %v4534 = vrot.slane %v4533, 2
    %v4535 = vadd.f32 %v4533, %v4534
    %v4536 = vrot.slane %v4535, 1
    %v4537 = vadd.f32 %v4535, %v4536
    %v4538 = vsel %vm530, %v4090, 0.0
    %v4539 = vrot.slane %v4538, 4
    %v4540 = vadd.f32 %v4538, %v4539
    %v4541 = vrot.slane %v4540, 2
    %v4542 = vadd.f32 %v4540, %v4541
    %v4543 = vrot.slane %v4542, 1
    %v4544 = vadd.f32 %v4542, %v4543
    %v4545 = vsel %vm530, %v4091, 0.0
    %v4546 = vrot.slane %v4545, 4
    %v4547 = vadd.f32 %v4545, %v4546
    %v4548 = vrot.slane %v4547, 2
    %v4549 = vadd.f32 %v4547, %v4548
    %v4550 = vrot.slane %v4549, 1
    %v4551 = vadd.f32 %v4549, %v4550
    %v4552 = vsel %vm530, %v4092, 0.0
    %v4553 = vrot.slane %v4552, 4
    %v4554 = vadd.f32 %v4552, %v4553
    %v4555 = vrot.slane %v4554, 2
    %v4556 = vadd.f32 %v4554, %v4555
    %v4557 = vrot.slane %v4556, 1
    %v4558 = vadd.f32 %v4556, %v4557
    %v4559 = vsel %vm530, %v4093, 0.0
    %v4560 = vrot.slane %v4559, 4
    %v4561 = vadd.f32 %v4559, %v4560
    %v4562 = vrot.slane %v4561, 2
    %v4563 = vadd.f32 %v4561, %v4562
    %v4564 = vrot.slane %v4563, 1
    %v4565 = vadd.f32 %v4563, %v4564
    %v4566 = vsel %vm530, %v4094, 0.0
    %v4567 = vrot.slane %v4566, 4
    %v4568 = vadd.f32 %v4566, %v4567
    %v4569 = vrot.slane %v4568, 2
    %v4570 = vadd.f32 %v4568, %v4569
    %v4571 = vrot.slane %v4570, 1
    %v4572 = vadd.f32 %v4570, %v4571
    %v4573 = vsel %vm530, %v4095, 0.0
    %v4574 = vrot.slane %v4573, 4
    %v4575 = vadd.f32 %v4573, %v4574
    %v4576 = vrot.slane %v4575, 2
    %v4577 = vadd.f32 %v4575, %v4576
    %v4578 = vrot.slane %v4577, 1
    %v4579 = vadd.f32 %v4577, %v4578
    %v4580 = vsel %vm530, %v4096, 0.0
    %v4581 = vrot.slane %v4580, 4
    %v4582 = vadd.f32 %v4580, %v4581
    %v4583 = vrot.slane %v4582, 2
    %v4584 = vadd.f32 %v4582, %v4583
    %v4585 = vrot.slane %v4584, 1
    %v4586 = vadd.f32 %v4584, %v4585
    %v4587 = vsel %vm530, %v4097, 0.0
    %v4588 = vrot.slane %v4587, 4
    %v4589 = vadd.f32 %v4587, %v4588
    %v4590 = vrot.slane %v4589, 2
    %v4591 = vadd.f32 %v4589, %v4590
    %v4592 = vrot.slane %v4591, 1
    %v4593 = vadd.f32 %v4591, %v4592
    %v4594 = vsel %vm530, %v4098, 0.0
    %v4595 = vrot.slane %v4594, 4
    %v4596 = vadd.f32 %v4594, %v4595
    %v4597 = vrot.slane %v4596, 2
    %v4598 = vadd.f32 %v4596, %v4597
    %v4599 = vrot.slane %v4598, 1
    %v4600 = vadd.f32 %v4598, %v4599
    %v4601 = vsel %vm530, %v4099, 0.0
    %v4602 = vrot.slane %v4601, 4
    %v4603 = vadd.f32 %v4601, %v4602
    %v4604 = vrot.slane %v4603, 2
    %v4605 = vadd.f32 %v4603, %v4604
    %v4606 = vrot.slane %v4605, 1
    %v4607 = vadd.f32 %v4605, %v4606
    %v4608 = vsel %vm530, %v4100, 0.0
    %v4609 = vrot.slane %v4608, 4
    %v4610 = vadd.f32 %v4608, %v4609
    %v4611 = vrot.slane %v4610, 2
    %v4612 = vadd.f32 %v4610, %v4611
    %v4613 = vrot.slane %v4612, 1
    %v4614 = vadd.f32 %v4612, %v4613
    %v4615 = vsel %vm530, %v4101, 0.0
    %v4616 = vrot.slane %v4615, 4
    %v4617 = vadd.f32 %v4615, %v4616
    %v4618 = vrot.slane %v4617, 2
    %v4619 = vadd.f32 %v4617, %v4618
    %v4620 = vrot.slane %v4619, 1
    %v4621 = vadd.f32 %v4619, %v4620
    %v4622 = vsel %vm530, %v4102, 0.0
    %v4623 = vrot.slane %v4622, 4
    %v4624 = vadd.f32 %v4622, %v4623
    %v4625 = vrot.slane %v4624, 2
    %v4626 = vadd.f32 %v4624, %v4625
    %v4627 = vrot.slane %v4626, 1
    %v4628 = vadd.f32 %v4626, %v4627
    %v4629 = vsel %vm530, %v4103, 0.0
    %v4630 = vrot.slane %v4629, 4
    %v4631 = vadd.f32 %v4629, %v4630
    %v4632 = vrot.slane %v4631, 2
    %v4633 = vadd.f32 %v4631, %v4632
    %v4634 = vrot.slane %v4633, 1
    %v4635 = vadd.f32 %v4633, %v4634
    %v4636 = vsel %vm530, %v4104, 0.0
    %v4637 = vrot.slane %v4636, 4
    %v4638 = vadd.f32 %v4636, %v4637
    %v4639 = vrot.slane %v4638, 2
    %v4640 = vadd.f32 %v4638, %v4639
    %v4641 = vrot.slane %v4640, 1
    %v4642 = vadd.f32 %v4640, %v4641
    %v4643 = vsel %vm530, %v4105, 0.0
    %v4644 = vrot.slane %v4643, 4
    %v4645 = vadd.f32 %v4643, %v4644
    %v4646 = vrot.slane %v4645, 2
    %v4647 = vadd.f32 %v4645, %v4646
    %v4648 = vrot.slane %v4647, 1
    %v4649 = vadd.f32 %v4647, %v4648
    %v4650 = vsel %vm530, %v4106, 0.0
    %v4651 = vrot.slane %v4650, 4
    %v4652 = vadd.f32 %v4650, %v4651
    %v4653 = vrot.slane %v4652, 2
    %v4654 = vadd.f32 %v4652, %v4653
    %v4655 = vrot.slane %v4654, 1
    %v4656 = vadd.f32 %v4654, %v4655
    %v4657 = vsel %vm530, %v4107, 0.0
    %v4658 = vrot.slane %v4657, 4
    %v4659 = vadd.f32 %v4657, %v4658
    %v4660 = vrot.slane %v4659, 2
    %v4661 = vadd.f32 %v4659, %v4660
    %v4662 = vrot.slane %v4661, 1
    %v4663 = vadd.f32 %v4661, %v4662
    %v4664 = vsel %vm530, %v4108, 0.0
    %v4665 = vrot.slane %v4664, 4
    %v4666 = vadd.f32 %v4664, %v4665
    %v4667 = vrot.slane %v4666, 2
    %v4668 = vadd.f32 %v4666, %v4667
    %v4669 = vrot.slane %v4668, 1
    %v4670 = vadd.f32 %v4668, %v4669
    %v4671 = vsel %vm530, %v4109, 0.0
    %v4672 = vrot.slane %v4671, 4
    %v4673 = vadd.f32 %v4671, %v4672
    %v4674 = vrot.slane %v4673, 2
    %v4675 = vadd.f32 %v4673, %v4674
    %v4676 = vrot.slane %v4675, 1
    %v4677 = vadd.f32 %v4675, %v4676
    %v4678 = vsel %vm530, %v4110, 0.0
    %v4679 = vrot.slane %v4678, 4
    %v4680 = vadd.f32 %v4678, %v4679
    %v4681 = vrot.slane %v4680, 2
    %v4682 = vadd.f32 %v4680, %v4681
    %v4683 = vrot.slane %v4682, 1
    %v4684 = vadd.f32 %v4682, %v4683
    %v4685 = vsel %vm530, %v4111, 0.0
    %v4686 = vrot.slane %v4685, 4
    %v4687 = vadd.f32 %v4685, %v4686
    %v4688 = vrot.slane %v4687, 2
    %v4689 = vadd.f32 %v4687, %v4688
    %v4690 = vrot.slane %v4689, 1
    %v4691 = vadd.f32 %v4689, %v4690
    %v4692 = vsel %vm530, %v4112, 0.0
    %v4693 = vrot.slane %v4692, 4
    %v4694 = vadd.f32 %v4692, %v4693
    %v4695 = vrot.slane %v4694, 2
    %v4696 = vadd.f32 %v4694, %v4695
    %v4697 = vrot.slane %v4696, 1
    %v4698 = vadd.f32 %v4696, %v4697
    %v4699 = vsel %vm530, %v4113, 0.0
    %v4700 = vrot.slane %v4699, 4
    %v4701 = vadd.f32 %v4699, %v4700
    %v4702 = vrot.slane %v4701, 2
    %v4703 = vadd.f32 %v4701, %v4702
    %v4704 = vrot.slane %v4703, 1
    %v4705 = vadd.f32 %v4703, %v4704
    %v4706 = vsel %vm530, %v4114, 0.0
    %v4707 = vrot.slane %v4706, 4
    %v4708 = vadd.f32 %v4706, %v4707
    %v4709 = vrot.slane %v4708, 2
    %v4710 = vadd.f32 %v4708, %v4709
    %v4711 = vrot.slane %v4710, 1
    %v4712 = vadd.f32 %v4710, %v4711
    %v4713 = vsel %vm530, %v4115, 0.0
    %v4714 = vrot.slane %v4713, 4
    %v4715 = vadd.f32 %v4713, %v4714
    %v4716 = vrot.slane %v4715, 2
    %v4717 = vadd.f32 %v4715, %v4716
    %v4718 = vrot.slane %v4717, 1
    %v4719 = vadd.f32 %v4717, %v4718
    %v4720 = vsel %vm530, %v4116, 0.0
    %v4721 = vrot.slane %v4720, 4
    %v4722 = vadd.f32 %v4720, %v4721
    %v4723 = vrot.slane %v4722, 2
    %v4724 = vadd.f32 %v4722, %v4723
    %v4725 = vrot.slane %v4724, 1
    %v4726 = vadd.f32 %v4724, %v4725
    %v4727 = vsel %vm530, %v4117, 0.0
    %v4728 = vrot.slane %v4727, 4
    %v4729 = vadd.f32 %v4727, %v4728
    %v4730 = vrot.slane %v4729, 2
    %v4731 = vadd.f32 %v4729, %v4730
    %v4732 = vrot.slane %v4731, 1
    %v4733 = vadd.f32 %v4731, %v4732
    %v4734 = vsel %vm530, %v4118, 0.0
    %v4735 = vrot.slane %v4734, 4
    %v4736 = vadd.f32 %v4734, %v4735
    %v4737 = vrot.slane %v4736, 2
    %v4738 = vadd.f32 %v4736, %v4737
    %v4739 = vrot.slane %v4738, 1
    %v4740 = vadd.f32 %v4738, %v4739
    %v4741 = vsel %vm530, %v4119, 0.0
    %v4742 = vrot.slane %v4741, 4
    %v4743 = vadd.f32 %v4741, %v4742
    %v4744 = vrot.slane %v4743, 2
    %v4745 = vadd.f32 %v4743, %v4744
    %v4746 = vrot.slane %v4745, 1
    %v4747 = vadd.f32 %v4745, %v4746
    %v4748 = vsel %vm530, %v4120, 0.0
    %v4749 = vrot.slane %v4748, 4
    %v4750 = vadd.f32 %v4748, %v4749
    %v4751 = vrot.slane %v4750, 2
    %v4752 = vadd.f32 %v4750, %v4751
    %v4753 = vrot.slane %v4752, 1
    %v4754 = vadd.f32 %v4752, %v4753
    %v4755 = vsel %vm530, %v4121, 0.0
    %v4756 = vrot.slane %v4755, 4
    %v4757 = vadd.f32 %v4755, %v4756
    %v4758 = vrot.slane %v4757, 2
    %v4759 = vadd.f32 %v4757, %v4758
    %v4760 = vrot.slane %v4759, 1
    %v4761 = vadd.f32 %v4759, %v4760
    %v4762 = vsel %vm530, %v4122, 0.0
    %v4763 = vrot.slane %v4762, 4
    %v4764 = vadd.f32 %v4762, %v4763
    %v4765 = vrot.slane %v4764, 2
    %v4766 = vadd.f32 %v4764, %v4765
    %v4767 = vrot.slane %v4766, 1
    %v4768 = vadd.f32 %v4766, %v4767
    %v4769 = vsel %vm530, %v4123, 0.0
    %v4770 = vrot.slane %v4769, 4
    %v4771 = vadd.f32 %v4769, %v4770
    %v4772 = vrot.slane %v4771, 2
    %v4773 = vadd.f32 %v4771, %v4772
    %v4774 = vrot.slane %v4773, 1
    %v4775 = vadd.f32 %v4773, %v4774
    %v4776 = vsel %vm530, %v4124, 0.0
    %v4777 = vrot.slane %v4776, 4
    %v4778 = vadd.f32 %v4776, %v4777
    %v4779 = vrot.slane %v4778, 2
    %v4780 = vadd.f32 %v4778, %v4779
    %v4781 = vrot.slane %v4780, 1
    %v4782 = vadd.f32 %v4780, %v4781
    %v4783 = vsel %vm530, %v4125, 0.0
    %v4784 = vrot.slane %v4783, 4
    %v4785 = vadd.f32 %v4783, %v4784
    %v4786 = vrot.slane %v4785, 2
    %v4787 = vadd.f32 %v4785, %v4786
    %v4788 = vrot.slane %v4787, 1
    %v4789 = vadd.f32 %v4787, %v4788
    %v4790 = vsel %vm530, %v4126, 0.0
    %v4791 = vrot.slane %v4790, 4
    %v4792 = vadd.f32 %v4790, %v4791
    %v4793 = vrot.slane %v4792, 2
    %v4794 = vadd.f32 %v4792, %v4793
    %v4795 = vrot.slane %v4794, 1
    %v4796 = vadd.f32 %v4794, %v4795
    %v4797 = vsel %vm530, %v4127, 0.0
    %v4798 = vrot.slane %v4797, 4
    %v4799 = vadd.f32 %v4797, %v4798
    %v4800 = vrot.slane %v4799, 2
    %v4801 = vadd.f32 %v4799, %v4800
    %v4802 = vrot.slane %v4801, 1
    %v4803 = vadd.f32 %v4801, %v4802
    %v4804 = vsel %vm530, %v4128, 0.0
    %v4805 = vrot.slane %v4804, 4
    %v4806 = vadd.f32 %v4804, %v4805
    %v4807 = vrot.slane %v4806, 2
    %v4808 = vadd.f32 %v4806, %v4807
    %v4809 = vrot.slane %v4808, 1
    %v4810 = vadd.f32 %v4808, %v4809
    %v4811 = vsel %vm530, %v4129, 0.0
    %v4812 = vrot.slane %v4811, 4
    %v4813 = vadd.f32 %v4811, %v4812
    %v4814 = vrot.slane %v4813, 2
    %v4815 = vadd.f32 %v4813, %v4814
    %v4816 = vrot.slane %v4815, 1
    %v4817 = vadd.f32 %v4815, %v4816
    %v4818 = vsel %vm530, %v4130, 0.0
    %v4819 = vrot.slane %v4818, 4
    %v4820 = vadd.f32 %v4818, %v4819
    %v4821 = vrot.slane %v4820, 2
    %v4822 = vadd.f32 %v4820, %v4821
    %v4823 = vrot.slane %v4822, 1
    %v4824 = vadd.f32 %v4822, %v4823
    %v4825 = vsel %vm530, %v4131, 0.0
    %v4826 = vrot.slane %v4825, 4
    %v4827 = vadd.f32 %v4825, %v4826
    %v4828 = vrot.slane %v4827, 2
    %v4829 = vadd.f32 %v4827, %v4828
    %v4830 = vrot.slane %v4829, 1
    %v4831 = vadd.f32 %v4829, %v4830
    %v4832 = vsel %vm530, %v4132, 0.0
    %v4833 = vrot.slane %v4832, 4
    %v4834 = vadd.f32 %v4832, %v4833
    %v4835 = vrot.slane %v4834, 2
    %v4836 = vadd.f32 %v4834, %v4835
    %v4837 = vrot.slane %v4836, 1
    %v4838 = vadd.f32 %v4836, %v4837
    %v4839 = vsel %vm530, %v4133, 0.0
    %v4840 = vrot.slane %v4839, 4
    %v4841 = vadd.f32 %v4839, %v4840
    %v4842 = vrot.slane %v4841, 2
    %v4843 = vadd.f32 %v4841, %v4842
    %v4844 = vrot.slane %v4843, 1
    %v4845 = vadd.f32 %v4843, %v4844
    %v4846 = vsel %vm530, %v4134, 0.0
    %v4847 = vrot.slane %v4846, 4
    %v4848 = vadd.f32 %v4846, %v4847
    %v4849 = vrot.slane %v4848, 2
    %v4850 = vadd.f32 %v4848, %v4849
    %v4851 = vrot.slane %v4850, 1
    %v4852 = vadd.f32 %v4850, %v4851
    %v4853 = vsel %vm530, %v4135, 0.0
    %v4854 = vrot.slane %v4853, 4
    %v4855 = vadd.f32 %v4853, %v4854
    %v4856 = vrot.slane %v4855, 2
    %v4857 = vadd.f32 %v4855, %v4856
    %v4858 = vrot.slane %v4857, 1
    %v4859 = vadd.f32 %v4857, %v4858
    %v4860 = vsel %vm530, %v4136, 0.0
    %v4861 = vrot.slane %v4860, 4
    %v4862 = vadd.f32 %v4860, %v4861
    %v4863 = vrot.slane %v4862, 2
    %v4864 = vadd.f32 %v4862, %v4863
    %v4865 = vrot.slane %v4864, 1
    %v4866 = vadd.f32 %v4864, %v4865
    %v4867 = vsel %vm530, %v4137, 0.0
    %v4868 = vrot.slane %v4867, 4
    %v4869 = vadd.f32 %v4867, %v4868
    %v4870 = vrot.slane %v4869, 2
    %v4871 = vadd.f32 %v4869, %v4870
    %v4872 = vrot.slane %v4871, 1
    %v4873 = vadd.f32 %v4871, %v4872
    %v4874 = vsel %vm530, %v4138, 0.0
    %v4875 = vrot.slane %v4874, 4
    %v4876 = vadd.f32 %v4874, %v4875
    %v4877 = vrot.slane %v4876, 2
    %v4878 = vadd.f32 %v4876, %v4877
    %v4879 = vrot.slane %v4878, 1
    %v4880 = vadd.f32 %v4878, %v4879
    %v4881 = vsel %vm530, %v4139, 0.0
    %v4882 = vrot.slane %v4881, 4
    %v4883 = vadd.f32 %v4881, %v4882
    %v4884 = vrot.slane %v4883, 2
    %v4885 = vadd.f32 %v4883, %v4884
    %v4886 = vrot.slane %v4885, 1
    %v4887 = vadd.f32 %v4885, %v4886
    %v4888 = vsel %vm530, %v4140, 0.0
    %v4889 = vrot.slane %v4888, 4
    %v4890 = vadd.f32 %v4888, %v4889
    %v4891 = vrot.slane %v4890, 2
    %v4892 = vadd.f32 %v4890, %v4891
    %v4893 = vrot.slane %v4892, 1
    %v4894 = vadd.f32 %v4892, %v4893
    %v4895 = vsel %vm530, %v4141, 0.0
    %v4896 = vrot.slane %v4895, 4
    %v4897 = vadd.f32 %v4895, %v4896
    %v4898 = vrot.slane %v4897, 2
    %v4899 = vadd.f32 %v4897, %v4898
    %v4900 = vrot.slane %v4899, 1
    %v4901 = vadd.f32 %v4899, %v4900
    %v4902 = vsel %vm530, %v4142, 0.0
    %v4903 = vrot.slane %v4902, 4
    %v4904 = vadd.f32 %v4902, %v4903
    %v4905 = vrot.slane %v4904, 2
    %v4906 = vadd.f32 %v4904, %v4905
    %v4907 = vrot.slane %v4906, 1
    %v4908 = vadd.f32 %v4906, %v4907
    %v4909 = vsel %vm530, %v4143, 0.0
    %v4910 = vrot.slane %v4909, 4
    %v4911 = vadd.f32 %v4909, %v4910
    %v4912 = vrot.slane %v4911, 2
    %v4913 = vadd.f32 %v4911, %v4912
    %v4914 = vrot.slane %v4913, 1
    %v4915 = vadd.f32 %v4913, %v4914
    %v4916 = vsel %vm530, %v4144, 0.0
    %v4917 = vrot.slane %v4916, 4
    %v4918 = vadd.f32 %v4916, %v4917
    %v4919 = vrot.slane %v4918, 2
    %v4920 = vadd.f32 %v4918, %v4919
    %v4921 = vrot.slane %v4920, 1
    %v4922 = vadd.f32 %v4920, %v4921
    %v4923 = vsel %vm530, %v4145, 0.0
    %v4924 = vrot.slane %v4923, 4
    %v4925 = vadd.f32 %v4923, %v4924
    %v4926 = vrot.slane %v4925, 2
    %v4927 = vadd.f32 %v4925, %v4926
    %v4928 = vrot.slane %v4927, 1
    %v4929 = vadd.f32 %v4927, %v4928
    %v4930 = vsel %vm530, %v4146, 0.0
    %v4931 = vrot.slane %v4930, 4
    %v4932 = vadd.f32 %v4930, %v4931
    %v4933 = vrot.slane %v4932, 2
    %v4934 = vadd.f32 %v4932, %v4933
    %v4935 = vrot.slane %v4934, 1
    %v4936 = vadd.f32 %v4934, %v4935
    %v4937 = vsel %vm530, %v4147, 0.0
    %v4938 = vrot.slane %v4937, 4
    %v4939 = vadd.f32 %v4937, %v4938
    %v4940 = vrot.slane %v4939, 2
    %v4941 = vadd.f32 %v4939, %v4940
    %v4942 = vrot.slane %v4941, 1
    %v4943 = vadd.f32 %v4941, %v4942
    %v4944 = vsel %vm530, %v4148, 0.0
    %v4945 = vrot.slane %v4944, 4
    %v4946 = vadd.f32 %v4944, %v4945
    %v4947 = vrot.slane %v4946, 2
    %v4948 = vadd.f32 %v4946, %v4947
    %v4949 = vrot.slane %v4948, 1
    %v4950 = vadd.f32 %v4948, %v4949
    %v4951 = vsel %vm530, %v4149, 0.0
    %v4952 = vrot.slane %v4951, 4
    %v4953 = vadd.f32 %v4951, %v4952
    %v4954 = vrot.slane %v4953, 2
    %v4955 = vadd.f32 %v4953, %v4954
    %v4956 = vrot.slane %v4955, 1
    %v4957 = vadd.f32 %v4955, %v4956
    %v4958 = vsel %vm530, %v4150, 0.0
    %v4959 = vrot.slane %v4958, 4
    %v4960 = vadd.f32 %v4958, %v4959
    %v4961 = vrot.slane %v4960, 2
    %v4962 = vadd.f32 %v4960, %v4961
    %v4963 = vrot.slane %v4962, 1
    %v4964 = vadd.f32 %v4962, %v4963
    %v4965 = vsel %vm530, %v4151, 0.0
    %v4966 = vrot.slane %v4965, 4
    %v4967 = vadd.f32 %v4965, %v4966
    %v4968 = vrot.slane %v4967, 2
    %v4969 = vadd.f32 %v4967, %v4968
    %v4970 = vrot.slane %v4969, 1
    %v4971 = vadd.f32 %v4969, %v4970
    %v4972 = vsel %vm530, %v4152, 0.0
    %v4973 = vrot.slane %v4972, 4
    %v4974 = vadd.f32 %v4972, %v4973
    %v4975 = vrot.slane %v4974, 2
    %v4976 = vadd.f32 %v4974, %v4975
    %v4977 = vrot.slane %v4976, 1
    %v4978 = vadd.f32 %v4976, %v4977
    %v4979 = vsel %vm530, %v4153, 0.0
    %v4980 = vrot.slane %v4979, 4
    %v4981 = vadd.f32 %v4979, %v4980
    %v4982 = vrot.slane %v4981, 2
    %v4983 = vadd.f32 %v4981, %v4982
    %v4984 = vrot.slane %v4983, 1
    %v4985 = vadd.f32 %v4983, %v4984
    %v4986 = vsel %vm530, %v4154, 0.0
    %v4987 = vrot.slane %v4986, 4
    %v4988 = vadd.f32 %v4986, %v4987
    %v4989 = vrot.slane %v4988, 2
    %v4990 = vadd.f32 %v4988, %v4989
    %v4991 = vrot.slane %v4990, 1
    %v4992 = vadd.f32 %v4990, %v4991
    %v4993 = vsel %vm530, %v4155, 0.0
    %v4994 = vrot.slane %v4993, 4
    %v4995 = vadd.f32 %v4993, %v4994
    %v4996 = vrot.slane %v4995, 2
    %v4997 = vadd.f32 %v4995, %v4996
    %v4998 = vrot.slane %v4997, 1
    %v4999 = vadd.f32 %v4997, %v4998
    %v5000 = vsel %vm530, %v4156, 0.0
    %v5001 = vrot.slane %v5000, 4
    %v5002 = vadd.f32 %v5000, %v5001
    %v5003 = vrot.slane %v5002, 2
    %v5004 = vadd.f32 %v5002, %v5003
    %v5005 = vrot.slane %v5004, 1
    %v5006 = vadd.f32 %v5004, %v5005
    %v5007 = vsel %vm530, %v4157, 0.0
    %v5008 = vrot.slane %v5007, 4
    %v5009 = vadd.f32 %v5007, %v5008
    %v5010 = vrot.slane %v5009, 2
    %v5011 = vadd.f32 %v5009, %v5010
    %v5012 = vrot.slane %v5011, 1
    %v5013 = vadd.f32 %v5011, %v5012
    %v5014 = vsel %vm530, %v4158, 0.0
    %v5015 = vrot.slane %v5014, 4
    %v5016 = vadd.f32 %v5014, %v5015
    %v5017 = vrot.slane %v5016, 2
    %v5018 = vadd.f32 %v5016, %v5017
    %v5019 = vrot.slane %v5018, 1
    %v5020 = vadd.f32 %v5018, %v5019
    %v5021 = vsel %vm530, %v4159, 0.0
    %v5022 = vrot.slane %v5021, 4
    %v5023 = vadd.f32 %v5021, %v5022
    %v5024 = vrot.slane %v5023, 2
    %v5025 = vadd.f32 %v5023, %v5024
    %v5026 = vrot.slane %v5025, 1
    %v5027 = vadd.f32 %v5025, %v5026
    %v5028 = vsel %vm530, %v4160, 0.0
    %v5029 = vrot.slane %v5028, 4
    %v5030 = vadd.f32 %v5028, %v5029
    %v5031 = vrot.slane %v5030, 2
    %v5032 = vadd.f32 %v5030, %v5031
    %v5033 = vrot.slane %v5032, 1
    %v5034 = vadd.f32 %v5032, %v5033
    %v5035 = vsel %vm530, %v4161, 0.0
    %v5036 = vrot.slane %v5035, 4
    %v5037 = vadd.f32 %v5035, %v5036
    %v5038 = vrot.slane %v5037, 2
    %v5039 = vadd.f32 %v5037, %v5038
    %v5040 = vrot.slane %v5039, 1
    %v5041 = vadd.f32 %v5039, %v5040
    %v5042 = vsel %vm530, %v4162, 0.0
    %v5043 = vrot.slane %v5042, 4
    %v5044 = vadd.f32 %v5042, %v5043
    %v5045 = vrot.slane %v5044, 2
    %v5046 = vadd.f32 %v5044, %v5045
    %v5047 = vrot.slane %v5046, 1
    %v5048 = vadd.f32 %v5046, %v5047
    %v5049 = vsel %vm530, %v4163, 0.0
    %v5050 = vrot.slane %v5049, 4
    %v5051 = vadd.f32 %v5049, %v5050
    %v5052 = vrot.slane %v5051, 2
    %v5053 = vadd.f32 %v5051, %v5052
    %v5054 = vrot.slane %v5053, 1
    %v5055 = vadd.f32 %v5053, %v5054
    %v5056 = vsel %vm530, %v4164, 0.0
    %v5057 = vrot.slane %v5056, 4
    %v5058 = vadd.f32 %v5056, %v5057
    %v5059 = vrot.slane %v5058, 2
    %v5060 = vadd.f32 %v5058, %v5059
    %v5061 = vrot.slane %v5060, 1
    %v5062 = vadd.f32 %v5060, %v5061
    %v5063 = vsel %vm530, %v4165, 0.0
    %v5064 = vrot.slane %v5063, 4
    %v5065 = vadd.f32 %v5063, %v5064
    %v5066 = vrot.slane %v5065, 2
    %v5067 = vadd.f32 %v5065, %v5066
    %v5068 = vrot.slane %v5067, 1
    %v5069 = vadd.f32 %v5067, %v5068
    %v5070 = vsel %vm530, %v4166, 0.0
    %v5071 = vrot.slane %v5070, 4
    %v5072 = vadd.f32 %v5070, %v5071
    %v5073 = vrot.slane %v5072, 2
    %v5074 = vadd.f32 %v5072, %v5073
    %v5075 = vrot.slane %v5074, 1
    %v5076 = vadd.f32 %v5074, %v5075
    %v5077 = vsel %vm530, %v4167, 0.0
    %v5078 = vrot.slane %v5077, 4
    %v5079 = vadd.f32 %v5077, %v5078
    %v5080 = vrot.slane %v5079, 2
    %v5081 = vadd.f32 %v5079, %v5080
    %v5082 = vrot.slane %v5081, 1
    %v5083 = vadd.f32 %v5081, %v5082
    %v5084 = vsel %vm530, %v4168, 0.0
    %v5085 = vrot.slane %v5084, 4
    %v5086 = vadd.f32 %v5084, %v5085
    %v5087 = vrot.slane %v5086, 2
    %v5088 = vadd.f32 %v5086, %v5087
    %v5089 = vrot.slane %v5088, 1
    %v5090 = vadd.f32 %v5088, %v5089
    %v5091 = vsel %vm530, %v4169, 0.0
    %v5092 = vrot.slane %v5091, 4
    %v5093 = vadd.f32 %v5091, %v5092
    %v5094 = vrot.slane %v5093, 2
    %v5095 = vadd.f32 %v5093, %v5094
    %v5096 = vrot.slane %v5095, 1
    %v5097 = vadd.f32 %v5095, %v5096
    %v5098 = vsel %vm530, %v4170, 0.0
    %v5099 = vrot.slane %v5098, 4
    %v5100 = vadd.f32 %v5098, %v5099
    %v5101 = vrot.slane %v5100, 2
    %v5102 = vadd.f32 %v5100, %v5101
    %v5103 = vrot.slane %v5102, 1
    %v5104 = vadd.f32 %v5102, %v5103
    %v5105 = vsel %vm530, %v4171, 0.0
    %v5106 = vrot.slane %v5105, 4
    %v5107 = vadd.f32 %v5105, %v5106
    %v5108 = vrot.slane %v5107, 2
    %v5109 = vadd.f32 %v5107, %v5108
    %v5110 = vrot.slane %v5109, 1
    %v5111 = vadd.f32 %v5109, %v5110
    %v5112 = vsel %vm530, %v4172, 0.0
    %v5113 = vrot.slane %v5112, 4
    %v5114 = vadd.f32 %v5112, %v5113
    %v5115 = vrot.slane %v5114, 2
    %v5116 = vadd.f32 %v5114, %v5115
    %v5117 = vrot.slane %v5116, 1
    %v5118 = vadd.f32 %v5116, %v5117
    %v5119 = vsel %vm530, %v4173, 0.0
    %v5120 = vrot.slane %v5119, 4
    %v5121 = vadd.f32 %v5119, %v5120
    %v5122 = vrot.slane %v5121, 2
    %v5123 = vadd.f32 %v5121, %v5122
    %v5124 = vrot.slane %v5123, 1
    %v5125 = vadd.f32 %v5123, %v5124
    %v5126 = vsel %vm530, %v4174, 0.0
    %v5127 = vrot.slane %v5126, 4
    %v5128 = vadd.f32 %v5126, %v5127
    %v5129 = vrot.slane %v5128, 2
    %v5130 = vadd.f32 %v5128, %v5129
    %v5131 = vrot.slane %v5130, 1
    %v5132 = vadd.f32 %v5130, %v5131
    %v5133 = vsel %vm530, %v4175, 0.0
    %v5134 = vrot.slane %v5133, 4
    %v5135 = vadd.f32 %v5133, %v5134
    %v5136 = vrot.slane %v5135, 2
    %v5137 = vadd.f32 %v5135, %v5136
    %v5138 = vrot.slane %v5137, 1
    %v5139 = vadd.f32 %v5137, %v5138
    %v5140 = vsel %vm530, %v4176, 0.0
    %v5141 = vrot.slane %v5140, 4
    %v5142 = vadd.f32 %v5140, %v5141
    %v5143 = vrot.slane %v5142, 2
    %v5144 = vadd.f32 %v5142, %v5143
    %v5145 = vrot.slane %v5144, 1
    %v5146 = vadd.f32 %v5144, %v5145
    %v5147 = vsel %vm530, %v4177, 0.0
    %v5148 = vrot.slane %v5147, 4
    %v5149 = vadd.f32 %v5147, %v5148
    %v5150 = vrot.slane %v5149, 2
    %v5151 = vadd.f32 %v5149, %v5150
    %v5152 = vrot.slane %v5151, 1
    %v5153 = vadd.f32 %v5151, %v5152
    %v5154 = vsel %vm530, %v4178, 0.0
    %v5155 = vrot.slane %v5154, 4
    %v5156 = vadd.f32 %v5154, %v5155
    %v5157 = vrot.slane %v5156, 2
    %v5158 = vadd.f32 %v5156, %v5157
    %v5159 = vrot.slane %v5158, 1
    %v5160 = vadd.f32 %v5158, %v5159
    %v5161 = vsel %vm530, %v4179, 0.0
    %v5162 = vrot.slane %v5161, 4
    %v5163 = vadd.f32 %v5161, %v5162
    %v5164 = vrot.slane %v5163, 2
    %v5165 = vadd.f32 %v5163, %v5164
    %v5166 = vrot.slane %v5165, 1
    %v5167 = vadd.f32 %v5165, %v5166
    %v5168 = vsel %vm530, %v4180, 0.0
    %v5169 = vrot.slane %v5168, 4
    %v5170 = vadd.f32 %v5168, %v5169
    %v5171 = vrot.slane %v5170, 2
    %v5172 = vadd.f32 %v5170, %v5171
    %v5173 = vrot.slane %v5172, 1
    %v5174 = vadd.f32 %v5172, %v5173
    %v5175 = vsel %vm530, %v4181, 0.0
    %v5176 = vrot.slane %v5175, 4
    %v5177 = vadd.f32 %v5175, %v5176
    %v5178 = vrot.slane %v5177, 2
    %v5179 = vadd.f32 %v5177, %v5178
    %v5180 = vrot.slane %v5179, 1
    %v5181 = vadd.f32 %v5179, %v5180
    %v5182 = vsel %vm530, %v4182, 0.0
    %v5183 = vrot.slane %v5182, 4
    %v5184 = vadd.f32 %v5182, %v5183
    %v5185 = vrot.slane %v5184, 2
    %v5186 = vadd.f32 %v5184, %v5185
    %v5187 = vrot.slane %v5186, 1
    %v5188 = vadd.f32 %v5186, %v5187
    %v5189 = vsel %vm530, %v4183, 0.0
    %v5190 = vrot.slane %v5189, 4
    %v5191 = vadd.f32 %v5189, %v5190
    %v5192 = vrot.slane %v5191, 2
    %v5193 = vadd.f32 %v5191, %v5192
    %v5194 = vrot.slane %v5193, 1
    %v5195 = vadd.f32 %v5193, %v5194
    %v5196 = vsel %vm530, %v4184, 0.0
    %v5197 = vrot.slane %v5196, 4
    %v5198 = vadd.f32 %v5196, %v5197
    %v5199 = vrot.slane %v5198, 2
    %v5200 = vadd.f32 %v5198, %v5199
    %v5201 = vrot.slane %v5200, 1
    %v5202 = vadd.f32 %v5200, %v5201
    %v5203 = vsel %vm530, %v4185, 0.0
    %v5204 = vrot.slane %v5203, 4
    %v5205 = vadd.f32 %v5203, %v5204
    %v5206 = vrot.slane %v5205, 2
    %v5207 = vadd.f32 %v5205, %v5206
    %v5208 = vrot.slane %v5207, 1
    %v5209 = vadd.f32 %v5207, %v5208
    %v5210 = vsel %vm530, %v4186, 0.0
    %v5211 = vrot.slane %v5210, 4
    %v5212 = vadd.f32 %v5210, %v5211
    %v5213 = vrot.slane %v5212, 2
    %v5214 = vadd.f32 %v5212, %v5213
    %v5215 = vrot.slane %v5214, 1
    %v5216 = vadd.f32 %v5214, %v5215
    %v5217 = vsel %vm530, %v4187, 0.0
    %v5218 = vrot.slane %v5217, 4
    %v5219 = vadd.f32 %v5217, %v5218
    %v5220 = vrot.slane %v5219, 2
    %v5221 = vadd.f32 %v5219, %v5220
    %v5222 = vrot.slane %v5221, 1
    %v5223 = vadd.f32 %v5221, %v5222
    %v5224 = vsel %vm530, %v4188, 0.0
    %v5225 = vrot.slane %v5224, 4
    %v5226 = vadd.f32 %v5224, %v5225
    %v5227 = vrot.slane %v5226, 2
    %v5228 = vadd.f32 %v5226, %v5227
    %v5229 = vrot.slane %v5228, 1
    %v5230 = vadd.f32 %v5228, %v5229
    %v5231 = vsel %vm530, %v4189, 0.0
    %v5232 = vrot.slane %v5231, 4
    %v5233 = vadd.f32 %v5231, %v5232
    %v5234 = vrot.slane %v5233, 2
    %v5235 = vadd.f32 %v5233, %v5234
    %v5236 = vrot.slane %v5235, 1
    %v5237 = vadd.f32 %v5235, %v5236
    %v5238 = vsel %vm530, %v4190, 0.0
    %v5239 = vrot.slane %v5238, 4
    %v5240 = vadd.f32 %v5238, %v5239
    %v5241 = vrot.slane %v5240, 2
    %v5242 = vadd.f32 %v5240, %v5241
    %v5243 = vrot.slane %v5242, 1
    %v5244 = vadd.f32 %v5242, %v5243
    %v5245 = vsel %vm530, %v4191, 0.0
    %v5246 = vrot.slane %v5245, 4
    %v5247 = vadd.f32 %v5245, %v5246
    %v5248 = vrot.slane %v5247, 2
    %v5249 = vadd.f32 %v5247, %v5248
    %v5250 = vrot.slane %v5249, 1
    %v5251 = vadd.f32 %v5249, %v5250
    %v5252 = vsel %vm530, %v4192, 0.0
    %v5253 = vrot.slane %v5252, 4
    %v5254 = vadd.f32 %v5252, %v5253
    %v5255 = vrot.slane %v5254, 2
    %v5256 = vadd.f32 %v5254, %v5255
    %v5257 = vrot.slane %v5256, 1
    %v5258 = vadd.f32 %v5256, %v5257
    %v5259 = vsel %vm530, %v4193, 0.0
    %v5260 = vrot.slane %v5259, 4
    %v5261 = vadd.f32 %v5259, %v5260
    %v5262 = vrot.slane %v5261, 2
    %v5263 = vadd.f32 %v5261, %v5262
    %v5264 = vrot.slane %v5263, 1
    %v5265 = vadd.f32 %v5263, %v5264
    %v5266 = vsel %vm530, %v4194, 0.0
    %v5267 = vrot.slane %v5266, 4
    %v5268 = vadd.f32 %v5266, %v5267
    %v5269 = vrot.slane %v5268, 2
    %v5270 = vadd.f32 %v5268, %v5269
    %v5271 = vrot.slane %v5270, 1
    %v5272 = vadd.f32 %v5270, %v5271
    %v5273 = vsel %vm530, %v4195, 0.0
    %v5274 = vrot.slane %v5273, 4
    %v5275 = vadd.f32 %v5273, %v5274
    %v5276 = vrot.slane %v5275, 2
    %v5277 = vadd.f32 %v5275, %v5276
    %v5278 = vrot.slane %v5277, 1
    %v5279 = vadd.f32 %v5277, %v5278
    %v5280 = vsel %vm530, %v4196, 0.0
    %v5281 = vrot.slane %v5280, 4
    %v5282 = vadd.f32 %v5280, %v5281
    %v5283 = vrot.slane %v5282, 2
    %v5284 = vadd.f32 %v5282, %v5283
    %v5285 = vrot.slane %v5284, 1
    %v5286 = vadd.f32 %v5284, %v5285
    %v5287 = vsel %vm530, %v4197, 0.0
    %v5288 = vrot.slane %v5287, 4
    %v5289 = vadd.f32 %v5287, %v5288
    %v5290 = vrot.slane %v5289, 2
    %v5291 = vadd.f32 %v5289, %v5290
    %v5292 = vrot.slane %v5291, 1
    %v5293 = vadd.f32 %v5291, %v5292
    %v5294 = vsel %vm530, %v4198, 0.0
    %v5295 = vrot.slane %v5294, 4
    %v5296 = vadd.f32 %v5294, %v5295
    %v5297 = vrot.slane %v5296, 2
    %v5298 = vadd.f32 %v5296, %v5297
    %v5299 = vrot.slane %v5298, 1
    %v5300 = vadd.f32 %v5298, %v5299
    %v5301 = vsel %vm530, %v4199, 0.0
    %v5302 = vrot.slane %v5301, 4
    %v5303 = vadd.f32 %v5301, %v5302
    %v5304 = vrot.slane %v5303, 2
    %v5305 = vadd.f32 %v5303, %v5304
    %v5306 = vrot.slane %v5305, 1
    %v5307 = vadd.f32 %v5305, %v5306
    %v5308 = vsel %vm530, %v4200, 0.0
    %v5309 = vrot.slane %v5308, 4
    %v5310 = vadd.f32 %v5308, %v5309
    %v5311 = vrot.slane %v5310, 2
    %v5312 = vadd.f32 %v5310, %v5311
    %v5313 = vrot.slane %v5312, 1
    %v5314 = vadd.f32 %v5312, %v5313
    %v5315 = vsel %vm530, %v4201, 0.0
    %v5316 = vrot.slane %v5315, 4
    %v5317 = vadd.f32 %v5315, %v5316
    %v5318 = vrot.slane %v5317, 2
    %v5319 = vadd.f32 %v5317, %v5318
    %v5320 = vrot.slane %v5319, 1
    %v5321 = vadd.f32 %v5319, %v5320
    %v5322 = vsel %vm530, %v4202, 0.0
    %v5323 = vrot.slane %v5322, 4
    %v5324 = vadd.f32 %v5322, %v5323
    %v5325 = vrot.slane %v5324, 2
    %v5326 = vadd.f32 %v5324, %v5325
    %v5327 = vrot.slane %v5326, 1
    %v5328 = vadd.f32 %v5326, %v5327
    %v5329 = vsel %vm530, %v4203, 0.0
    %v5330 = vrot.slane %v5329, 4
    %v5331 = vadd.f32 %v5329, %v5330
    %v5332 = vrot.slane %v5331, 2
    %v5333 = vadd.f32 %v5331, %v5332
    %v5334 = vrot.slane %v5333, 1
    %v5335 = vadd.f32 %v5333, %v5334
    %v5336 = vsel %vm530, %v4204, 0.0
    %v5337 = vrot.slane %v5336, 4
    %v5338 = vadd.f32 %v5336, %v5337
    %v5339 = vrot.slane %v5338, 2
    %v5340 = vadd.f32 %v5338, %v5339
    %v5341 = vrot.slane %v5340, 1
    %v5342 = vadd.f32 %v5340, %v5341
    %v5343 = vsel %vm530, %v4205, 0.0
    %v5344 = vrot.slane %v5343, 4
    %v5345 = vadd.f32 %v5343, %v5344
    %v5346 = vrot.slane %v5345, 2
    %v5347 = vadd.f32 %v5345, %v5346
    %v5348 = vrot.slane %v5347, 1
    %v5349 = vadd.f32 %v5347, %v5348
    %v5350 = vsel %vm530, %v4206, 0.0
    %v5351 = vrot.slane %v5350, 4
    %v5352 = vadd.f32 %v5350, %v5351
    %v5353 = vrot.slane %v5352, 2
    %v5354 = vadd.f32 %v5352, %v5353
    %v5355 = vrot.slane %v5354, 1
    %v5356 = vadd.f32 %v5354, %v5355
    %v5357 = vsel %vm530, %v4207, 0.0
    %v5358 = vrot.slane %v5357, 4
    %v5359 = vadd.f32 %v5357, %v5358
    %v5360 = vrot.slane %v5359, 2
    %v5361 = vadd.f32 %v5359, %v5360
    %v5362 = vrot.slane %v5361, 1
    %v5363 = vadd.f32 %v5361, %v5362
    %v5364 = vsel %vm530, %v4208, 0.0
    %v5365 = vrot.slane %v5364, 4
    %v5366 = vadd.f32 %v5364, %v5365
    %v5367 = vrot.slane %v5366, 2
    %v5368 = vadd.f32 %v5366, %v5367
    %v5369 = vrot.slane %v5368, 1
    %v5370 = vadd.f32 %v5368, %v5369
    %v5371 = vsel %vm530, %v4209, 0.0
    %v5372 = vrot.slane %v5371, 4
    %v5373 = vadd.f32 %v5371, %v5372
    %v5374 = vrot.slane %v5373, 2
    %v5375 = vadd.f32 %v5373, %v5374
    %v5376 = vrot.slane %v5375, 1
    %v5377 = vadd.f32 %v5375, %v5376
    %v5378 = vsel %vm530, %v4210, 0.0
    %v5379 = vrot.slane %v5378, 4
    %v5380 = vadd.f32 %v5378, %v5379
    %v5381 = vrot.slane %v5380, 2
    %v5382 = vadd.f32 %v5380, %v5381
    %v5383 = vrot.slane %v5382, 1
    %v5384 = vadd.f32 %v5382, %v5383
    %v5385 = vsel %vm530, %v4211, 0.0
    %v5386 = vrot.slane %v5385, 4
    %v5387 = vadd.f32 %v5385, %v5386
    %v5388 = vrot.slane %v5387, 2
    %v5389 = vadd.f32 %v5387, %v5388
    %v5390 = vrot.slane %v5389, 1
    %v5391 = vadd.f32 %v5389, %v5390
    %v5392 = vsel %vm530, %v4212, 0.0
    %v5393 = vrot.slane %v5392, 4
    %v5394 = vadd.f32 %v5392, %v5393
    %v5395 = vrot.slane %v5394, 2
    %v5396 = vadd.f32 %v5394, %v5395
    %v5397 = vrot.slane %v5396, 1
    %v5398 = vadd.f32 %v5396, %v5397
    %v5399 = vsel %vm530, %v4213, 0.0
    %v5400 = vrot.slane %v5399, 4
    %v5401 = vadd.f32 %v5399, %v5400
    %v5402 = vrot.slane %v5401, 2
    %v5403 = vadd.f32 %v5401, %v5402
    %v5404 = vrot.slane %v5403, 1
    %v5405 = vadd.f32 %v5403, %v5404
    %v5406 = vsel %vm530, %v4214, 0.0
    %v5407 = vrot.slane %v5406, 4
    %v5408 = vadd.f32 %v5406, %v5407
    %v5409 = vrot.slane %v5408, 2
    %v5410 = vadd.f32 %v5408, %v5409
    %v5411 = vrot.slane %v5410, 1
    %v5412 = vadd.f32 %v5410, %v5411
    %v5413 = vsel %vm530, %v4215, 0.0
    %v5414 = vrot.slane %v5413, 4
    %v5415 = vadd.f32 %v5413, %v5414
    %v5416 = vrot.slane %v5415, 2
    %v5417 = vadd.f32 %v5415, %v5416
    %v5418 = vrot.slane %v5417, 1
    %v5419 = vadd.f32 %v5417, %v5418
    %v5420 = vsel %vm530, %v4216, 0.0
    %v5421 = vrot.slane %v5420, 4
    %v5422 = vadd.f32 %v5420, %v5421
    %v5423 = vrot.slane %v5422, 2
    %v5424 = vadd.f32 %v5422, %v5423
    %v5425 = vrot.slane %v5424, 1
    %v5426 = vadd.f32 %v5424, %v5425
    %v5427 = vsel %vm530, %v4217, 0.0
    %v5428 = vrot.slane %v5427, 4
    %v5429 = vadd.f32 %v5427, %v5428
    %v5430 = vrot.slane %v5429, 2
    %v5431 = vadd.f32 %v5429, %v5430
    %v5432 = vrot.slane %v5431, 1
    %v5433 = vadd.f32 %v5431, %v5432
    %v5434 = vsel %vm530, %v4218, 0.0
    %v5435 = vrot.slane %v5434, 4
    %v5436 = vadd.f32 %v5434, %v5435
    %v5437 = vrot.slane %v5436, 2
    %v5438 = vadd.f32 %v5436, %v5437
    %v5439 = vrot.slane %v5438, 1
    %v5440 = vadd.f32 %v5438, %v5439
    %v5441 = vsel %vm530, %v4219, 0.0
    %v5442 = vrot.slane %v5441, 4
    %v5443 = vadd.f32 %v5441, %v5442
    %v5444 = vrot.slane %v5443, 2
    %v5445 = vadd.f32 %v5443, %v5444
    %v5446 = vrot.slane %v5445, 1
    %v5447 = vadd.f32 %v5445, %v5446
    %v5448 = vsel %vm530, %v4220, 0.0
    %v5449 = vrot.slane %v5448, 4
    %v5450 = vadd.f32 %v5448, %v5449
    %v5451 = vrot.slane %v5450, 2
    %v5452 = vadd.f32 %v5450, %v5451
    %v5453 = vrot.slane %v5452, 1
    %v5454 = vadd.f32 %v5452, %v5453
    %v5455 = vsel %vm530, %v4221, 0.0
    %v5456 = vrot.slane %v5455, 4
    %v5457 = vadd.f32 %v5455, %v5456
    %v5458 = vrot.slane %v5457, 2
    %v5459 = vadd.f32 %v5457, %v5458
    %v5460 = vrot.slane %v5459, 1
    %v5461 = vadd.f32 %v5459, %v5460
    %v5462 = vsel %vm530, %v4222, 0.0
    %v5463 = vrot.slane %v5462, 4
    %v5464 = vadd.f32 %v5462, %v5463
    %v5465 = vrot.slane %v5464, 2
    %v5466 = vadd.f32 %v5464, %v5465
    %v5467 = vrot.slane %v5466, 1
    %v5468 = vadd.f32 %v5466, %v5467
    %v5469 = vsel %vm530, %v4223, 0.0
    %v5470 = vrot.slane %v5469, 4
    %v5471 = vadd.f32 %v5469, %v5470
    %v5472 = vrot.slane %v5471, 2
    %v5473 = vadd.f32 %v5471, %v5472
    %v5474 = vrot.slane %v5473, 1
    %v5475 = vadd.f32 %v5473, %v5474
    %v5476 = vsel %vm530, %v4224, 0.0
    %v5477 = vrot.slane %v5476, 4
    %v5478 = vadd.f32 %v5476, %v5477
    %v5479 = vrot.slane %v5478, 2
    %v5480 = vadd.f32 %v5478, %v5479
    %v5481 = vrot.slane %v5480, 1
    %v5482 = vadd.f32 %v5480, %v5481
    %v5483 = vsel %vm530, %v4225, 0.0
    %v5484 = vrot.slane %v5483, 4
    %v5485 = vadd.f32 %v5483, %v5484
    %v5486 = vrot.slane %v5485, 2
    %v5487 = vadd.f32 %v5485, %v5486
    %v5488 = vrot.slane %v5487, 1
    %v5489 = vadd.f32 %v5487, %v5488
    %v5490 = vsel %vm530, %v4226, 0.0
    %v5491 = vrot.slane %v5490, 4
    %v5492 = vadd.f32 %v5490, %v5491
    %v5493 = vrot.slane %v5492, 2
    %v5494 = vadd.f32 %v5492, %v5493
    %v5495 = vrot.slane %v5494, 1
    %v5496 = vadd.f32 %v5494, %v5495
    %v5497 = vsel %vm530, %v4227, 0.0
    %v5498 = vrot.slane %v5497, 4
    %v5499 = vadd.f32 %v5497, %v5498
    %v5500 = vrot.slane %v5499, 2
    %v5501 = vadd.f32 %v5499, %v5500
    %v5502 = vrot.slane %v5501, 1
    %v5503 = vadd.f32 %v5501, %v5502
    %v5504 = vsel %vm530, %v4228, 0.0
    %v5505 = vrot.slane %v5504, 4
    %v5506 = vadd.f32 %v5504, %v5505
    %v5507 = vrot.slane %v5506, 2
    %v5508 = vadd.f32 %v5506, %v5507
    %v5509 = vrot.slane %v5508, 1
    %v5510 = vadd.f32 %v5508, %v5509
    %v5511 = vsel %vm530, %v4229, 0.0
    %v5512 = vrot.slane %v5511, 4
    %v5513 = vadd.f32 %v5511, %v5512
    %v5514 = vrot.slane %v5513, 2
    %v5515 = vadd.f32 %v5513, %v5514
    %v5516 = vrot.slane %v5515, 1
    %v5517 = vadd.f32 %v5515, %v5516
    %v5518 = vsel %vm530, %v4230, 0.0
    %v5519 = vrot.slane %v5518, 4
    %v5520 = vadd.f32 %v5518, %v5519
    %v5521 = vrot.slane %v5520, 2
    %v5522 = vadd.f32 %v5520, %v5521
    %v5523 = vrot.slane %v5522, 1
    %v5524 = vadd.f32 %v5522, %v5523
    %v5525 = vsel %vm530, %v4231, 0.0
    %v5526 = vrot.slane %v5525, 4
    %v5527 = vadd.f32 %v5525, %v5526
    %v5528 = vrot.slane %v5527, 2
    %v5529 = vadd.f32 %v5527, %v5528
    %v5530 = vrot.slane %v5529, 1
    %v5531 = vadd.f32 %v5529, %v5530
    %v5532 = vsel %vm530, %v4232, 0.0
    %v5533 = vrot.slane %v5532, 4
    %v5534 = vadd.f32 %v5532, %v5533
    %v5535 = vrot.slane %v5534, 2
    %v5536 = vadd.f32 %v5534, %v5535
    %v5537 = vrot.slane %v5536, 1
    %v5538 = vadd.f32 %v5536, %v5537
    %v5539 = vsel %vm530, %v4233, 0.0
    %v5540 = vrot.slane %v5539, 4
    %v5541 = vadd.f32 %v5539, %v5540
    %v5542 = vrot.slane %v5541, 2
    %v5543 = vadd.f32 %v5541, %v5542
    %v5544 = vrot.slane %v5543, 1
    %v5545 = vadd.f32 %v5543, %v5544
    %v5546 = vsel %vm530, %v4234, 0.0
    %v5547 = vrot.slane %v5546, 4
    %v5548 = vadd.f32 %v5546, %v5547
    %v5549 = vrot.slane %v5548, 2
    %v5550 = vadd.f32 %v5548, %v5549
    %v5551 = vrot.slane %v5550, 1
    %v5552 = vadd.f32 %v5550, %v5551
    %v5553 = vsel %vm530, %v4235, 0.0
    %v5554 = vrot.slane %v5553, 4
    %v5555 = vadd.f32 %v5553, %v5554
    %v5556 = vrot.slane %v5555, 2
    %v5557 = vadd.f32 %v5555, %v5556
    %v5558 = vrot.slane %v5557, 1
    %v5559 = vadd.f32 %v5557, %v5558
    %v5560 = vsel %vm530, %v4236, 0.0
    %v5561 = vrot.slane %v5560, 4
    %v5562 = vadd.f32 %v5560, %v5561
    %v5563 = vrot.slane %v5562, 2
    %v5564 = vadd.f32 %v5562, %v5563
    %v5565 = vrot.slane %v5564, 1
    %v5566 = vadd.f32 %v5564, %v5565
    %v5567 = vsel %vm530, %v4237, 0.0
    %v5568 = vrot.slane %v5567, 4
    %v5569 = vadd.f32 %v5567, %v5568
    %v5570 = vrot.slane %v5569, 2
    %v5571 = vadd.f32 %v5569, %v5570
    %v5572 = vrot.slane %v5571, 1
    %v5573 = vadd.f32 %v5571, %v5572
    %v5574 = vsel %vm530, %v4238, 0.0
    %v5575 = vrot.slane %v5574, 4
    %v5576 = vadd.f32 %v5574, %v5575
    %v5577 = vrot.slane %v5576, 2
    %v5578 = vadd.f32 %v5576, %v5577
    %v5579 = vrot.slane %v5578, 1
    %v5580 = vadd.f32 %v5578, %v5579
    %v5581 = vsel %vm530, %v4239, 0.0
    %v5582 = vrot.slane %v5581, 4
    %v5583 = vadd.f32 %v5581, %v5582
    %v5584 = vrot.slane %v5583, 2
    %v5585 = vadd.f32 %v5583, %v5584
    %v5586 = vrot.slane %v5585, 1
    %v5587 = vadd.f32 %v5585, %v5586
    %v5588 = vsel %vm530, %v4240, 0.0
    %v5589 = vrot.slane %v5588, 4
    %v5590 = vadd.f32 %v5588, %v5589
    %v5591 = vrot.slane %v5590, 2
    %v5592 = vadd.f32 %v5590, %v5591
    %v5593 = vrot.slane %v5592, 1
    %v5594 = vadd.f32 %v5592, %v5593
    %v5595 = vsel %vm530, %v4241, 0.0
    %v5596 = vrot.slane %v5595, 4
    %v5597 = vadd.f32 %v5595, %v5596
    %v5598 = vrot.slane %v5597, 2
    %v5599 = vadd.f32 %v5597, %v5598
    %v5600 = vrot.slane %v5599, 1
    %v5601 = vadd.f32 %v5599, %v5600
    %v5602 = vsel %vm530, %v4242, 0.0
    %v5603 = vrot.slane %v5602, 4
    %v5604 = vadd.f32 %v5602, %v5603
    %v5605 = vrot.slane %v5604, 2
    %v5606 = vadd.f32 %v5604, %v5605
    %v5607 = vrot.slane %v5606, 1
    %v5608 = vadd.f32 %v5606, %v5607
    %v5609 = vsel %vm530, %v4243, 0.0
    %v5610 = vrot.slane %v5609, 4
    %v5611 = vadd.f32 %v5609, %v5610
    %v5612 = vrot.slane %v5611, 2
    %v5613 = vadd.f32 %v5611, %v5612
    %v5614 = vrot.slane %v5613, 1
    %v5615 = vadd.f32 %v5613, %v5614
    %v5616 = vsel %vm530, %v4244, 0.0
    %v5617 = vrot.slane %v5616, 4
    %v5618 = vadd.f32 %v5616, %v5617
    %v5619 = vrot.slane %v5618, 2
    %v5620 = vadd.f32 %v5618, %v5619
    %v5621 = vrot.slane %v5620, 1
    %v5622 = vadd.f32 %v5620, %v5621
    %v5623 = vsel %vm530, %v4245, 0.0
    %v5624 = vrot.slane %v5623, 4
    %v5625 = vadd.f32 %v5623, %v5624
    %v5626 = vrot.slane %v5625, 2
    %v5627 = vadd.f32 %v5625, %v5626
    %v5628 = vrot.slane %v5627, 1
    %v5629 = vadd.f32 %v5627, %v5628
    %v5630 = vsel %vm530, %v4246, 0.0
    %v5631 = vrot.slane %v5630, 4
    %v5632 = vadd.f32 %v5630, %v5631
    %v5633 = vrot.slane %v5632, 2
    %v5634 = vadd.f32 %v5632, %v5633
    %v5635 = vrot.slane %v5634, 1
    %v5636 = vadd.f32 %v5634, %v5635
    %v5637 = vsel %vm530, %v4247, 0.0
    %v5638 = vrot.slane %v5637, 4
    %v5639 = vadd.f32 %v5637, %v5638
    %v5640 = vrot.slane %v5639, 2
    %v5641 = vadd.f32 %v5639, %v5640
    %v5642 = vrot.slane %v5641, 1
    %v5643 = vadd.f32 %v5641, %v5642
    %v5644 = vsel %vm530, %v4248, 0.0
    %v5645 = vrot.slane %v5644, 4
    %v5646 = vadd.f32 %v5644, %v5645
    %v5647 = vrot.slane %v5646, 2
    %v5648 = vadd.f32 %v5646, %v5647
    %v5649 = vrot.slane %v5648, 1
    %v5650 = vadd.f32 %v5648, %v5649
    %v5651 = vsel %vm530, %v4249, 0.0
    %v5652 = vrot.slane %v5651, 4
    %v5653 = vadd.f32 %v5651, %v5652
    %v5654 = vrot.slane %v5653, 2
    %v5655 = vadd.f32 %v5653, %v5654
    %v5656 = vrot.slane %v5655, 1
    %v5657 = vadd.f32 %v5655, %v5656
    %v5658 = vsel %vm530, %v4250, 0.0
    %v5659 = vrot.slane %v5658, 4
    %v5660 = vadd.f32 %v5658, %v5659
    %v5661 = vrot.slane %v5660, 2
    %v5662 = vadd.f32 %v5660, %v5661
    %v5663 = vrot.slane %v5662, 1
    %v5664 = vadd.f32 %v5662, %v5663
    %v5665 = vsel %vm530, %v4251, 0.0
    %v5666 = vrot.slane %v5665, 4
    %v5667 = vadd.f32 %v5665, %v5666
    %v5668 = vrot.slane %v5667, 2
    %v5669 = vadd.f32 %v5667, %v5668
    %v5670 = vrot.slane %v5669, 1
    %v5671 = vadd.f32 %v5669, %v5670
    %v5672 = vsel %vm530, %v4252, 0.0
    %v5673 = vrot.slane %v5672, 4
    %v5674 = vadd.f32 %v5672, %v5673
    %v5675 = vrot.slane %v5674, 2
    %v5676 = vadd.f32 %v5674, %v5675
    %v5677 = vrot.slane %v5676, 1
    %v5678 = vadd.f32 %v5676, %v5677
    %v5679 = vsel %vm530, %v4253, 0.0
    %v5680 = vrot.slane %v5679, 4
    %v5681 = vadd.f32 %v5679, %v5680
    %v5682 = vrot.slane %v5681, 2
    %v5683 = vadd.f32 %v5681, %v5682
    %v5684 = vrot.slane %v5683, 1
    %v5685 = vadd.f32 %v5683, %v5684
    %v5686 = vsel %vm530, %v4254, 0.0
    %v5687 = vrot.slane %v5686, 4
    %v5688 = vadd.f32 %v5686, %v5687
    %v5689 = vrot.slane %v5688, 2
    %v5690 = vadd.f32 %v5688, %v5689
    %v5691 = vrot.slane %v5690, 1
    %v5692 = vadd.f32 %v5690, %v5691
    %v5693 = vsel %vm530, %v4255, 0.0
    %v5694 = vrot.slane %v5693, 4
    %v5695 = vadd.f32 %v5693, %v5694
    %v5696 = vrot.slane %v5695, 2
    %v5697 = vadd.f32 %v5695, %v5696
    %v5698 = vrot.slane %v5697, 1
    %v5699 = vadd.f32 %v5697, %v5698
    %v5700 = vsel %vm530, %v4256, 0.0
    %v5701 = vrot.slane %v5700, 4
    %v5702 = vadd.f32 %v5700, %v5701
    %v5703 = vrot.slane %v5702, 2
    %v5704 = vadd.f32 %v5702, %v5703
    %v5705 = vrot.slane %v5704, 1
    %v5706 = vadd.f32 %v5704, %v5705
    %v5707 = vsel %vm530, %v4257, 0.0
    %v5708 = vrot.slane %v5707, 4
    %v5709 = vadd.f32 %v5707, %v5708
    %v5710 = vrot.slane %v5709, 2
    %v5711 = vadd.f32 %v5709, %v5710
    %v5712 = vrot.slane %v5711, 1
    %v5713 = vadd.f32 %v5711, %v5712
    %v5714 = vsel %vm530, %v4258, 0.0
    %v5715 = vrot.slane %v5714, 4
    %v5716 = vadd.f32 %v5714, %v5715
    %v5717 = vrot.slane %v5716, 2
    %v5718 = vadd.f32 %v5716, %v5717
    %v5719 = vrot.slane %v5718, 1
    %v5720 = vadd.f32 %v5718, %v5719
    %v5721 = vsel %vm530, %v4259, 0.0
    %v5722 = vrot.slane %v5721, 4
    %v5723 = vadd.f32 %v5721, %v5722
    %v5724 = vrot.slane %v5723, 2
    %v5725 = vadd.f32 %v5723, %v5724
    %v5726 = vrot.slane %v5725, 1
    %v5727 = vadd.f32 %v5725, %v5726
    %v5728 = vsel %vm530, %v4260, 0.0
    %v5729 = vrot.slane %v5728, 4
    %v5730 = vadd.f32 %v5728, %v5729
    %v5731 = vrot.slane %v5730, 2
    %v5732 = vadd.f32 %v5730, %v5731
    %v5733 = vrot.slane %v5732, 1
    %v5734 = vadd.f32 %v5732, %v5733
    %v5735 = vsel %vm530, %v4261, 0.0
    %v5736 = vrot.slane %v5735, 4
    %v5737 = vadd.f32 %v5735, %v5736
    %v5738 = vrot.slane %v5737, 2
    %v5739 = vadd.f32 %v5737, %v5738
    %v5740 = vrot.slane %v5739, 1
    %v5741 = vadd.f32 %v5739, %v5740
    %v5742 = vsel %vm530, %v4262, 0.0
    %v5743 = vrot.slane %v5742, 4
    %v5744 = vadd.f32 %v5742, %v5743
    %v5745 = vrot.slane %v5744, 2
    %v5746 = vadd.f32 %v5744, %v5745
    %v5747 = vrot.slane %v5746, 1
    %v5748 = vadd.f32 %v5746, %v5747
    %v5749 = vsel %vm530, %v4263, 0.0
    %v5750 = vrot.slane %v5749, 4
    %v5751 = vadd.f32 %v5749, %v5750
    %v5752 = vrot.slane %v5751, 2
    %v5753 = vadd.f32 %v5751, %v5752
    %v5754 = vrot.slane %v5753, 1
    %v5755 = vadd.f32 %v5753, %v5754
    %v5756 = vsel %vm530, %v4264, 0.0
    %v5757 = vrot.slane %v5756, 4
    %v5758 = vadd.f32 %v5756, %v5757
    %v5759 = vrot.slane %v5758, 2
    %v5760 = vadd.f32 %v5758, %v5759
    %v5761 = vrot.slane %v5760, 1
    %v5762 = vadd.f32 %v5760, %v5761
    %v5763 = vsel %vm530, %v4265, 0.0
    %v5764 = vrot.slane %v5763, 4
    %v5765 = vadd.f32 %v5763, %v5764
    %v5766 = vrot.slane %v5765, 2
    %v5767 = vadd.f32 %v5765, %v5766
    %v5768 = vrot.slane %v5767, 1
    %v5769 = vadd.f32 %v5767, %v5768
    %v5770 = vsel %vm530, %v4266, 0.0
    %v5771 = vrot.slane %v5770, 4
    %v5772 = vadd.f32 %v5770, %v5771
    %v5773 = vrot.slane %v5772, 2
    %v5774 = vadd.f32 %v5772, %v5773
    %v5775 = vrot.slane %v5774, 1
    %v5776 = vadd.f32 %v5774, %v5775
    %v5777 = vsel %vm530, %v4267, 0.0
    %v5778 = vrot.slane %v5777, 4
    %v5779 = vadd.f32 %v5777, %v5778
    %v5780 = vrot.slane %v5779, 2
    %v5781 = vadd.f32 %v5779, %v5780
    %v5782 = vrot.slane %v5781, 1
    %v5783 = vadd.f32 %v5781, %v5782
    %v5784 = vsel %vm530, %v4268, 0.0
    %v5785 = vrot.slane %v5784, 4
    %v5786 = vadd.f32 %v5784, %v5785
    %v5787 = vrot.slane %v5786, 2
    %v5788 = vadd.f32 %v5786, %v5787
    %v5789 = vrot.slane %v5788, 1
    %v5790 = vadd.f32 %v5788, %v5789
    %v5791 = vsel %vm530, %v4269, 0.0
    %v5792 = vrot.slane %v5791, 4
    %v5793 = vadd.f32 %v5791, %v5792
    %v5794 = vrot.slane %v5793, 2
    %v5795 = vadd.f32 %v5793, %v5794
    %v5796 = vrot.slane %v5795, 1
    %v5797 = vadd.f32 %v5795, %v5796
    %v5798 = vsel %vm530, %v4270, 0.0
    %v5799 = vrot.slane %v5798, 4
    %v5800 = vadd.f32 %v5798, %v5799
    %v5801 = vrot.slane %v5800, 2
    %v5802 = vadd.f32 %v5800, %v5801
    %v5803 = vrot.slane %v5802, 1
    %v5804 = vadd.f32 %v5802, %v5803
    %v5805 = vsel %vm530, %v4271, 0.0
    %v5806 = vrot.slane %v5805, 4
    %v5807 = vadd.f32 %v5805, %v5806
    %v5808 = vrot.slane %v5807, 2
    %v5809 = vadd.f32 %v5807, %v5808
    %v5810 = vrot.slane %v5809, 1
    %v5811 = vadd.f32 %v5809, %v5810
    %v5812 = vsel %vm530, %v4272, 0.0
    %v5813 = vrot.slane %v5812, 4
    %v5814 = vadd.f32 %v5812, %v5813
    %v5815 = vrot.slane %v5814, 2
    %v5816 = vadd.f32 %v5814, %v5815
    %v5817 = vrot.slane %v5816, 1
    %v5818 = vadd.f32 %v5816, %v5817
    %v5819 = vsel %vm530, %v4273, 0.0
    %v5820 = vrot.slane %v5819, 4
    %v5821 = vadd.f32 %v5819, %v5820
    %v5822 = vrot.slane %v5821, 2
    %v5823 = vadd.f32 %v5821, %v5822
    %v5824 = vrot.slane %v5823, 1
    %v5825 = vadd.f32 %v5823, %v5824
    %v5826 = vsel %vm530, %v4274, 0.0
    %v5827 = vrot.slane %v5826, 4
    %v5828 = vadd.f32 %v5826, %v5827
    %v5829 = vrot.slane %v5828, 2
    %v5830 = vadd.f32 %v5828, %v5829
    %v5831 = vrot.slane %v5830, 1
    %v5832 = vadd.f32 %v5830, %v5831
    %v5833 = vsel %vm530, %v4275, 0.0
    %v5834 = vrot.slane %v5833, 4
    %v5835 = vadd.f32 %v5833, %v5834
    %v5836 = vrot.slane %v5835, 2
    %v5837 = vadd.f32 %v5835, %v5836
    %v5838 = vrot.slane %v5837, 1
    %v5839 = vadd.f32 %v5837, %v5838
    %v5840 = vsel %vm530, %v4276, 0.0
    %v5841 = vrot.slane %v5840, 4
    %v5842 = vadd.f32 %v5840, %v5841
    %v5843 = vrot.slane %v5842, 2
    %v5844 = vadd.f32 %v5842, %v5843
    %v5845 = vrot.slane %v5844, 1
    %v5846 = vadd.f32 %v5844, %v5845
    %v5847 = vsel %vm530, %v4277, 0.0
    %v5848 = vrot.slane %v5847, 4
    %v5849 = vadd.f32 %v5847, %v5848
    %v5850 = vrot.slane %v5849, 2
    %v5851 = vadd.f32 %v5849, %v5850
    %v5852 = vrot.slane %v5851, 1
    %v5853 = vadd.f32 %v5851, %v5852
    %v5854 = vsel %vm530, %v4278, 0.0
    %v5855 = vrot.slane %v5854, 4
    %v5856 = vadd.f32 %v5854, %v5855
    %v5857 = vrot.slane %v5856, 2
    %v5858 = vadd.f32 %v5856, %v5857
    %v5859 = vrot.slane %v5858, 1
    %v5860 = vadd.f32 %v5858, %v5859
    %v5861 = vsel %vm530, %v4279, 0.0
    %v5862 = vrot.slane %v5861, 4
    %v5863 = vadd.f32 %v5861, %v5862
    %v5864 = vrot.slane %v5863, 2
    %v5865 = vadd.f32 %v5863, %v5864
    %v5866 = vrot.slane %v5865, 1
    %v5867 = vadd.f32 %v5865, %v5866
    %v5868 = vsel %vm530, %v4280, 0.0
    %v5869 = vrot.slane %v5868, 4
    %v5870 = vadd.f32 %v5868, %v5869
    %v5871 = vrot.slane %v5870, 2
    %v5872 = vadd.f32 %v5870, %v5871
    %v5873 = vrot.slane %v5872, 1
    %v5874 = vadd.f32 %v5872, %v5873
    %v5875 = vsel %vm530, %v4281, 0.0
    %v5876 = vrot.slane %v5875, 4
    %v5877 = vadd.f32 %v5875, %v5876
    %v5878 = vrot.slane %v5877, 2
    %v5879 = vadd.f32 %v5877, %v5878
    %v5880 = vrot.slane %v5879, 1
    %v5881 = vadd.f32 %v5879, %v5880
    %v5882 = vsel %vm530, %v4282, 0.0
    %v5883 = vrot.slane %v5882, 4
    %v5884 = vadd.f32 %v5882, %v5883
    %v5885 = vrot.slane %v5884, 2
    %v5886 = vadd.f32 %v5884, %v5885
    %v5887 = vrot.slane %v5886, 1
    %v5888 = vadd.f32 %v5886, %v5887
    %v5889 = vsel %vm530, %v4283, 0.0
    %v5890 = vrot.slane %v5889, 4
    %v5891 = vadd.f32 %v5889, %v5890
    %v5892 = vrot.slane %v5891, 2
    %v5893 = vadd.f32 %v5891, %v5892
    %v5894 = vrot.slane %v5893, 1
    %v5895 = vadd.f32 %v5893, %v5894
    %v5896 = vsel %vm530, %v4284, 0.0
    %v5897 = vrot.slane %v5896, 4
    %v5898 = vadd.f32 %v5896, %v5897
    %v5899 = vrot.slane %v5898, 2
    %v5900 = vadd.f32 %v5898, %v5899
    %v5901 = vrot.slane %v5900, 1
    %v5902 = vadd.f32 %v5900, %v5901
    %v5903 = vsel %vm530, %v4285, 0.0
    %v5904 = vrot.slane %v5903, 4
    %v5905 = vadd.f32 %v5903, %v5904
    %v5906 = vrot.slane %v5905, 2
    %v5907 = vadd.f32 %v5905, %v5906
    %v5908 = vrot.slane %v5907, 1
    %v5909 = vadd.f32 %v5907, %v5908
    %v5910 = vsel %vm530, %v4286, 0.0
    %v5911 = vrot.slane %v5910, 4
    %v5912 = vadd.f32 %v5910, %v5911
    %v5913 = vrot.slane %v5912, 2
    %v5914 = vadd.f32 %v5912, %v5913
    %v5915 = vrot.slane %v5914, 1
    %v5916 = vadd.f32 %v5914, %v5915
    %v5917 = vsel %vm530, %v4287, 0.0
    %v5918 = vrot.slane %v5917, 4
    %v5919 = vadd.f32 %v5917, %v5918
    %v5920 = vrot.slane %v5919, 2
    %v5921 = vadd.f32 %v5919, %v5920
    %v5922 = vrot.slane %v5921, 1
    %v5923 = vadd.f32 %v5921, %v5922
    %v5924 = vsel %vm530, %v4288, 0.0
    %v5925 = vrot.slane %v5924, 4
    %v5926 = vadd.f32 %v5924, %v5925
    %v5927 = vrot.slane %v5926, 2
    %v5928 = vadd.f32 %v5926, %v5927
    %v5929 = vrot.slane %v5928, 1
    %v5930 = vadd.f32 %v5928, %v5929
    %v5931 = vsel %vm530, %v4289, 0.0
    %v5932 = vrot.slane %v5931, 4
    %v5933 = vadd.f32 %v5931, %v5932
    %v5934 = vrot.slane %v5933, 2
    %v5935 = vadd.f32 %v5933, %v5934
    %v5936 = vrot.slane %v5935, 1
    %v5937 = vadd.f32 %v5935, %v5936
    %v5938 = vsel %vm530, %v4290, 0.0
    %v5939 = vrot.slane %v5938, 4
    %v5940 = vadd.f32 %v5938, %v5939
    %v5941 = vrot.slane %v5940, 2
    %v5942 = vadd.f32 %v5940, %v5941
    %v5943 = vrot.slane %v5942, 1
    %v5944 = vadd.f32 %v5942, %v5943
    %v5945 = vsel %vm530, %v4291, 0.0
    %v5946 = vrot.slane %v5945, 4
    %v5947 = vadd.f32 %v5945, %v5946
    %v5948 = vrot.slane %v5947, 2
    %v5949 = vadd.f32 %v5947, %v5948
    %v5950 = vrot.slane %v5949, 1
    %v5951 = vadd.f32 %v5949, %v5950
    %v5952 = vsel %vm530, %v4292, 0.0
    %v5953 = vrot.slane %v5952, 4
    %v5954 = vadd.f32 %v5952, %v5953
    %v5955 = vrot.slane %v5954, 2
    %v5956 = vadd.f32 %v5954, %v5955
    %v5957 = vrot.slane %v5956, 1
    %v5958 = vadd.f32 %v5956, %v5957
    %v5959 = vsel %vm530, %v4293, 0.0
    %v5960 = vrot.slane %v5959, 4
    %v5961 = vadd.f32 %v5959, %v5960
    %v5962 = vrot.slane %v5961, 2
    %v5963 = vadd.f32 %v5961, %v5962
    %v5964 = vrot.slane %v5963, 1
    %v5965 = vadd.f32 %v5963, %v5964
    %v5966 = vsel %vm530, %v4294, 0.0
    %v5967 = vrot.slane %v5966, 4
    %v5968 = vadd.f32 %v5966, %v5967
    %v5969 = vrot.slane %v5968, 2
    %v5970 = vadd.f32 %v5968, %v5969
    %v5971 = vrot.slane %v5970, 1
    %v5972 = vadd.f32 %v5970, %v5971
    %v5973 = vsel %vm530, %v4295, 0.0
    %v5974 = vrot.slane %v5973, 4
    %v5975 = vadd.f32 %v5973, %v5974
    %v5976 = vrot.slane %v5975, 2
    %v5977 = vadd.f32 %v5975, %v5976
    %v5978 = vrot.slane %v5977, 1
    %v5979 = vadd.f32 %v5977, %v5978
    %v5980 = vsel %vm530, %v4296, 0.0
    %v5981 = vrot.slane %v5980, 4
    %v5982 = vadd.f32 %v5980, %v5981
    %v5983 = vrot.slane %v5982, 2
    %v5984 = vadd.f32 %v5982, %v5983
    %v5985 = vrot.slane %v5984, 1
    %v5986 = vadd.f32 %v5984, %v5985
    %v5987 = vsel %vm530, %v4297, 0.0
    %v5988 = vrot.slane %v5987, 4
    %v5989 = vadd.f32 %v5987, %v5988
    %v5990 = vrot.slane %v5989, 2
    %v5991 = vadd.f32 %v5989, %v5990
    %v5992 = vrot.slane %v5991, 1
    %v5993 = vadd.f32 %v5991, %v5992
    %v5994 = vsel %vm530, %v4298, 0.0
    %v5995 = vrot.slane %v5994, 4
    %v5996 = vadd.f32 %v5994, %v5995
    %v5997 = vrot.slane %v5996, 2
    %v5998 = vadd.f32 %v5996, %v5997
    %v5999 = vrot.slane %v5998, 1
    %v6000 = vadd.f32 %v5998, %v5999
    %v6001 = vsel %vm530, %v4299, 0.0
    %v6002 = vrot.slane %v6001, 4
    %v6003 = vadd.f32 %v6001, %v6002
    %v6004 = vrot.slane %v6003, 2
    %v6005 = vadd.f32 %v6003, %v6004
    %v6006 = vrot.slane %v6005, 1
    %v6007 = vadd.f32 %v6005, %v6006
    %v6008 = vsel %vm530, %v4300, 0.0
    %v6009 = vrot.slane %v6008, 4
    %v6010 = vadd.f32 %v6008, %v6009
    %v6011 = vrot.slane %v6010, 2
    %v6012 = vadd.f32 %v6010, %v6011
    %v6013 = vrot.slane %v6012, 1
    %v6014 = vadd.f32 %v6012, %v6013
    %v6015 = vsel %vm530, %v4301, 0.0
    %v6016 = vrot.slane %v6015, 4
    %v6017 = vadd.f32 %v6015, %v6016
    %v6018 = vrot.slane %v6017, 2
    %v6019 = vadd.f32 %v6017, %v6018
    %v6020 = vrot.slane %v6019, 1
    %v6021 = vadd.f32 %v6019, %v6020
    %v6022 = vsel %vm530, %v4302, 0.0
    %v6023 = vrot.slane %v6022, 4
    %v6024 = vadd.f32 %v6022, %v6023
    %v6025 = vrot.slane %v6024, 2
    %v6026 = vadd.f32 %v6024, %v6025
    %v6027 = vrot.slane %v6026, 1
    %v6028 = vadd.f32 %v6026, %v6027
    %v6029 = vsel %vm530, %v4303, 0.0
    %v6030 = vrot.slane %v6029, 4
    %v6031 = vadd.f32 %v6029, %v6030
    %v6032 = vrot.slane %v6031, 2
    %v6033 = vadd.f32 %v6031, %v6032
    %v6034 = vrot.slane %v6033, 1
    %v6035 = vadd.f32 %v6033, %v6034
    %v6036 = vsel %vm530, %v4304, 0.0
    %v6037 = vrot.slane %v6036, 4
    %v6038 = vadd.f32 %v6036, %v6037
    %v6039 = vrot.slane %v6038, 2
    %v6040 = vadd.f32 %v6038, %v6039
    %v6041 = vrot.slane %v6040, 1
    %v6042 = vadd.f32 %v6040, %v6041
    %v6043 = vsel %vm530, %v4305, 0.0
    %v6044 = vrot.slane %v6043, 4
    %v6045 = vadd.f32 %v6043, %v6044
    %v6046 = vrot.slane %v6045, 2
    %v6047 = vadd.f32 %v6045, %v6046
    %v6048 = vrot.slane %v6047, 1
    %v6049 = vadd.f32 %v6047, %v6048
    %v6050 = vsel %vm530, %v4306, 0.0
    %v6051 = vrot.slane %v6050, 4
    %v6052 = vadd.f32 %v6050, %v6051
    %v6053 = vrot.slane %v6052, 2
    %v6054 = vadd.f32 %v6052, %v6053
    %v6055 = vrot.slane %v6054, 1
    %v6056 = vadd.f32 %v6054, %v6055
    %v6057 = vsel %vm530, %v4307, 0.0
    %v6058 = vrot.slane %v6057, 4
    %v6059 = vadd.f32 %v6057, %v6058
    %v6060 = vrot.slane %v6059, 2
    %v6061 = vadd.f32 %v6059, %v6060
    %v6062 = vrot.slane %v6061, 1
    %v6063 = vadd.f32 %v6061, %v6062
    %v6064 = vsel %vm530, %v4308, 0.0
    %v6065 = vrot.slane %v6064, 4
    %v6066 = vadd.f32 %v6064, %v6065
    %v6067 = vrot.slane %v6066, 2
    %v6068 = vadd.f32 %v6066, %v6067
    %v6069 = vrot.slane %v6068, 1
    %v6070 = vadd.f32 %v6068, %v6069
    %v6071 = vsel %vm530, %v4309, 0.0
    %v6072 = vrot.slane %v6071, 4
    %v6073 = vadd.f32 %v6071, %v6072
    %v6074 = vrot.slane %v6073, 2
    %v6075 = vadd.f32 %v6073, %v6074
    %v6076 = vrot.slane %v6075, 1
    %v6077 = vadd.f32 %v6075, %v6076
    %v6078 = vsel %vm530, %v4310, 0.0
    %v6079 = vrot.slane %v6078, 4
    %v6080 = vadd.f32 %v6078, %v6079
    %v6081 = vrot.slane %v6080, 2
    %v6082 = vadd.f32 %v6080, %v6081
    %v6083 = vrot.slane %v6082, 1
    %v6084 = vadd.f32 %v6082, %v6083
    %v6085 = vsel %vm530, %v4311, 0.0
    %v6086 = vrot.slane %v6085, 4
    %v6087 = vadd.f32 %v6085, %v6086
    %v6088 = vrot.slane %v6087, 2
    %v6089 = vadd.f32 %v6087, %v6088
    %v6090 = vrot.slane %v6089, 1
    %v6091 = vadd.f32 %v6089, %v6090
    %v6092 = vsel %vm530, %v4312, 0.0
    %v6093 = vrot.slane %v6092, 4
    %v6094 = vadd.f32 %v6092, %v6093
    %v6095 = vrot.slane %v6094, 2
    %v6096 = vadd.f32 %v6094, %v6095
    %v6097 = vrot.slane %v6096, 1
    %v6098 = vadd.f32 %v6096, %v6097
    %v6099 = vsel %vm530, %v4313, 0.0
    %v6100 = vrot.slane %v6099, 4
    %v6101 = vadd.f32 %v6099, %v6100
    %v6102 = vrot.slane %v6101, 2
    %v6103 = vadd.f32 %v6101, %v6102
    %v6104 = vrot.slane %v6103, 1
    %v6105 = vadd.f32 %v6103, %v6104
    %v6362 = vsel %vm1813, %v4327, %v4320
    %v6363 = vsel %vm1815, %v4334, %v6362
    %v6364 = vsel %vm1817, %v4341, %v6363
    %v6365 = vsel %vm1819, %v4348, %v6364
    %v6366 = vsel %vm1821, %v4355, %v6365
    %v6367 = vsel %vm1823, %v4362, %v6366
    %v6368 = vsel %vm1825, %v4369, %v6367
    %v6369 = vsel %vm1813, %v4383, %v4376
    %v6370 = vsel %vm1815, %v4390, %v6369
    %v6371 = vsel %vm1817, %v4397, %v6370
    %v6372 = vsel %vm1819, %v4404, %v6371
    %v6373 = vsel %vm1821, %v4411, %v6372
    %v6374 = vsel %vm1823, %v4418, %v6373
    %v6375 = vsel %vm1825, %v4425, %v6374
    %v6376 = vsel %vm1813, %v4439, %v4432
    %v6377 = vsel %vm1815, %v4446, %v6376
    %v6378 = vsel %vm1817, %v4453, %v6377
    %v6379 = vsel %vm1819, %v4460, %v6378
    %v6380 = vsel %vm1821, %v4467, %v6379
    %v6381 = vsel %vm1823, %v4474, %v6380
    %v6382 = vsel %vm1825, %v4481, %v6381
    %v6383 = vsel %vm1813, %v4495, %v4488
    %v6384 = vsel %vm1815, %v4502, %v6383
    %v6385 = vsel %vm1817, %v4509, %v6384
    %v6386 = vsel %vm1819, %v4516, %v6385
    %v6387 = vsel %vm1821, %v4523, %v6386
    %v6388 = vsel %vm1823, %v4530, %v6387
    %v6389 = vsel %vm1825, %v4537, %v6388
    %v6390 = vsel %vm1813, %v4551, %v4544
    %v6391 = vsel %vm1815, %v4558, %v6390
    %v6392 = vsel %vm1817, %v4565, %v6391
    %v6393 = vsel %vm1819, %v4572, %v6392
    %v6394 = vsel %vm1821, %v4579, %v6393
    %v6395 = vsel %vm1823, %v4586, %v6394
    %v6396 = vsel %vm1825, %v4593, %v6395
    %v6397 = vsel %vm1813, %v4607, %v4600
    %v6398 = vsel %vm1815, %v4614, %v6397
    %v6399 = vsel %vm1817, %v4621, %v6398
    %v6400 = vsel %vm1819, %v4628, %v6399
    %v6401 = vsel %vm1821, %v4635, %v6400
    %v6402 = vsel %vm1823, %v4642, %v6401
    %v6403 = vsel %vm1825, %v4649, %v6402
    %v6404 = vsel %vm1813, %v4663, %v4656
    %v6405 = vsel %vm1815, %v4670, %v6404
    %v6406 = vsel %vm1817, %v4677, %v6405
    %v6407 = vsel %vm1819, %v4684, %v6406
    %v6408 = vsel %vm1821, %v4691, %v6407
    %v6409 = vsel %vm1823, %v4698, %v6408
    %v6410 = vsel %vm1825, %v4705, %v6409
    %v6411 = vsel %vm1813, %v4719, %v4712
    %v6412 = vsel %vm1815, %v4726, %v6411
    %v6413 = vsel %vm1817, %v4733, %v6412
    %v6414 = vsel %vm1819, %v4740, %v6413
    %v6415 = vsel %vm1821, %v4747, %v6414
    %v6416 = vsel %vm1823, %v4754, %v6415
    %v6417 = vsel %vm1825, %v4761, %v6416
    %v6418 = vsel %vm1813, %v4775, %v4768
    %v6419 = vsel %vm1815, %v4782, %v6418
    %v6420 = vsel %vm1817, %v4789, %v6419
    %v6421 = vsel %vm1819, %v4796, %v6420
    %v6422 = vsel %vm1821, %v4803, %v6421
    %v6423 = vsel %vm1823, %v4810, %v6422
    %v6424 = vsel %vm1825, %v4817, %v6423
    %v6425 = vsel %vm1813, %v4831, %v4824
    %v6426 = vsel %vm1815, %v4838, %v6425
    %v6427 = vsel %vm1817, %v4845, %v6426
    %v6428 = vsel %vm1819, %v4852, %v6427
    %v6429 = vsel %vm1821, %v4859, %v6428
    %v6430 = vsel %vm1823, %v4866, %v6429
    %v6431 = vsel %vm1825, %v4873, %v6430
    %v6432 = vsel %vm1813, %v4887, %v4880
    %v6433 = vsel %vm1815, %v4894, %v6432
    %v6434 = vsel %vm1817, %v4901, %v6433
    %v6435 = vsel %vm1819, %v4908, %v6434
    %v6436 = vsel %vm1821, %v4915, %v6435
    %v6437 = vsel %vm1823, %v4922, %v6436
    %v6438 = vsel %vm1825, %v4929, %v6437
    %v6439 = vsel %vm1813, %v4943, %v4936
    %v6440 = vsel %vm1815, %v4950, %v6439
    %v6441 = vsel %vm1817, %v4957, %v6440
    %v6442 = vsel %vm1819, %v4964, %v6441
    %v6443 = vsel %vm1821, %v4971, %v6442
    %v6444 = vsel %vm1823, %v4978, %v6443
    %v6445 = vsel %vm1825, %v4985, %v6444
    %v6446 = vsel %vm1813, %v4999, %v4992
    %v6447 = vsel %vm1815, %v5006, %v6446
    %v6448 = vsel %vm1817, %v5013, %v6447
    %v6449 = vsel %vm1819, %v5020, %v6448
    %v6450 = vsel %vm1821, %v5027, %v6449
    %v6451 = vsel %vm1823, %v5034, %v6450
    %v6452 = vsel %vm1825, %v5041, %v6451
    %v6453 = vsel %vm1813, %v5055, %v5048
    %v6454 = vsel %vm1815, %v5062, %v6453
    %v6455 = vsel %vm1817, %v5069, %v6454
    %v6456 = vsel %vm1819, %v5076, %v6455
    %v6457 = vsel %vm1821, %v5083, %v6456
    %v6458 = vsel %vm1823, %v5090, %v6457
    %v6459 = vsel %vm1825, %v5097, %v6458
    %v6460 = vsel %vm1813, %v5111, %v5104
    %v6461 = vsel %vm1815, %v5118, %v6460
    %v6462 = vsel %vm1817, %v5125, %v6461
    %v6463 = vsel %vm1819, %v5132, %v6462
    %v6464 = vsel %vm1821, %v5139, %v6463
    %v6465 = vsel %vm1823, %v5146, %v6464
    %v6466 = vsel %vm1825, %v5153, %v6465
    %v6467 = vsel %vm1813, %v5167, %v5160
    %v6468 = vsel %vm1815, %v5174, %v6467
    %v6469 = vsel %vm1817, %v5181, %v6468
    %v6470 = vsel %vm1819, %v5188, %v6469
    %v6471 = vsel %vm1821, %v5195, %v6470
    %v6472 = vsel %vm1823, %v5202, %v6471
    %v6473 = vsel %vm1825, %v5209, %v6472
    %v6474 = vsel %vm1813, %v5223, %v5216
    %v6475 = vsel %vm1815, %v5230, %v6474
    %v6476 = vsel %vm1817, %v5237, %v6475
    %v6477 = vsel %vm1819, %v5244, %v6476
    %v6478 = vsel %vm1821, %v5251, %v6477
    %v6479 = vsel %vm1823, %v5258, %v6478
    %v6480 = vsel %vm1825, %v5265, %v6479
    %v6481 = vsel %vm1813, %v5279, %v5272
    %v6482 = vsel %vm1815, %v5286, %v6481
    %v6483 = vsel %vm1817, %v5293, %v6482
    %v6484 = vsel %vm1819, %v5300, %v6483
    %v6485 = vsel %vm1821, %v5307, %v6484
    %v6486 = vsel %vm1823, %v5314, %v6485
    %v6487 = vsel %vm1825, %v5321, %v6486
    %v6488 = vsel %vm1813, %v5335, %v5328
    %v6489 = vsel %vm1815, %v5342, %v6488
    %v6490 = vsel %vm1817, %v5349, %v6489
    %v6491 = vsel %vm1819, %v5356, %v6490
    %v6492 = vsel %vm1821, %v5363, %v6491
    %v6493 = vsel %vm1823, %v5370, %v6492
    %v6494 = vsel %vm1825, %v5377, %v6493
    %v6495 = vsel %vm1813, %v5391, %v5384
    %v6496 = vsel %vm1815, %v5398, %v6495
    %v6497 = vsel %vm1817, %v5405, %v6496
    %v6498 = vsel %vm1819, %v5412, %v6497
    %v6499 = vsel %vm1821, %v5419, %v6498
    %v6500 = vsel %vm1823, %v5426, %v6499
    %v6501 = vsel %vm1825, %v5433, %v6500
    %v6502 = vsel %vm1813, %v5447, %v5440
    %v6503 = vsel %vm1815, %v5454, %v6502
    %v6504 = vsel %vm1817, %v5461, %v6503
    %v6505 = vsel %vm1819, %v5468, %v6504
    %v6506 = vsel %vm1821, %v5475, %v6505
    %v6507 = vsel %vm1823, %v5482, %v6506
    %v6508 = vsel %vm1825, %v5489, %v6507
    %v6509 = vsel %vm1813, %v5503, %v5496
    %v6510 = vsel %vm1815, %v5510, %v6509
    %v6511 = vsel %vm1817, %v5517, %v6510
    %v6512 = vsel %vm1819, %v5524, %v6511
    %v6513 = vsel %vm1821, %v5531, %v6512
    %v6514 = vsel %vm1823, %v5538, %v6513
    %v6515 = vsel %vm1825, %v5545, %v6514
    %v6516 = vsel %vm1813, %v5559, %v5552
    %v6517 = vsel %vm1815, %v5566, %v6516
    %v6518 = vsel %vm1817, %v5573, %v6517
    %v6519 = vsel %vm1819, %v5580, %v6518
    %v6520 = vsel %vm1821, %v5587, %v6519
    %v6521 = vsel %vm1823, %v5594, %v6520
    %v6522 = vsel %vm1825, %v5601, %v6521
    %v6523 = vsel %vm1813, %v5615, %v5608
    %v6524 = vsel %vm1815, %v5622, %v6523
    %v6525 = vsel %vm1817, %v5629, %v6524
    %v6526 = vsel %vm1819, %v5636, %v6525
    %v6527 = vsel %vm1821, %v5643, %v6526
    %v6528 = vsel %vm1823, %v5650, %v6527
    %v6529 = vsel %vm1825, %v5657, %v6528
    %v6530 = vsel %vm1813, %v5671, %v5664
    %v6531 = vsel %vm1815, %v5678, %v6530
    %v6532 = vsel %vm1817, %v5685, %v6531
    %v6533 = vsel %vm1819, %v5692, %v6532
    %v6534 = vsel %vm1821, %v5699, %v6533
    %v6535 = vsel %vm1823, %v5706, %v6534
    %v6536 = vsel %vm1825, %v5713, %v6535
    %v6537 = vsel %vm1813, %v5727, %v5720
    %v6538 = vsel %vm1815, %v5734, %v6537
    %v6539 = vsel %vm1817, %v5741, %v6538
    %v6540 = vsel %vm1819, %v5748, %v6539
    %v6541 = vsel %vm1821, %v5755, %v6540
    %v6542 = vsel %vm1823, %v5762, %v6541
    %v6543 = vsel %vm1825, %v5769, %v6542
    %v6544 = vsel %vm1813, %v5783, %v5776
    %v6545 = vsel %vm1815, %v5790, %v6544
    %v6546 = vsel %vm1817, %v5797, %v6545
    %v6547 = vsel %vm1819, %v5804, %v6546
    %v6548 = vsel %vm1821, %v5811, %v6547
    %v6549 = vsel %vm1823, %v5818, %v6548
    %v6550 = vsel %vm1825, %v5825, %v6549
    %v6551 = vsel %vm1813, %v5839, %v5832
    %v6552 = vsel %vm1815, %v5846, %v6551
    %v6553 = vsel %vm1817, %v5853, %v6552
    %v6554 = vsel %vm1819, %v5860, %v6553
    %v6555 = vsel %vm1821, %v5867, %v6554
    %v6556 = vsel %vm1823, %v5874, %v6555
    %v6557 = vsel %vm1825, %v5881, %v6556
    %v6558 = vsel %vm1813, %v5895, %v5888
    %v6559 = vsel %vm1815, %v5902, %v6558
    %v6560 = vsel %vm1817, %v5909, %v6559
    %v6561 = vsel %vm1819, %v5916, %v6560
    %v6562 = vsel %vm1821, %v5923, %v6561
    %v6563 = vsel %vm1823, %v5930, %v6562
    %v6564 = vsel %vm1825, %v5937, %v6563
    %v6565 = vsel %vm1813, %v5951, %v5944
    %v6566 = vsel %vm1815, %v5958, %v6565
    %v6567 = vsel %vm1817, %v5965, %v6566
    %v6568 = vsel %vm1819, %v5972, %v6567
    %v6569 = vsel %vm1821, %v5979, %v6568
    %v6570 = vsel %vm1823, %v5986, %v6569
    %v6571 = vsel %vm1825, %v5993, %v6570
    %v6572 = vsel %vm1813, %v6007, %v6000
    %v6573 = vsel %vm1815, %v6014, %v6572
    %v6574 = vsel %vm1817, %v6021, %v6573
    %v6575 = vsel %vm1819, %v6028, %v6574
    %v6576 = vsel %vm1821, %v6035, %v6575
    %v6577 = vsel %vm1823, %v6042, %v6576
    %v6578 = vsel %vm1825, %v6049, %v6577
    %v6579 = vsel %vm1813, %v6063, %v6056
    %v6580 = vsel %vm1815, %v6070, %v6579
    %v6581 = vsel %vm1817, %v6077, %v6580
    %v6582 = vsel %vm1819, %v6084, %v6581
    %v6583 = vsel %vm1821, %v6091, %v6582
    %v6584 = vsel %vm1823, %v6098, %v6583
    %v6585 = vsel %vm1825, %v6105, %v6584
    %6618 = vst.msk [vmem:[%s2] sm:$0xff] %vm530, %v6368
    %6619 = vst.msk [vmem:[%s2 + $0x8] sm:$0xff] %vm530, %v6375
    %6620 = vst.msk [vmem:[%s2 + $0x10] sm:$0xff] %vm530, %v6382
    %6621 = vst.msk [vmem:[%s2 + $0x18] sm:$0xff] %vm530, %v6389
    %6622 = vst.msk [vmem:[%s2 + $0x20] sm:$0xff] %vm530, %v6396
    %6623 = vst.msk [vmem:[%s2 + $0x28] sm:$0xff] %vm530, %v6403
    %6624 = vst.msk [vmem:[%s2 + $0x30] sm:$0xff] %vm530, %v6410
    %6625 = vst.msk [vmem:[%s2 + $0x38] sm:$0xff] %vm530, %v6417
    %6626 = vst.msk [vmem:[%s2 + $0x40] sm:$0xff] %vm530, %v6424
    %6627 = vst.msk [vmem:[%s2 + $0x48] sm:$0xff] %vm530, %v6431
    %6628 = vst.msk [vmem:[%s2 + $0x50] sm:$0xff] %vm530, %v6438
    %6629 = vst.msk [vmem:[%s2 + $0x58] sm:$0xff] %vm530, %v6445
    %6630 = vst.msk [vmem:[%s2 + $0x60] sm:$0xff] %vm530, %v6452
    %6631 = vst.msk [vmem:[%s2 + $0x68] sm:$0xff] %vm530, %v6459
    %6632 = vst.msk [vmem:[%s2 + $0x70] sm:$0xff] %vm530, %v6466
    %6633 = vst.msk [vmem:[%s2 + $0x78] sm:$0xff] %vm530, %v6473
    %6634 = vst.msk [vmem:[%s2 + $0x80] sm:$0xff] %vm530, %v6480
    %6635 = vst.msk [vmem:[%s2 + $0x88] sm:$0xff] %vm530, %v6487
    %6636 = vst.msk [vmem:[%s2 + $0x90] sm:$0xff] %vm530, %v6494
    %6637 = vst.msk [vmem:[%s2 + $0x98] sm:$0xff] %vm530, %v6501
    %6638 = vst.msk [vmem:[%s2 + $0xa0] sm:$0xff] %vm530, %v6508
    %6639 = vst.msk [vmem:[%s2 + $0xa8] sm:$0xff] %vm530, %v6515
    %6640 = vst.msk [vmem:[%s2 + $0xb0] sm:$0xff] %vm530, %v6522
    %6641 = vst.msk [vmem:[%s2 + $0xb8] sm:$0xff] %vm530, %v6529
    %6642 = vst.msk [vmem:[%s2 + $0xc0] sm:$0xff] %vm530, %v6536
    %6643 = vst.msk [vmem:[%s2 + $0xc8] sm:$0xff] %vm530, %v6543
    %6644 = vst.msk [vmem:[%s2 + $0xd0] sm:$0xff] %vm530, %v6550
    %6645 = vst.msk [vmem:[%s2 + $0xd8] sm:$0xff] %vm530, %v6557
    %6646 = vst.msk [vmem:[%s2 + $0xe0] sm:$0xff] %vm530, %v6564
    %6647 = vst.msk [vmem:[%s2 + $0xe8] sm:$0xff] %vm530, %v6571
    %6648 = vst.msk [vmem:[%s2 + $0xf0] sm:$0xff] %vm530, %v6578
    %6649 = vst.msk [vmem:[%s2 + $0xf8] sm:$0xff] %vm530, %v6585
    // Predicated region
    $region10: #{tpu_custom_call.1} parent=1 // pred_check
      _
    $region11: #{tpu_custom_call.1} parent=1 // pred_check_branch
      %6651 = sbr.rel (0) target = $region13
    $region12: #{tpu_custom_call.1} parent=1 // pred_region
      _
    $region13: #{tpu_custom_call.1} parent=1 // pred_fallthru
      _
    // Predicated region
    $region14: #{tpu_custom_call.1} parent=1 // pred_check
      _
    $region15: #{tpu_custom_call.1} parent=1 // pred_check_branch
      %6653 = sbr.rel (0) target = $region17
    $region16: #{tpu_custom_call.1} parent=1 // pred_region
      %6655 = vsyncadd [#allocation3], 0
      %s6657 = sshll.u32 [#allocation2], 4
      %s6658 = int_to_ptr.vmem [resolvable:$true] %s6657
      %s6659 = sshll.u32 %s3, 4
      %s6660 = int_to_ptr.hbm [resolvable:$true] %s6659
      %6662 = dma.vmem_to_hbm [thread:$0]  %s6658, 256, %s6660, [#allocation3]
    $region17: #{tpu_custom_call.1} parent=1 // pred_fallthru
      _
    // Predicated region
    $region18: #{tpu_custom_call.1} parent=1 // pred_check
      _
    $region19: #{tpu_custom_call.1} parent=1 // pred_check_branch
      %6664 = sbr.rel (0) target = $region21
    $region20: #{tpu_custom_call.1} parent=1 // pred_region
      _
    $region21: #{tpu_custom_call.1} parent=1 // pred_fallthru
      _
    // Predicated region
    $region22: #{tpu_custom_call.1} parent=1 // pred_check
      _
    $region23: #{tpu_custom_call.1} parent=1 // pred_check_branch
      %6666 = sbr.rel (0) target = $region25
    $region24: #{tpu_custom_call.1} parent=1 // pred_region
      %6668 = dma.done [#allocation3], 256
    $region25: #{tpu_custom_call.1} parent=1 // pred_fallthru
      _
    %6669 = vsyncpa [#allocation3], 1

</llo_original>
